<compile_context>
chip_gen: v6e
topology: v6e:2x2x1
jax: 0.10.0
libtpu: 0.0.40
codegen_flags: <defaults>
</compile_context>

<pallas_src>
import jax
import jax.numpy as jnp
from jax.experimental import pallas as pl
from jax.experimental.pallas import tpu as pltpu

_CHUNK_ROWS = 8   # one vreg of sublanes per row-chunk
_N_ACC = 4        # independent partial accumulators (break serial add chain)


def circle_nn_kernel(x_ref, w1c_ref, w1s_ref, b1_ref, w2_ref, b2_ref, o_ref):
    hidden = w1c_ref.shape[0]                 # static (64)
    block_rows = x_ref.shape[0]               # static, multiple of _CHUNK_ROWS
    n_chunks = block_rows // _CHUNK_ROWS
    b2 = b2_ref[0]

    # Strip-mine the (block_rows, lane_w) tile into (8, lane_w) row chunks so
    # cos/sin/accumulators live in vregs across the whole hidden-unit loop.
    @pl.loop(0, n_chunks)
    def _(r):
        r0 = pl.multiple_of(r * _CHUNK_ROWS, _CHUNK_ROWS)
        x = x_ref[pl.ds(r0, _CHUNK_ROWS), :]
        c = jnp.cos(x)
        s = jnp.sin(x)

        accs = [jnp.zeros(x.shape, jnp.float32) for _ in range(_N_ACC)]
        for j in range(hidden):               # static, unrolled over a small chunk
            h = jnp.tanh(w1c_ref[j] * c + w1s_ref[j] * s + b1_ref[j])
            k = j % _N_ACC
            accs[k] = accs[k] + w2_ref[j] * h

        out = (accs[0] + accs[1]) + (accs[2] + accs[3]) + b2
        o_ref[pl.ds(r0, _CHUNK_ROWS), :] = out.astype(o_ref.dtype)


def _choose_tiling(m, *, max_block_rows=256, max_lane_width=512):
    """Pick (lane_w, rows, block_rows, rows_pad) for a flat input of m elems."""
    lane_w = max_lane_width
    # Shrink lanes for small inputs so there are at least 2 row-chunks of work.
    while lane_w > 128 and m < 2 * _CHUNK_ROWS * lane_w:
        lane_w //= 2
    rows = pl.cdiv(m, lane_w)
    # Shrink block_rows until the grid has >=2 steps (v7x megacore), floor at 8.
    block_rows = max_block_rows
    while block_rows > _CHUNK_ROWS and rows < 2 * block_rows:
        block_rows //= 2
    rows_pad = pl.cdiv(rows, block_rows) * block_rows
    return lane_w, rows, block_rows, rows_pad


def circle_nn_forward(x, params, *, max_block_rows=256, max_lane_width=512):
    """CircleNN forward for arbitrary-shaped x (matches torch semantics)."""
    orig_shape = x.shape
    orig_dtype = x.dtype
    flat = jnp.asarray(x, jnp.float32).reshape(-1)
    m = flat.shape[0]

    lane_w, rows, block_rows, rows_pad = _choose_tiling(
        m, max_block_rows=max_block_rows, max_lane_width=max_lane_width)
    padded = rows_pad * lane_w
    aligned = (padded == m)

    # Skip the extra HBM pad pass entirely when the input is already aligned.
    if aligned:
        xp = flat.reshape(rows_pad, lane_w)
    else:
        xp = jnp.pad(flat, (0, padded - m)).reshape(rows_pad, lane_w)

    # Kernel-ready weight views (torch Linear layout -> per-hidden-unit scalars)
    hidden = params["w1"].shape[0]
    w1_cos = params["w1"][:, 0]          # (H,)
    w1_sin = params["w1"][:, 1]          # (H,)
    b1 = params["b1"]                    # (H,)
    w2 = params["w2"][0]                 # (H,)
    b2 = params["b2"]                    # (1,)

    smem = pl.BlockSpec(memory_space=pltpu.MemorySpace.SMEM)
    grid = (rows_pad // block_rows,)

    # Advisory cost: ~6 VALU flops + ~(H+2) transcendentals per element.
    cost = pl.CostEstimate(
        flops=6 * hidden * padded,
        transcendentals=(hidden + 2) * padded,
        bytes_accessed=8 * padded,
    )

    out2d = pl.pallas_call(
        circle_nn_kernel,
        out_shape=jax.ShapeDtypeStruct((rows_pad, lane_w), jnp.float32),
        grid_spec=pltpu.PrefetchScalarGridSpec(
            num_scalar_prefetch=0,
            grid=grid,
            in_specs=[
                pl.BlockSpec((block_rows, lane_w), lambda i: (i, 0)),  # x tile
                smem, smem, smem, smem, smem,                          # weights
            ],
            out_specs=pl.BlockSpec((block_rows, lane_w), lambda i: (i, 0)),
        ),
        compiler_params=pltpu.CompilerParams(
            dimension_semantics=("parallel",)),
        cost_estimate=cost,
    )(xp, w1_cos, w1_sin, b1, w2, b2)

    # Skip the tail-slice pass when no padding was added.
    if aligned:
        out = out2d.reshape(orig_shape)
    else:
        out = out2d.reshape(-1)[:m].reshape(orig_shape)
    if orig_dtype != jnp.float32:
        out = out.astype(orig_dtype)
    return out


def _reference(x, params):
    # Plain-JAX mirror of the PyTorch forward (exact f32 contractions).
    e = jnp.stack([jnp.cos(x), jnp.sin(x)], axis=-1)                  # (..., 2)
    h = jnp.tanh(jnp.einsum("...i,hi->...h", e, params["w1"],
                            precision=jax.lax.Precision.HIGHEST) + params["b1"])
    y = jnp.einsum("...h,oh->...o", h, params["w2"],
                   precision=jax.lax.Precision.HIGHEST) + params["b2"]
    return y[..., 0]                                                  # squeeze(-1)


def make_params(key, hidden_dim=64):
    # Deterministic init mimicking nn.Linear defaults (uniform +/- 1/sqrt(fan_in)).
    k1, k2, k3, k4 = jax.random.split(key, 4)
    lim1 = 1.0 / jnp.sqrt(2.0)
    lim2 = 1.0 / jnp.sqrt(float(hidden_dim))
    return {
        "w1": jax.random.uniform(k1, (hidden_dim, 2), jnp.float32, -lim1, lim1),
        "b1": jax.random.uniform(k2, (hidden_dim,), jnp.float32, -lim1, lim1),
        "w2": jax.random.uniform(k3, (1, hidden_dim), jnp.float32, -lim2, lim2),
        "b2": jax.random.uniform(k4, (1,), jnp.float32, -lim2, lim2),
    }


if __name__ == "__main__":
    HIDDEN = 64
    key = jax.random.PRNGKey(0)
    kp, kx = jax.random.split(key)
    params = make_params(kp, HIDDEN)

    # 2-D batch of angles: 16x256 = 4096 points -> aligned path, grid of 2.
    x = jax.random.uniform(kx, (16, 256), jnp.float32, -6.0, 6.0)
    out = jax.block_until_ready(circle_nn_forward(x, params))
    ref = _reference(x, params)
    assert out.shape == x.shape
    assert jnp.allclose(out, ref, atol=1e-3, rtol=1e-3), "mismatch vs JAX reference"

    # 1-D ragged input: exercises flatten + zero-pad + restore path.
    x1 = jax.random.uniform(jax.random.PRNGKey(1), (37,), jnp.float32, -6.0, 6.0)
    out1 = jax.block_until_ready(circle_nn_forward(x1, params))
    assert out1.shape == (37,)
    assert jnp.allclose(out1, _reference(x1, params), atol=1e-3, rtol=1e-3)

    # Larger aligned input: exercises multi-chunk strip-mine + big tiles.
    x2 = jax.random.uniform(jax.random.PRNGKey(2), (64, 512), jnp.float32, -6.0, 6.0)
    out2 = jax.block_until_ready(circle_nn_forward(x2, params))
    assert out2.shape == x2.shape
    assert jnp.allclose(out2, _reference(x2, params), atol=1e-3, rtol=1e-3)

    print("KERNEL_OK")
</pallas_src>

<mosaic_0001>
module attributes {stable_mosaic.version = 11 : i64} {
  func.func @circle_nn_kernel(%arg0: i32, %arg1: memref<8x256xf32, #tpu.memory_space<vmem>>, %arg2: memref<64xf32, #tpu.memory_space<smem>>, %arg3: memref<64xf32, #tpu.memory_space<smem>>, %arg4: memref<64xf32, #tpu.memory_space<smem>>, %arg5: memref<64xf32, #tpu.memory_space<smem>>, %arg6: memref<1xf32, #tpu.memory_space<smem>>, %arg7: memref<8x256xf32, #tpu.memory_space<vmem>>) attributes {dimension_semantics = [#tpu.dimension_semantics<parallel>], iteration_bounds = array<i64: 2>, scalar_prefetch = 0 : i64, scratch_operands = 0 : i64, tpu.core_type = #tpu.core_type<tc>, window_params = [{transform_indices = @transform_0, window_bounds = array<i64: 8, 256>}, {transform_indices = @transform_1, window_bounds = array<i64: 64>}, {transform_indices = @transform_2, window_bounds = array<i64: 64>}, {transform_indices = @transform_3, window_bounds = array<i64: 64>}, {transform_indices = @transform_4, window_bounds = array<i64: 64>}, {transform_indices = @transform_5, window_bounds = array<i64: 1>}, {transform_indices = @transform_6, window_bounds = array<i64: 8, 256>}]} {
    %c0 = arith.constant 0 : index
    %0 = memref.load %arg6[%c0] : memref<1xf32, #tpu.memory_space<smem>>
    %c0_i32 = arith.constant 0 : i32
    %c1_i32 = arith.constant 1 : i32
    %1 = arith.muli %c0_i32, %c1_i32 : i32
    %c0_i32_0 = arith.constant 0 : i32
    %2 = arith.addi %c0_i32_0, %1 : i32
    %c8_i32 = arith.constant 8 : i32
    %3 = arith.muli %2, %c8_i32 : i32
    %4 = tpu.assume_multiple %3, 8 : i32
    %5 = arith.index_cast %4 : i32 to index
    %c0_1 = arith.constant 0 : index
    %6 = vector.load %arg1[%5, %c0_1] : memref<8x256xf32, #tpu.memory_space<vmem>>, vector<8x256xf32>
    %7 = math.cos %6 : vector<8x256xf32>
    %8 = math.sin %6 : vector<8x256xf32>
    %cst = arith.constant 0.000000e+00 : f32
    %9 = vector.broadcast %cst : f32 to vector<8x256xf32>
    %cst_2 = arith.constant 0.000000e+00 : f32
    %10 = vector.broadcast %cst_2 : f32 to vector<8x256xf32>
    %cst_3 = arith.constant 0.000000e+00 : f32
    %11 = vector.broadcast %cst_3 : f32 to vector<8x256xf32>
    %cst_4 = arith.constant 0.000000e+00 : f32
    %12 = vector.broadcast %cst_4 : f32 to vector<8x256xf32>
    %c0_5 = arith.constant 0 : index
    %13 = memref.load %arg2[%c0_5] : memref<64xf32, #tpu.memory_space<smem>>
    %14 = vector.broadcast %13 : f32 to vector<8x256xf32>
    %15 = arith.mulf %14, %7 : vector<8x256xf32>
    %c0_6 = arith.constant 0 : index
    %16 = memref.load %arg3[%c0_6] : memref<64xf32, #tpu.memory_space<smem>>
    %17 = vector.broadcast %16 : f32 to vector<8x256xf32>
    %18 = arith.mulf %17, %8 : vector<8x256xf32>
    %19 = arith.addf %15, %18 : vector<8x256xf32>
    %c0_7 = arith.constant 0 : index
    %20 = memref.load %arg4[%c0_7] : memref<64xf32, #tpu.memory_space<smem>>
    %21 = vector.broadcast %20 : f32 to vector<8x256xf32>
    %22 = arith.addf %19, %21 : vector<8x256xf32>
    %23 = math.tanh %22 : vector<8x256xf32>
    %c0_8 = arith.constant 0 : index
    %24 = memref.load %arg5[%c0_8] : memref<64xf32, #tpu.memory_space<smem>>
    %25 = vector.broadcast %24 : f32 to vector<8x256xf32>
    %26 = arith.mulf %25, %23 : vector<8x256xf32>
    %27 = arith.addf %9, %26 : vector<8x256xf32>
    %c1 = arith.constant 1 : index
    %28 = memref.load %arg2[%c1] : memref<64xf32, #tpu.memory_space<smem>>
    %29 = vector.broadcast %28 : f32 to vector<8x256xf32>
    %30 = arith.mulf %29, %7 : vector<8x256xf32>
    %c1_9 = arith.constant 1 : index
    %31 = memref.load %arg3[%c1_9] : memref<64xf32, #tpu.memory_space<smem>>
    %32 = vector.broadcast %31 : f32 to vector<8x256xf32>
    %33 = arith.mulf %32, %8 : vector<8x256xf32>
    %34 = arith.addf %30, %33 : vector<8x256xf32>
    %c1_10 = arith.constant 1 : index
    %35 = memref.load %arg4[%c1_10] : memref<64xf32, #tpu.memory_space<smem>>
    %36 = vector.broadcast %35 : f32 to vector<8x256xf32>
    %37 = arith.addf %34, %36 : vector<8x256xf32>
    %38 = math.tanh %37 : vector<8x256xf32>
    %c1_11 = arith.constant 1 : index
    %39 = memref.load %arg5[%c1_11] : memref<64xf32, #tpu.memory_space<smem>>
    %40 = vector.broadcast %39 : f32 to vector<8x256xf32>
    %41 = arith.mulf %40, %38 : vector<8x256xf32>
    %42 = arith.addf %10, %41 : vector<8x256xf32>
    %c2 = arith.constant 2 : index
    %43 = memref.load %arg2[%c2] : memref<64xf32, #tpu.memory_space<smem>>
    %44 = vector.broadcast %43 : f32 to vector<8x256xf32>
    %45 = arith.mulf %44, %7 : vector<8x256xf32>
    %c2_12 = arith.constant 2 : index
    %46 = memref.load %arg3[%c2_12] : memref<64xf32, #tpu.memory_space<smem>>
    %47 = vector.broadcast %46 : f32 to vector<8x256xf32>
    %48 = arith.mulf %47, %8 : vector<8x256xf32>
    %49 = arith.addf %45, %48 : vector<8x256xf32>
    %c2_13 = arith.constant 2 : index
    %50 = memref.load %arg4[%c2_13] : memref<64xf32, #tpu.memory_space<smem>>
    %51 = vector.broadcast %50 : f32 to vector<8x256xf32>
    %52 = arith.addf %49, %51 : vector<8x256xf32>
    %53 = math.tanh %52 : vector<8x256xf32>
    %c2_14 = arith.constant 2 : index
    %54 = memref.load %arg5[%c2_14] : memref<64xf32, #tpu.memory_space<smem>>
    %55 = vector.broadcast %54 : f32 to vector<8x256xf32>
    %56 = arith.mulf %55, %53 : vector<8x256xf32>
    %57 = arith.addf %11, %56 : vector<8x256xf32>
    %c3 = arith.constant 3 : index
    %58 = memref.load %arg2[%c3] : memref<64xf32, #tpu.memory_space<smem>>
    %59 = vector.broadcast %58 : f32 to vector<8x256xf32>
    %60 = arith.mulf %59, %7 : vector<8x256xf32>
    %c3_15 = arith.constant 3 : index
    %61 = memref.load %arg3[%c3_15] : memref<64xf32, #tpu.memory_space<smem>>
    %62 = vector.broadcast %61 : f32 to vector<8x256xf32>
    %63 = arith.mulf %62, %8 : vector<8x256xf32>
    %64 = arith.addf %60, %63 : vector<8x256xf32>
    %c3_16 = arith.constant 3 : index
    %65 = memref.load %arg4[%c3_16] : memref<64xf32, #tpu.memory_space<smem>>
    %66 = vector.broadcast %65 : f32 to vector<8x256xf32>
    %67 = arith.addf %64, %66 : vector<8x256xf32>
    %68 = math.tanh %67 : vector<8x256xf32>
    %c3_17 = arith.constant 3 : index
    %69 = memref.load %arg5[%c3_17] : memref<64xf32, #tpu.memory_space<smem>>
    %70 = vector.broadcast %69 : f32 to vector<8x256xf32>
    %71 = arith.mulf %70, %68 : vector<8x256xf32>
    %72 = arith.addf %12, %71 : vector<8x256xf32>
    %c4 = arith.constant 4 : index
    %73 = memref.load %arg2[%c4] : memref<64xf32, #tpu.memory_space<smem>>
    %74 = vector.broadcast %73 : f32 to vector<8x256xf32>
    %75 = arith.mulf %74, %7 : vector<8x256xf32>
    %c4_18 = arith.constant 4 : index
    %76 = memref.load %arg3[%c4_18] : memref<64xf32, #tpu.memory_space<smem>>
    %77 = vector.broadcast %76 : f32 to vector<8x256xf32>
    %78 = arith.mulf %77, %8 : vector<8x256xf32>
    %79 = arith.addf %75, %78 : vector<8x256xf32>
    %c4_19 = arith.constant 4 : index
    %80 = memref.load %arg4[%c4_19] : memref<64xf32, #tpu.memory_space<smem>>
    %81 = vector.broadcast %80 : f32 to vector<8x256xf32>
    %82 = arith.addf %79, %81 : vector<8x256xf32>
    %83 = math.tanh %82 : vector<8x256xf32>
    %c4_20 = arith.constant 4 : index
    %84 = memref.load %arg5[%c4_20] : memref<64xf32, #tpu.memory_space<smem>>
    %85 = vector.broadcast %84 : f32 to vector<8x256xf32>
    %86 = arith.mulf %85, %83 : vector<8x256xf32>
    %87 = arith.addf %27, %86 : vector<8x256xf32>
    %c5 = arith.constant 5 : index
    %88 = memref.load %arg2[%c5] : memref<64xf32, #tpu.memory_space<smem>>
    %89 = vector.broadcast %88 : f32 to vector<8x256xf32>
    %90 = arith.mulf %89, %7 : vector<8x256xf32>
    %c5_21 = arith.constant 5 : index
    %91 = memref.load %arg3[%c5_21] : memref<64xf32, #tpu.memory_space<smem>>
    %92 = vector.broadcast %91 : f32 to vector<8x256xf32>
    %93 = arith.mulf %92, %8 : vector<8x256xf32>
    %94 = arith.addf %90, %93 : vector<8x256xf32>
    %c5_22 = arith.constant 5 : index
    %95 = memref.load %arg4[%c5_22] : memref<64xf32, #tpu.memory_space<smem>>
    %96 = vector.broadcast %95 : f32 to vector<8x256xf32>
    %97 = arith.addf %94, %96 : vector<8x256xf32>
    %98 = math.tanh %97 : vector<8x256xf32>
    %c5_23 = arith.constant 5 : index
    %99 = memref.load %arg5[%c5_23] : memref<64xf32, #tpu.memory_space<smem>>
    %100 = vector.broadcast %99 : f32 to vector<8x256xf32>
    %101 = arith.mulf %100, %98 : vector<8x256xf32>
    %102 = arith.addf %42, %101 : vector<8x256xf32>
    %c6 = arith.constant 6 : index
    %103 = memref.load %arg2[%c6] : memref<64xf32, #tpu.memory_space<smem>>
    %104 = vector.broadcast %103 : f32 to vector<8x256xf32>
    %105 = arith.mulf %104, %7 : vector<8x256xf32>
    %c6_24 = arith.constant 6 : index
    %106 = memref.load %arg3[%c6_24] : memref<64xf32, #tpu.memory_space<smem>>
    %107 = vector.broadcast %106 : f32 to vector<8x256xf32>
    %108 = arith.mulf %107, %8 : vector<8x256xf32>
    %109 = arith.addf %105, %108 : vector<8x256xf32>
    %c6_25 = arith.constant 6 : index
    %110 = memref.load %arg4[%c6_25] : memref<64xf32, #tpu.memory_space<smem>>
    %111 = vector.broadcast %110 : f32 to vector<8x256xf32>
    %112 = arith.addf %109, %111 : vector<8x256xf32>
    %113 = math.tanh %112 : vector<8x256xf32>
    %c6_26 = arith.constant 6 : index
    %114 = memref.load %arg5[%c6_26] : memref<64xf32, #tpu.memory_space<smem>>
    %115 = vector.broadcast %114 : f32 to vector<8x256xf32>
    %116 = arith.mulf %115, %113 : vector<8x256xf32>
    %117 = arith.addf %57, %116 : vector<8x256xf32>
    %c7 = arith.constant 7 : index
    %118 = memref.load %arg2[%c7] : memref<64xf32, #tpu.memory_space<smem>>
    %119 = vector.broadcast %118 : f32 to vector<8x256xf32>
    %120 = arith.mulf %119, %7 : vector<8x256xf32>
    %c7_27 = arith.constant 7 : index
    %121 = memref.load %arg3[%c7_27] : memref<64xf32, #tpu.memory_space<smem>>
    %122 = vector.broadcast %121 : f32 to vector<8x256xf32>
    %123 = arith.mulf %122, %8 : vector<8x256xf32>
    %124 = arith.addf %120, %123 : vector<8x256xf32>
    %c7_28 = arith.constant 7 : index
    %125 = memref.load %arg4[%c7_28] : memref<64xf32, #tpu.memory_space<smem>>
    %126 = vector.broadcast %125 : f32 to vector<8x256xf32>
    %127 = arith.addf %124, %126 : vector<8x256xf32>
    %128 = math.tanh %127 : vector<8x256xf32>
    %c7_29 = arith.constant 7 : index
    %129 = memref.load %arg5[%c7_29] : memref<64xf32, #tpu.memory_space<smem>>
    %130 = vector.broadcast %129 : f32 to vector<8x256xf32>
    %131 = arith.mulf %130, %128 : vector<8x256xf32>
    %132 = arith.addf %72, %131 : vector<8x256xf32>
    %c8 = arith.constant 8 : index
    %133 = memref.load %arg2[%c8] : memref<64xf32, #tpu.memory_space<smem>>
    %134 = vector.broadcast %133 : f32 to vector<8x256xf32>
    %135 = arith.mulf %134, %7 : vector<8x256xf32>
    %c8_30 = arith.constant 8 : index
    %136 = memref.load %arg3[%c8_30] : memref<64xf32, #tpu.memory_space<smem>>
    %137 = vector.broadcast %136 : f32 to vector<8x256xf32>
    %138 = arith.mulf %137, %8 : vector<8x256xf32>
    %139 = arith.addf %135, %138 : vector<8x256xf32>
    %c8_31 = arith.constant 8 : index
    %140 = memref.load %arg4[%c8_31] : memref<64xf32, #tpu.memory_space<smem>>
    %141 = vector.broadcast %140 : f32 to vector<8x256xf32>
    %142 = arith.addf %139, %141 : vector<8x256xf32>
    %143 = math.tanh %142 : vector<8x256xf32>
    %c8_32 = arith.constant 8 : index
    %144 = memref.load %arg5[%c8_32] : memref<64xf32, #tpu.memory_space<smem>>
    %145 = vector.broadcast %144 : f32 to vector<8x256xf32>
    %146 = arith.mulf %145, %143 : vector<8x256xf32>
    %147 = arith.addf %87, %146 : vector<8x256xf32>
    %c9 = arith.constant 9 : index
    %148 = memref.load %arg2[%c9] : memref<64xf32, #tpu.memory_space<smem>>
    %149 = vector.broadcast %148 : f32 to vector<8x256xf32>
    %150 = arith.mulf %149, %7 : vector<8x256xf32>
    %c9_33 = arith.constant 9 : index
    %151 = memref.load %arg3[%c9_33] : memref<64xf32, #tpu.memory_space<smem>>
    %152 = vector.broadcast %151 : f32 to vector<8x256xf32>
    %153 = arith.mulf %152, %8 : vector<8x256xf32>
    %154 = arith.addf %150, %153 : vector<8x256xf32>
    %c9_34 = arith.constant 9 : index
    %155 = memref.load %arg4[%c9_34] : memref<64xf32, #tpu.memory_space<smem>>
    %156 = vector.broadcast %155 : f32 to vector<8x256xf32>
    %157 = arith.addf %154, %156 : vector<8x256xf32>
    %158 = math.tanh %157 : vector<8x256xf32>
    %c9_35 = arith.constant 9 : index
    %159 = memref.load %arg5[%c9_35] : memref<64xf32, #tpu.memory_space<smem>>
    %160 = vector.broadcast %159 : f32 to vector<8x256xf32>
    %161 = arith.mulf %160, %158 : vector<8x256xf32>
    %162 = arith.addf %102, %161 : vector<8x256xf32>
    %c10 = arith.constant 10 : index
    %163 = memref.load %arg2[%c10] : memref<64xf32, #tpu.memory_space<smem>>
    %164 = vector.broadcast %163 : f32 to vector<8x256xf32>
    %165 = arith.mulf %164, %7 : vector<8x256xf32>
    %c10_36 = arith.constant 10 : index
    %166 = memref.load %arg3[%c10_36] : memref<64xf32, #tpu.memory_space<smem>>
    %167 = vector.broadcast %166 : f32 to vector<8x256xf32>
    %168 = arith.mulf %167, %8 : vector<8x256xf32>
    %169 = arith.addf %165, %168 : vector<8x256xf32>
    %c10_37 = arith.constant 10 : index
    %170 = memref.load %arg4[%c10_37] : memref<64xf32, #tpu.memory_space<smem>>
    %171 = vector.broadcast %170 : f32 to vector<8x256xf32>
    %172 = arith.addf %169, %171 : vector<8x256xf32>
    %173 = math.tanh %172 : vector<8x256xf32>
    %c10_38 = arith.constant 10 : index
    %174 = memref.load %arg5[%c10_38] : memref<64xf32, #tpu.memory_space<smem>>
    %175 = vector.broadcast %174 : f32 to vector<8x256xf32>
    %176 = arith.mulf %175, %173 : vector<8x256xf32>
    %177 = arith.addf %117, %176 : vector<8x256xf32>
    %c11 = arith.constant 11 : index
    %178 = memref.load %arg2[%c11] : memref<64xf32, #tpu.memory_space<smem>>
    %179 = vector.broadcast %178 : f32 to vector<8x256xf32>
    %180 = arith.mulf %179, %7 : vector<8x256xf32>
    %c11_39 = arith.constant 11 : index
    %181 = memref.load %arg3[%c11_39] : memref<64xf32, #tpu.memory_space<smem>>
    %182 = vector.broadcast %181 : f32 to vector<8x256xf32>
    %183 = arith.mulf %182, %8 : vector<8x256xf32>
    %184 = arith.addf %180, %183 : vector<8x256xf32>
    %c11_40 = arith.constant 11 : index
    %185 = memref.load %arg4[%c11_40] : memref<64xf32, #tpu.memory_space<smem>>
    %186 = vector.broadcast %185 : f32 to vector<8x256xf32>
    %187 = arith.addf %184, %186 : vector<8x256xf32>
    %188 = math.tanh %187 : vector<8x256xf32>
    %c11_41 = arith.constant 11 : index
    %189 = memref.load %arg5[%c11_41] : memref<64xf32, #tpu.memory_space<smem>>
    %190 = vector.broadcast %189 : f32 to vector<8x256xf32>
    %191 = arith.mulf %190, %188 : vector<8x256xf32>
    %192 = arith.addf %132, %191 : vector<8x256xf32>
    %c12 = arith.constant 12 : index
    %193 = memref.load %arg2[%c12] : memref<64xf32, #tpu.memory_space<smem>>
    %194 = vector.broadcast %193 : f32 to vector<8x256xf32>
    %195 = arith.mulf %194, %7 : vector<8x256xf32>
    %c12_42 = arith.constant 12 : index
    %196 = memref.load %arg3[%c12_42] : memref<64xf32, #tpu.memory_space<smem>>
    %197 = vector.broadcast %196 : f32 to vector<8x256xf32>
    %198 = arith.mulf %197, %8 : vector<8x256xf32>
    %199 = arith.addf %195, %198 : vector<8x256xf32>
    %c12_43 = arith.constant 12 : index
    %200 = memref.load %arg4[%c12_43] : memref<64xf32, #tpu.memory_space<smem>>
    %201 = vector.broadcast %200 : f32 to vector<8x256xf32>
    %202 = arith.addf %199, %201 : vector<8x256xf32>
    %203 = math.tanh %202 : vector<8x256xf32>
    %c12_44 = arith.constant 12 : index
    %204 = memref.load %arg5[%c12_44] : memref<64xf32, #tpu.memory_space<smem>>
    %205 = vector.broadcast %204 : f32 to vector<8x256xf32>
    %206 = arith.mulf %205, %203 : vector<8x256xf32>
    %207 = arith.addf %147, %206 : vector<8x256xf32>
    %c13 = arith.constant 13 : index
    %208 = memref.load %arg2[%c13] : memref<64xf32, #tpu.memory_space<smem>>
    %209 = vector.broadcast %208 : f32 to vector<8x256xf32>
    %210 = arith.mulf %209, %7 : vector<8x256xf32>
    %c13_45 = arith.constant 13 : index
    %211 = memref.load %arg3[%c13_45] : memref<64xf32, #tpu.memory_space<smem>>
    %212 = vector.broadcast %211 : f32 to vector<8x256xf32>
    %213 = arith.mulf %212, %8 : vector<8x256xf32>
    %214 = arith.addf %210, %213 : vector<8x256xf32>
    %c13_46 = arith.constant 13 : index
    %215 = memref.load %arg4[%c13_46] : memref<64xf32, #tpu.memory_space<smem>>
    %216 = vector.broadcast %215 : f32 to vector<8x256xf32>
    %217 = arith.addf %214, %216 : vector<8x256xf32>
    %218 = math.tanh %217 : vector<8x256xf32>
    %c13_47 = arith.constant 13 : index
    %219 = memref.load %arg5[%c13_47] : memref<64xf32, #tpu.memory_space<smem>>
    %220 = vector.broadcast %219 : f32 to vector<8x256xf32>
    %221 = arith.mulf %220, %218 : vector<8x256xf32>
    %222 = arith.addf %162, %221 : vector<8x256xf32>
    %c14 = arith.constant 14 : index
    %223 = memref.load %arg2[%c14] : memref<64xf32, #tpu.memory_space<smem>>
    %224 = vector.broadcast %223 : f32 to vector<8x256xf32>
    %225 = arith.mulf %224, %7 : vector<8x256xf32>
    %c14_48 = arith.constant 14 : index
    %226 = memref.load %arg3[%c14_48] : memref<64xf32, #tpu.memory_space<smem>>
    %227 = vector.broadcast %226 : f32 to vector<8x256xf32>
    %228 = arith.mulf %227, %8 : vector<8x256xf32>
    %229 = arith.addf %225, %228 : vector<8x256xf32>
    %c14_49 = arith.constant 14 : index
    %230 = memref.load %arg4[%c14_49] : memref<64xf32, #tpu.memory_space<smem>>
    %231 = vector.broadcast %230 : f32 to vector<8x256xf32>
    %232 = arith.addf %229, %231 : vector<8x256xf32>
    %233 = math.tanh %232 : vector<8x256xf32>
    %c14_50 = arith.constant 14 : index
    %234 = memref.load %arg5[%c14_50] : memref<64xf32, #tpu.memory_space<smem>>
    %235 = vector.broadcast %234 : f32 to vector<8x256xf32>
    %236 = arith.mulf %235, %233 : vector<8x256xf32>
    %237 = arith.addf %177, %236 : vector<8x256xf32>
    %c15 = arith.constant 15 : index
    %238 = memref.load %arg2[%c15] : memref<64xf32, #tpu.memory_space<smem>>
    %239 = vector.broadcast %238 : f32 to vector<8x256xf32>
    %240 = arith.mulf %239, %7 : vector<8x256xf32>
    %c15_51 = arith.constant 15 : index
    %241 = memref.load %arg3[%c15_51] : memref<64xf32, #tpu.memory_space<smem>>
    %242 = vector.broadcast %241 : f32 to vector<8x256xf32>
    %243 = arith.mulf %242, %8 : vector<8x256xf32>
    %244 = arith.addf %240, %243 : vector<8x256xf32>
    %c15_52 = arith.constant 15 : index
    %245 = memref.load %arg4[%c15_52] : memref<64xf32, #tpu.memory_space<smem>>
    %246 = vector.broadcast %245 : f32 to vector<8x256xf32>
    %247 = arith.addf %244, %246 : vector<8x256xf32>
    %248 = math.tanh %247 : vector<8x256xf32>
    %c15_53 = arith.constant 15 : index
    %249 = memref.load %arg5[%c15_53] : memref<64xf32, #tpu.memory_space<smem>>
    %250 = vector.broadcast %249 : f32 to vector<8x256xf32>
    %251 = arith.mulf %250, %248 : vector<8x256xf32>
    %252 = arith.addf %192, %251 : vector<8x256xf32>
    %c16 = arith.constant 16 : index
    %253 = memref.load %arg2[%c16] : memref<64xf32, #tpu.memory_space<smem>>
    %254 = vector.broadcast %253 : f32 to vector<8x256xf32>
    %255 = arith.mulf %254, %7 : vector<8x256xf32>
    %c16_54 = arith.constant 16 : index
    %256 = memref.load %arg3[%c16_54] : memref<64xf32, #tpu.memory_space<smem>>
    %257 = vector.broadcast %256 : f32 to vector<8x256xf32>
    %258 = arith.mulf %257, %8 : vector<8x256xf32>
    %259 = arith.addf %255, %258 : vector<8x256xf32>
    %c16_55 = arith.constant 16 : index
    %260 = memref.load %arg4[%c16_55] : memref<64xf32, #tpu.memory_space<smem>>
    %261 = vector.broadcast %260 : f32 to vector<8x256xf32>
    %262 = arith.addf %259, %261 : vector<8x256xf32>
    %263 = math.tanh %262 : vector<8x256xf32>
    %c16_56 = arith.constant 16 : index
    %264 = memref.load %arg5[%c16_56] : memref<64xf32, #tpu.memory_space<smem>>
    %265 = vector.broadcast %264 : f32 to vector<8x256xf32>
    %266 = arith.mulf %265, %263 : vector<8x256xf32>
    %267 = arith.addf %207, %266 : vector<8x256xf32>
    %c17 = arith.constant 17 : index
    %268 = memref.load %arg2[%c17] : memref<64xf32, #tpu.memory_space<smem>>
    %269 = vector.broadcast %268 : f32 to vector<8x256xf32>
    %270 = arith.mulf %269, %7 : vector<8x256xf32>
    %c17_57 = arith.constant 17 : index
    %271 = memref.load %arg3[%c17_57] : memref<64xf32, #tpu.memory_space<smem>>
    %272 = vector.broadcast %271 : f32 to vector<8x256xf32>
    %273 = arith.mulf %272, %8 : vector<8x256xf32>
    %274 = arith.addf %270, %273 : vector<8x256xf32>
    %c17_58 = arith.constant 17 : index
    %275 = memref.load %arg4[%c17_58] : memref<64xf32, #tpu.memory_space<smem>>
    %276 = vector.broadcast %275 : f32 to vector<8x256xf32>
    %277 = arith.addf %274, %276 : vector<8x256xf32>
    %278 = math.tanh %277 : vector<8x256xf32>
    %c17_59 = arith.constant 17 : index
    %279 = memref.load %arg5[%c17_59] : memref<64xf32, #tpu.memory_space<smem>>
    %280 = vector.broadcast %279 : f32 to vector<8x256xf32>
    %281 = arith.mulf %280, %278 : vector<8x256xf32>
    %282 = arith.addf %222, %281 : vector<8x256xf32>
    %c18 = arith.constant 18 : index
    %283 = memref.load %arg2[%c18] : memref<64xf32, #tpu.memory_space<smem>>
    %284 = vector.broadcast %283 : f32 to vector<8x256xf32>
    %285 = arith.mulf %284, %7 : vector<8x256xf32>
    %c18_60 = arith.constant 18 : index
    %286 = memref.load %arg3[%c18_60] : memref<64xf32, #tpu.memory_space<smem>>
    %287 = vector.broadcast %286 : f32 to vector<8x256xf32>
    %288 = arith.mulf %287, %8 : vector<8x256xf32>
    %289 = arith.addf %285, %288 : vector<8x256xf32>
    %c18_61 = arith.constant 18 : index
    %290 = memref.load %arg4[%c18_61] : memref<64xf32, #tpu.memory_space<smem>>
    %291 = vector.broadcast %290 : f32 to vector<8x256xf32>
    %292 = arith.addf %289, %291 : vector<8x256xf32>
    %293 = math.tanh %292 : vector<8x256xf32>
    %c18_62 = arith.constant 18 : index
    %294 = memref.load %arg5[%c18_62] : memref<64xf32, #tpu.memory_space<smem>>
    %295 = vector.broadcast %294 : f32 to vector<8x256xf32>
    %296 = arith.mulf %295, %293 : vector<8x256xf32>
    %297 = arith.addf %237, %296 : vector<8x256xf32>
    %c19 = arith.constant 19 : index
    %298 = memref.load %arg2[%c19] : memref<64xf32, #tpu.memory_space<smem>>
    %299 = vector.broadcast %298 : f32 to vector<8x256xf32>
    %300 = arith.mulf %299, %7 : vector<8x256xf32>
    %c19_63 = arith.constant 19 : index
    %301 = memref.load %arg3[%c19_63] : memref<64xf32, #tpu.memory_space<smem>>
    %302 = vector.broadcast %301 : f32 to vector<8x256xf32>
    %303 = arith.mulf %302, %8 : vector<8x256xf32>
    %304 = arith.addf %300, %303 : vector<8x256xf32>
    %c19_64 = arith.constant 19 : index
    %305 = memref.load %arg4[%c19_64] : memref<64xf32, #tpu.memory_space<smem>>
    %306 = vector.broadcast %305 : f32 to vector<8x256xf32>
    %307 = arith.addf %304, %306 : vector<8x256xf32>
    %308 = math.tanh %307 : vector<8x256xf32>
    %c19_65 = arith.constant 19 : index
    %309 = memref.load %arg5[%c19_65] : memref<64xf32, #tpu.memory_space<smem>>
    %310 = vector.broadcast %309 : f32 to vector<8x256xf32>
    %311 = arith.mulf %310, %308 : vector<8x256xf32>
    %312 = arith.addf %252, %311 : vector<8x256xf32>
    %c20 = arith.constant 20 : index
    %313 = memref.load %arg2[%c20] : memref<64xf32, #tpu.memory_space<smem>>
    %314 = vector.broadcast %313 : f32 to vector<8x256xf32>
    %315 = arith.mulf %314, %7 : vector<8x256xf32>
    %c20_66 = arith.constant 20 : index
    %316 = memref.load %arg3[%c20_66] : memref<64xf32, #tpu.memory_space<smem>>
    %317 = vector.broadcast %316 : f32 to vector<8x256xf32>
    %318 = arith.mulf %317, %8 : vector<8x256xf32>
    %319 = arith.addf %315, %318 : vector<8x256xf32>
    %c20_67 = arith.constant 20 : index
    %320 = memref.load %arg4[%c20_67] : memref<64xf32, #tpu.memory_space<smem>>
    %321 = vector.broadcast %320 : f32 to vector<8x256xf32>
    %322 = arith.addf %319, %321 : vector<8x256xf32>
    %323 = math.tanh %322 : vector<8x256xf32>
    %c20_68 = arith.constant 20 : index
    %324 = memref.load %arg5[%c20_68] : memref<64xf32, #tpu.memory_space<smem>>
    %325 = vector.broadcast %324 : f32 to vector<8x256xf32>
    %326 = arith.mulf %325, %323 : vector<8x256xf32>
    %327 = arith.addf %267, %326 : vector<8x256xf32>
    %c21 = arith.constant 21 : index
    %328 = memref.load %arg2[%c21] : memref<64xf32, #tpu.memory_space<smem>>
    %329 = vector.broadcast %328 : f32 to vector<8x256xf32>
    %330 = arith.mulf %329, %7 : vector<8x256xf32>
    %c21_69 = arith.constant 21 : index
    %331 = memref.load %arg3[%c21_69] : memref<64xf32, #tpu.memory_space<smem>>
    %332 = vector.broadcast %331 : f32 to vector<8x256xf32>
    %333 = arith.mulf %332, %8 : vector<8x256xf32>
    %334 = arith.addf %330, %333 : vector<8x256xf32>
    %c21_70 = arith.constant 21 : index
    %335 = memref.load %arg4[%c21_70] : memref<64xf32, #tpu.memory_space<smem>>
    %336 = vector.broadcast %335 : f32 to vector<8x256xf32>
    %337 = arith.addf %334, %336 : vector<8x256xf32>
    %338 = math.tanh %337 : vector<8x256xf32>
    %c21_71 = arith.constant 21 : index
    %339 = memref.load %arg5[%c21_71] : memref<64xf32, #tpu.memory_space<smem>>
    %340 = vector.broadcast %339 : f32 to vector<8x256xf32>
    %341 = arith.mulf %340, %338 : vector<8x256xf32>
    %342 = arith.addf %282, %341 : vector<8x256xf32>
    %c22 = arith.constant 22 : index
    %343 = memref.load %arg2[%c22] : memref<64xf32, #tpu.memory_space<smem>>
    %344 = vector.broadcast %343 : f32 to vector<8x256xf32>
    %345 = arith.mulf %344, %7 : vector<8x256xf32>
    %c22_72 = arith.constant 22 : index
    %346 = memref.load %arg3[%c22_72] : memref<64xf32, #tpu.memory_space<smem>>
    %347 = vector.broadcast %346 : f32 to vector<8x256xf32>
    %348 = arith.mulf %347, %8 : vector<8x256xf32>
    %349 = arith.addf %345, %348 : vector<8x256xf32>
    %c22_73 = arith.constant 22 : index
    %350 = memref.load %arg4[%c22_73] : memref<64xf32, #tpu.memory_space<smem>>
    %351 = vector.broadcast %350 : f32 to vector<8x256xf32>
    %352 = arith.addf %349, %351 : vector<8x256xf32>
    %353 = math.tanh %352 : vector<8x256xf32>
    %c22_74 = arith.constant 22 : index
    %354 = memref.load %arg5[%c22_74] : memref<64xf32, #tpu.memory_space<smem>>
    %355 = vector.broadcast %354 : f32 to vector<8x256xf32>
    %356 = arith.mulf %355, %353 : vector<8x256xf32>
    %357 = arith.addf %297, %356 : vector<8x256xf32>
    %c23 = arith.constant 23 : index
    %358 = memref.load %arg2[%c23] : memref<64xf32, #tpu.memory_space<smem>>
    %359 = vector.broadcast %358 : f32 to vector<8x256xf32>
    %360 = arith.mulf %359, %7 : vector<8x256xf32>
    %c23_75 = arith.constant 23 : index
    %361 = memref.load %arg3[%c23_75] : memref<64xf32, #tpu.memory_space<smem>>
    %362 = vector.broadcast %361 : f32 to vector<8x256xf32>
    %363 = arith.mulf %362, %8 : vector<8x256xf32>
    %364 = arith.addf %360, %363 : vector<8x256xf32>
    %c23_76 = arith.constant 23 : index
    %365 = memref.load %arg4[%c23_76] : memref<64xf32, #tpu.memory_space<smem>>
    %366 = vector.broadcast %365 : f32 to vector<8x256xf32>
    %367 = arith.addf %364, %366 : vector<8x256xf32>
    %368 = math.tanh %367 : vector<8x256xf32>
    %c23_77 = arith.constant 23 : index
    %369 = memref.load %arg5[%c23_77] : memref<64xf32, #tpu.memory_space<smem>>
    %370 = vector.broadcast %369 : f32 to vector<8x256xf32>
    %371 = arith.mulf %370, %368 : vector<8x256xf32>
    %372 = arith.addf %312, %371 : vector<8x256xf32>
    %c24 = arith.constant 24 : index
    %373 = memref.load %arg2[%c24] : memref<64xf32, #tpu.memory_space<smem>>
    %374 = vector.broadcast %373 : f32 to vector<8x256xf32>
    %375 = arith.mulf %374, %7 : vector<8x256xf32>
    %c24_78 = arith.constant 24 : index
    %376 = memref.load %arg3[%c24_78] : memref<64xf32, #tpu.memory_space<smem>>
    %377 = vector.broadcast %376 : f32 to vector<8x256xf32>
    %378 = arith.mulf %377, %8 : vector<8x256xf32>
    %379 = arith.addf %375, %378 : vector<8x256xf32>
    %c24_79 = arith.constant 24 : index
    %380 = memref.load %arg4[%c24_79] : memref<64xf32, #tpu.memory_space<smem>>
    %381 = vector.broadcast %380 : f32 to vector<8x256xf32>
    %382 = arith.addf %379, %381 : vector<8x256xf32>
    %383 = math.tanh %382 : vector<8x256xf32>
    %c24_80 = arith.constant 24 : index
    %384 = memref.load %arg5[%c24_80] : memref<64xf32, #tpu.memory_space<smem>>
    %385 = vector.broadcast %384 : f32 to vector<8x256xf32>
    %386 = arith.mulf %385, %383 : vector<8x256xf32>
    %387 = arith.addf %327, %386 : vector<8x256xf32>
    %c25 = arith.constant 25 : index
    %388 = memref.load %arg2[%c25] : memref<64xf32, #tpu.memory_space<smem>>
    %389 = vector.broadcast %388 : f32 to vector<8x256xf32>
    %390 = arith.mulf %389, %7 : vector<8x256xf32>
    %c25_81 = arith.constant 25 : index
    %391 = memref.load %arg3[%c25_81] : memref<64xf32, #tpu.memory_space<smem>>
    %392 = vector.broadcast %391 : f32 to vector<8x256xf32>
    %393 = arith.mulf %392, %8 : vector<8x256xf32>
    %394 = arith.addf %390, %393 : vector<8x256xf32>
    %c25_82 = arith.constant 25 : index
    %395 = memref.load %arg4[%c25_82] : memref<64xf32, #tpu.memory_space<smem>>
    %396 = vector.broadcast %395 : f32 to vector<8x256xf32>
    %397 = arith.addf %394, %396 : vector<8x256xf32>
    %398 = math.tanh %397 : vector<8x256xf32>
    %c25_83 = arith.constant 25 : index
    %399 = memref.load %arg5[%c25_83] : memref<64xf32, #tpu.memory_space<smem>>
    %400 = vector.broadcast %399 : f32 to vector<8x256xf32>
    %401 = arith.mulf %400, %398 : vector<8x256xf32>
    %402 = arith.addf %342, %401 : vector<8x256xf32>
    %c26 = arith.constant 26 : index
    %403 = memref.load %arg2[%c26] : memref<64xf32, #tpu.memory_space<smem>>
    %404 = vector.broadcast %403 : f32 to vector<8x256xf32>
    %405 = arith.mulf %404, %7 : vector<8x256xf32>
    %c26_84 = arith.constant 26 : index
    %406 = memref.load %arg3[%c26_84] : memref<64xf32, #tpu.memory_space<smem>>
    %407 = vector.broadcast %406 : f32 to vector<8x256xf32>
    %408 = arith.mulf %407, %8 : vector<8x256xf32>
    %409 = arith.addf %405, %408 : vector<8x256xf32>
    %c26_85 = arith.constant 26 : index
    %410 = memref.load %arg4[%c26_85] : memref<64xf32, #tpu.memory_space<smem>>
    %411 = vector.broadcast %410 : f32 to vector<8x256xf32>
    %412 = arith.addf %409, %411 : vector<8x256xf32>
    %413 = math.tanh %412 : vector<8x256xf32>
    %c26_86 = arith.constant 26 : index
    %414 = memref.load %arg5[%c26_86] : memref<64xf32, #tpu.memory_space<smem>>
    %415 = vector.broadcast %414 : f32 to vector<8x256xf32>
    %416 = arith.mulf %415, %413 : vector<8x256xf32>
    %417 = arith.addf %357, %416 : vector<8x256xf32>
    %c27 = arith.constant 27 : index
    %418 = memref.load %arg2[%c27] : memref<64xf32, #tpu.memory_space<smem>>
    %419 = vector.broadcast %418 : f32 to vector<8x256xf32>
    %420 = arith.mulf %419, %7 : vector<8x256xf32>
    %c27_87 = arith.constant 27 : index
    %421 = memref.load %arg3[%c27_87] : memref<64xf32, #tpu.memory_space<smem>>
    %422 = vector.broadcast %421 : f32 to vector<8x256xf32>
    %423 = arith.mulf %422, %8 : vector<8x256xf32>
    %424 = arith.addf %420, %423 : vector<8x256xf32>
    %c27_88 = arith.constant 27 : index
    %425 = memref.load %arg4[%c27_88] : memref<64xf32, #tpu.memory_space<smem>>
    %426 = vector.broadcast %425 : f32 to vector<8x256xf32>
    %427 = arith.addf %424, %426 : vector<8x256xf32>
    %428 = math.tanh %427 : vector<8x256xf32>
    %c27_89 = arith.constant 27 : index
    %429 = memref.load %arg5[%c27_89] : memref<64xf32, #tpu.memory_space<smem>>
    %430 = vector.broadcast %429 : f32 to vector<8x256xf32>
    %431 = arith.mulf %430, %428 : vector<8x256xf32>
    %432 = arith.addf %372, %431 : vector<8x256xf32>
    %c28 = arith.constant 28 : index
    %433 = memref.load %arg2[%c28] : memref<64xf32, #tpu.memory_space<smem>>
    %434 = vector.broadcast %433 : f32 to vector<8x256xf32>
    %435 = arith.mulf %434, %7 : vector<8x256xf32>
    %c28_90 = arith.constant 28 : index
    %436 = memref.load %arg3[%c28_90] : memref<64xf32, #tpu.memory_space<smem>>
    %437 = vector.broadcast %436 : f32 to vector<8x256xf32>
    %438 = arith.mulf %437, %8 : vector<8x256xf32>
    %439 = arith.addf %435, %438 : vector<8x256xf32>
    %c28_91 = arith.constant 28 : index
    %440 = memref.load %arg4[%c28_91] : memref<64xf32, #tpu.memory_space<smem>>
    %441 = vector.broadcast %440 : f32 to vector<8x256xf32>
    %442 = arith.addf %439, %441 : vector<8x256xf32>
    %443 = math.tanh %442 : vector<8x256xf32>
    %c28_92 = arith.constant 28 : index
    %444 = memref.load %arg5[%c28_92] : memref<64xf32, #tpu.memory_space<smem>>
    %445 = vector.broadcast %444 : f32 to vector<8x256xf32>
    %446 = arith.mulf %445, %443 : vector<8x256xf32>
    %447 = arith.addf %387, %446 : vector<8x256xf32>
    %c29 = arith.constant 29 : index
    %448 = memref.load %arg2[%c29] : memref<64xf32, #tpu.memory_space<smem>>
    %449 = vector.broadcast %448 : f32 to vector<8x256xf32>
    %450 = arith.mulf %449, %7 : vector<8x256xf32>
    %c29_93 = arith.constant 29 : index
    %451 = memref.load %arg3[%c29_93] : memref<64xf32, #tpu.memory_space<smem>>
    %452 = vector.broadcast %451 : f32 to vector<8x256xf32>
    %453 = arith.mulf %452, %8 : vector<8x256xf32>
    %454 = arith.addf %450, %453 : vector<8x256xf32>
    %c29_94 = arith.constant 29 : index
    %455 = memref.load %arg4[%c29_94] : memref<64xf32, #tpu.memory_space<smem>>
    %456 = vector.broadcast %455 : f32 to vector<8x256xf32>
    %457 = arith.addf %454, %456 : vector<8x256xf32>
    %458 = math.tanh %457 : vector<8x256xf32>
    %c29_95 = arith.constant 29 : index
    %459 = memref.load %arg5[%c29_95] : memref<64xf32, #tpu.memory_space<smem>>
    %460 = vector.broadcast %459 : f32 to vector<8x256xf32>
    %461 = arith.mulf %460, %458 : vector<8x256xf32>
    %462 = arith.addf %402, %461 : vector<8x256xf32>
    %c30 = arith.constant 30 : index
    %463 = memref.load %arg2[%c30] : memref<64xf32, #tpu.memory_space<smem>>
    %464 = vector.broadcast %463 : f32 to vector<8x256xf32>
    %465 = arith.mulf %464, %7 : vector<8x256xf32>
    %c30_96 = arith.constant 30 : index
    %466 = memref.load %arg3[%c30_96] : memref<64xf32, #tpu.memory_space<smem>>
    %467 = vector.broadcast %466 : f32 to vector<8x256xf32>
    %468 = arith.mulf %467, %8 : vector<8x256xf32>
    %469 = arith.addf %465, %468 : vector<8x256xf32>
    %c30_97 = arith.constant 30 : index
    %470 = memref.load %arg4[%c30_97] : memref<64xf32, #tpu.memory_space<smem>>
    %471 = vector.broadcast %470 : f32 to vector<8x256xf32>
    %472 = arith.addf %469, %471 : vector<8x256xf32>
    %473 = math.tanh %472 : vector<8x256xf32>
    %c30_98 = arith.constant 30 : index
    %474 = memref.load %arg5[%c30_98] : memref<64xf32, #tpu.memory_space<smem>>
    %475 = vector.broadcast %474 : f32 to vector<8x256xf32>
    %476 = arith.mulf %475, %473 : vector<8x256xf32>
    %477 = arith.addf %417, %476 : vector<8x256xf32>
    %c31 = arith.constant 31 : index
    %478 = memref.load %arg2[%c31] : memref<64xf32, #tpu.memory_space<smem>>
    %479 = vector.broadcast %478 : f32 to vector<8x256xf32>
    %480 = arith.mulf %479, %7 : vector<8x256xf32>
    %c31_99 = arith.constant 31 : index
    %481 = memref.load %arg3[%c31_99] : memref<64xf32, #tpu.memory_space<smem>>
    %482 = vector.broadcast %481 : f32 to vector<8x256xf32>
    %483 = arith.mulf %482, %8 : vector<8x256xf32>
    %484 = arith.addf %480, %483 : vector<8x256xf32>
    %c31_100 = arith.constant 31 : index
    %485 = memref.load %arg4[%c31_100] : memref<64xf32, #tpu.memory_space<smem>>
    %486 = vector.broadcast %485 : f32 to vector<8x256xf32>
    %487 = arith.addf %484, %486 : vector<8x256xf32>
    %488 = math.tanh %487 : vector<8x256xf32>
    %c31_101 = arith.constant 31 : index
    %489 = memref.load %arg5[%c31_101] : memref<64xf32, #tpu.memory_space<smem>>
    %490 = vector.broadcast %489 : f32 to vector<8x256xf32>
    %491 = arith.mulf %490, %488 : vector<8x256xf32>
    %492 = arith.addf %432, %491 : vector<8x256xf32>
    %c32 = arith.constant 32 : index
    %493 = memref.load %arg2[%c32] : memref<64xf32, #tpu.memory_space<smem>>
    %494 = vector.broadcast %493 : f32 to vector<8x256xf32>
    %495 = arith.mulf %494, %7 : vector<8x256xf32>
    %c32_102 = arith.constant 32 : index
    %496 = memref.load %arg3[%c32_102] : memref<64xf32, #tpu.memory_space<smem>>
    %497 = vector.broadcast %496 : f32 to vector<8x256xf32>
    %498 = arith.mulf %497, %8 : vector<8x256xf32>
    %499 = arith.addf %495, %498 : vector<8x256xf32>
    %c32_103 = arith.constant 32 : index
    %500 = memref.load %arg4[%c32_103] : memref<64xf32, #tpu.memory_space<smem>>
    %501 = vector.broadcast %500 : f32 to vector<8x256xf32>
    %502 = arith.addf %499, %501 : vector<8x256xf32>
    %503 = math.tanh %502 : vector<8x256xf32>
    %c32_104 = arith.constant 32 : index
    %504 = memref.load %arg5[%c32_104] : memref<64xf32, #tpu.memory_space<smem>>
    %505 = vector.broadcast %504 : f32 to vector<8x256xf32>
    %506 = arith.mulf %505, %503 : vector<8x256xf32>
    %507 = arith.addf %447, %506 : vector<8x256xf32>
    %c33 = arith.constant 33 : index
    %508 = memref.load %arg2[%c33] : memref<64xf32, #tpu.memory_space<smem>>
    %509 = vector.broadcast %508 : f32 to vector<8x256xf32>
    %510 = arith.mulf %509, %7 : vector<8x256xf32>
    %c33_105 = arith.constant 33 : index
    %511 = memref.load %arg3[%c33_105] : memref<64xf32, #tpu.memory_space<smem>>
    %512 = vector.broadcast %511 : f32 to vector<8x256xf32>
    %513 = arith.mulf %512, %8 : vector<8x256xf32>
    %514 = arith.addf %510, %513 : vector<8x256xf32>
    %c33_106 = arith.constant 33 : index
    %515 = memref.load %arg4[%c33_106] : memref<64xf32, #tpu.memory_space<smem>>
    %516 = vector.broadcast %515 : f32 to vector<8x256xf32>
    %517 = arith.addf %514, %516 : vector<8x256xf32>
    %518 = math.tanh %517 : vector<8x256xf32>
    %c33_107 = arith.constant 33 : index
    %519 = memref.load %arg5[%c33_107] : memref<64xf32, #tpu.memory_space<smem>>
    %520 = vector.broadcast %519 : f32 to vector<8x256xf32>
    %521 = arith.mulf %520, %518 : vector<8x256xf32>
    %522 = arith.addf %462, %521 : vector<8x256xf32>
    %c34 = arith.constant 34 : index
    %523 = memref.load %arg2[%c34] : memref<64xf32, #tpu.memory_space<smem>>
    %524 = vector.broadcast %523 : f32 to vector<8x256xf32>
    %525 = arith.mulf %524, %7 : vector<8x256xf32>
    %c34_108 = arith.constant 34 : index
    %526 = memref.load %arg3[%c34_108] : memref<64xf32, #tpu.memory_space<smem>>
    %527 = vector.broadcast %526 : f32 to vector<8x256xf32>
    %528 = arith.mulf %527, %8 : vector<8x256xf32>
    %529 = arith.addf %525, %528 : vector<8x256xf32>
    %c34_109 = arith.constant 34 : index
    %530 = memref.load %arg4[%c34_109] : memref<64xf32, #tpu.memory_space<smem>>
    %531 = vector.broadcast %530 : f32 to vector<8x256xf32>
    %532 = arith.addf %529, %531 : vector<8x256xf32>
    %533 = math.tanh %532 : vector<8x256xf32>
    %c34_110 = arith.constant 34 : index
    %534 = memref.load %arg5[%c34_110] : memref<64xf32, #tpu.memory_space<smem>>
    %535 = vector.broadcast %534 : f32 to vector<8x256xf32>
    %536 = arith.mulf %535, %533 : vector<8x256xf32>
    %537 = arith.addf %477, %536 : vector<8x256xf32>
    %c35 = arith.constant 35 : index
    %538 = memref.load %arg2[%c35] : memref<64xf32, #tpu.memory_space<smem>>
    %539 = vector.broadcast %538 : f32 to vector<8x256xf32>
    %540 = arith.mulf %539, %7 : vector<8x256xf32>
    %c35_111 = arith.constant 35 : index
    %541 = memref.load %arg3[%c35_111] : memref<64xf32, #tpu.memory_space<smem>>
    %542 = vector.broadcast %541 : f32 to vector<8x256xf32>
    %543 = arith.mulf %542, %8 : vector<8x256xf32>
    %544 = arith.addf %540, %543 : vector<8x256xf32>
    %c35_112 = arith.constant 35 : index
    %545 = memref.load %arg4[%c35_112] : memref<64xf32, #tpu.memory_space<smem>>
    %546 = vector.broadcast %545 : f32 to vector<8x256xf32>
    %547 = arith.addf %544, %546 : vector<8x256xf32>
    %548 = math.tanh %547 : vector<8x256xf32>
    %c35_113 = arith.constant 35 : index
    %549 = memref.load %arg5[%c35_113] : memref<64xf32, #tpu.memory_space<smem>>
    %550 = vector.broadcast %549 : f32 to vector<8x256xf32>
    %551 = arith.mulf %550, %548 : vector<8x256xf32>
    %552 = arith.addf %492, %551 : vector<8x256xf32>
    %c36 = arith.constant 36 : index
    %553 = memref.load %arg2[%c36] : memref<64xf32, #tpu.memory_space<smem>>
    %554 = vector.broadcast %553 : f32 to vector<8x256xf32>
    %555 = arith.mulf %554, %7 : vector<8x256xf32>
    %c36_114 = arith.constant 36 : index
    %556 = memref.load %arg3[%c36_114] : memref<64xf32, #tpu.memory_space<smem>>
    %557 = vector.broadcast %556 : f32 to vector<8x256xf32>
    %558 = arith.mulf %557, %8 : vector<8x256xf32>
    %559 = arith.addf %555, %558 : vector<8x256xf32>
    %c36_115 = arith.constant 36 : index
    %560 = memref.load %arg4[%c36_115] : memref<64xf32, #tpu.memory_space<smem>>
    %561 = vector.broadcast %560 : f32 to vector<8x256xf32>
    %562 = arith.addf %559, %561 : vector<8x256xf32>
    %563 = math.tanh %562 : vector<8x256xf32>
    %c36_116 = arith.constant 36 : index
    %564 = memref.load %arg5[%c36_116] : memref<64xf32, #tpu.memory_space<smem>>
    %565 = vector.broadcast %564 : f32 to vector<8x256xf32>
    %566 = arith.mulf %565, %563 : vector<8x256xf32>
    %567 = arith.addf %507, %566 : vector<8x256xf32>
    %c37 = arith.constant 37 : index
    %568 = memref.load %arg2[%c37] : memref<64xf32, #tpu.memory_space<smem>>
    %569 = vector.broadcast %568 : f32 to vector<8x256xf32>
    %570 = arith.mulf %569, %7 : vector<8x256xf32>
    %c37_117 = arith.constant 37 : index
    %571 = memref.load %arg3[%c37_117] : memref<64xf32, #tpu.memory_space<smem>>
    %572 = vector.broadcast %571 : f32 to vector<8x256xf32>
    %573 = arith.mulf %572, %8 : vector<8x256xf32>
    %574 = arith.addf %570, %573 : vector<8x256xf32>
    %c37_118 = arith.constant 37 : index
    %575 = memref.load %arg4[%c37_118] : memref<64xf32, #tpu.memory_space<smem>>
    %576 = vector.broadcast %575 : f32 to vector<8x256xf32>
    %577 = arith.addf %574, %576 : vector<8x256xf32>
    %578 = math.tanh %577 : vector<8x256xf32>
    %c37_119 = arith.constant 37 : index
    %579 = memref.load %arg5[%c37_119] : memref<64xf32, #tpu.memory_space<smem>>
    %580 = vector.broadcast %579 : f32 to vector<8x256xf32>
    %581 = arith.mulf %580, %578 : vector<8x256xf32>
    %582 = arith.addf %522, %581 : vector<8x256xf32>
    %c38 = arith.constant 38 : index
    %583 = memref.load %arg2[%c38] : memref<64xf32, #tpu.memory_space<smem>>
    %584 = vector.broadcast %583 : f32 to vector<8x256xf32>
    %585 = arith.mulf %584, %7 : vector<8x256xf32>
    %c38_120 = arith.constant 38 : index
    %586 = memref.load %arg3[%c38_120] : memref<64xf32, #tpu.memory_space<smem>>
    %587 = vector.broadcast %586 : f32 to vector<8x256xf32>
    %588 = arith.mulf %587, %8 : vector<8x256xf32>
    %589 = arith.addf %585, %588 : vector<8x256xf32>
    %c38_121 = arith.constant 38 : index
    %590 = memref.load %arg4[%c38_121] : memref<64xf32, #tpu.memory_space<smem>>
    %591 = vector.broadcast %590 : f32 to vector<8x256xf32>
    %592 = arith.addf %589, %591 : vector<8x256xf32>
    %593 = math.tanh %592 : vector<8x256xf32>
    %c38_122 = arith.constant 38 : index
    %594 = memref.load %arg5[%c38_122] : memref<64xf32, #tpu.memory_space<smem>>
    %595 = vector.broadcast %594 : f32 to vector<8x256xf32>
    %596 = arith.mulf %595, %593 : vector<8x256xf32>
    %597 = arith.addf %537, %596 : vector<8x256xf32>
    %c39 = arith.constant 39 : index
    %598 = memref.load %arg2[%c39] : memref<64xf32, #tpu.memory_space<smem>>
    %599 = vector.broadcast %598 : f32 to vector<8x256xf32>
    %600 = arith.mulf %599, %7 : vector<8x256xf32>
    %c39_123 = arith.constant 39 : index
    %601 = memref.load %arg3[%c39_123] : memref<64xf32, #tpu.memory_space<smem>>
    %602 = vector.broadcast %601 : f32 to vector<8x256xf32>
    %603 = arith.mulf %602, %8 : vector<8x256xf32>
    %604 = arith.addf %600, %603 : vector<8x256xf32>
    %c39_124 = arith.constant 39 : index
    %605 = memref.load %arg4[%c39_124] : memref<64xf32, #tpu.memory_space<smem>>
    %606 = vector.broadcast %605 : f32 to vector<8x256xf32>
    %607 = arith.addf %604, %606 : vector<8x256xf32>
    %608 = math.tanh %607 : vector<8x256xf32>
    %c39_125 = arith.constant 39 : index
    %609 = memref.load %arg5[%c39_125] : memref<64xf32, #tpu.memory_space<smem>>
    %610 = vector.broadcast %609 : f32 to vector<8x256xf32>
    %611 = arith.mulf %610, %608 : vector<8x256xf32>
    %612 = arith.addf %552, %611 : vector<8x256xf32>
    %c40 = arith.constant 40 : index
    %613 = memref.load %arg2[%c40] : memref<64xf32, #tpu.memory_space<smem>>
    %614 = vector.broadcast %613 : f32 to vector<8x256xf32>
    %615 = arith.mulf %614, %7 : vector<8x256xf32>
    %c40_126 = arith.constant 40 : index
    %616 = memref.load %arg3[%c40_126] : memref<64xf32, #tpu.memory_space<smem>>
    %617 = vector.broadcast %616 : f32 to vector<8x256xf32>
    %618 = arith.mulf %617, %8 : vector<8x256xf32>
    %619 = arith.addf %615, %618 : vector<8x256xf32>
    %c40_127 = arith.constant 40 : index
    %620 = memref.load %arg4[%c40_127] : memref<64xf32, #tpu.memory_space<smem>>
    %621 = vector.broadcast %620 : f32 to vector<8x256xf32>
    %622 = arith.addf %619, %621 : vector<8x256xf32>
    %623 = math.tanh %622 : vector<8x256xf32>
    %c40_128 = arith.constant 40 : index
    %624 = memref.load %arg5[%c40_128] : memref<64xf32, #tpu.memory_space<smem>>
    %625 = vector.broadcast %624 : f32 to vector<8x256xf32>
    %626 = arith.mulf %625, %623 : vector<8x256xf32>
    %627 = arith.addf %567, %626 : vector<8x256xf32>
    %c41 = arith.constant 41 : index
    %628 = memref.load %arg2[%c41] : memref<64xf32, #tpu.memory_space<smem>>
    %629 = vector.broadcast %628 : f32 to vector<8x256xf32>
    %630 = arith.mulf %629, %7 : vector<8x256xf32>
    %c41_129 = arith.constant 41 : index
    %631 = memref.load %arg3[%c41_129] : memref<64xf32, #tpu.memory_space<smem>>
    %632 = vector.broadcast %631 : f32 to vector<8x256xf32>
    %633 = arith.mulf %632, %8 : vector<8x256xf32>
    %634 = arith.addf %630, %633 : vector<8x256xf32>
    %c41_130 = arith.constant 41 : index
    %635 = memref.load %arg4[%c41_130] : memref<64xf32, #tpu.memory_space<smem>>
    %636 = vector.broadcast %635 : f32 to vector<8x256xf32>
    %637 = arith.addf %634, %636 : vector<8x256xf32>
    %638 = math.tanh %637 : vector<8x256xf32>
    %c41_131 = arith.constant 41 : index
    %639 = memref.load %arg5[%c41_131] : memref<64xf32, #tpu.memory_space<smem>>
    %640 = vector.broadcast %639 : f32 to vector<8x256xf32>
    %641 = arith.mulf %640, %638 : vector<8x256xf32>
    %642 = arith.addf %582, %641 : vector<8x256xf32>
    %c42 = arith.constant 42 : index
    %643 = memref.load %arg2[%c42] : memref<64xf32, #tpu.memory_space<smem>>
    %644 = vector.broadcast %643 : f32 to vector<8x256xf32>
    %645 = arith.mulf %644, %7 : vector<8x256xf32>
    %c42_132 = arith.constant 42 : index
    %646 = memref.load %arg3[%c42_132] : memref<64xf32, #tpu.memory_space<smem>>
    %647 = vector.broadcast %646 : f32 to vector<8x256xf32>
    %648 = arith.mulf %647, %8 : vector<8x256xf32>
    %649 = arith.addf %645, %648 : vector<8x256xf32>
    %c42_133 = arith.constant 42 : index
    %650 = memref.load %arg4[%c42_133] : memref<64xf32, #tpu.memory_space<smem>>
    %651 = vector.broadcast %650 : f32 to vector<8x256xf32>
    %652 = arith.addf %649, %651 : vector<8x256xf32>
    %653 = math.tanh %652 : vector<8x256xf32>
    %c42_134 = arith.constant 42 : index
    %654 = memref.load %arg5[%c42_134] : memref<64xf32, #tpu.memory_space<smem>>
    %655 = vector.broadcast %654 : f32 to vector<8x256xf32>
    %656 = arith.mulf %655, %653 : vector<8x256xf32>
    %657 = arith.addf %597, %656 : vector<8x256xf32>
    %c43 = arith.constant 43 : index
    %658 = memref.load %arg2[%c43] : memref<64xf32, #tpu.memory_space<smem>>
    %659 = vector.broadcast %658 : f32 to vector<8x256xf32>
    %660 = arith.mulf %659, %7 : vector<8x256xf32>
    %c43_135 = arith.constant 43 : index
    %661 = memref.load %arg3[%c43_135] : memref<64xf32, #tpu.memory_space<smem>>
    %662 = vector.broadcast %661 : f32 to vector<8x256xf32>
    %663 = arith.mulf %662, %8 : vector<8x256xf32>
    %664 = arith.addf %660, %663 : vector<8x256xf32>
    %c43_136 = arith.constant 43 : index
    %665 = memref.load %arg4[%c43_136] : memref<64xf32, #tpu.memory_space<smem>>
    %666 = vector.broadcast %665 : f32 to vector<8x256xf32>
    %667 = arith.addf %664, %666 : vector<8x256xf32>
    %668 = math.tanh %667 : vector<8x256xf32>
    %c43_137 = arith.constant 43 : index
    %669 = memref.load %arg5[%c43_137] : memref<64xf32, #tpu.memory_space<smem>>
    %670 = vector.broadcast %669 : f32 to vector<8x256xf32>
    %671 = arith.mulf %670, %668 : vector<8x256xf32>
    %672 = arith.addf %612, %671 : vector<8x256xf32>
    %c44 = arith.constant 44 : index
    %673 = memref.load %arg2[%c44] : memref<64xf32, #tpu.memory_space<smem>>
    %674 = vector.broadcast %673 : f32 to vector<8x256xf32>
    %675 = arith.mulf %674, %7 : vector<8x256xf32>
    %c44_138 = arith.constant 44 : index
    %676 = memref.load %arg3[%c44_138] : memref<64xf32, #tpu.memory_space<smem>>
    %677 = vector.broadcast %676 : f32 to vector<8x256xf32>
    %678 = arith.mulf %677, %8 : vector<8x256xf32>
    %679 = arith.addf %675, %678 : vector<8x256xf32>
    %c44_139 = arith.constant 44 : index
    %680 = memref.load %arg4[%c44_139] : memref<64xf32, #tpu.memory_space<smem>>
    %681 = vector.broadcast %680 : f32 to vector<8x256xf32>
    %682 = arith.addf %679, %681 : vector<8x256xf32>
    %683 = math.tanh %682 : vector<8x256xf32>
    %c44_140 = arith.constant 44 : index
    %684 = memref.load %arg5[%c44_140] : memref<64xf32, #tpu.memory_space<smem>>
    %685 = vector.broadcast %684 : f32 to vector<8x256xf32>
    %686 = arith.mulf %685, %683 : vector<8x256xf32>
    %687 = arith.addf %627, %686 : vector<8x256xf32>
    %c45 = arith.constant 45 : index
    %688 = memref.load %arg2[%c45] : memref<64xf32, #tpu.memory_space<smem>>
    %689 = vector.broadcast %688 : f32 to vector<8x256xf32>
    %690 = arith.mulf %689, %7 : vector<8x256xf32>
    %c45_141 = arith.constant 45 : index
    %691 = memref.load %arg3[%c45_141] : memref<64xf32, #tpu.memory_space<smem>>
    %692 = vector.broadcast %691 : f32 to vector<8x256xf32>
    %693 = arith.mulf %692, %8 : vector<8x256xf32>
    %694 = arith.addf %690, %693 : vector<8x256xf32>
    %c45_142 = arith.constant 45 : index
    %695 = memref.load %arg4[%c45_142] : memref<64xf32, #tpu.memory_space<smem>>
    %696 = vector.broadcast %695 : f32 to vector<8x256xf32>
    %697 = arith.addf %694, %696 : vector<8x256xf32>
    %698 = math.tanh %697 : vector<8x256xf32>
    %c45_143 = arith.constant 45 : index
    %699 = memref.load %arg5[%c45_143] : memref<64xf32, #tpu.memory_space<smem>>
    %700 = vector.broadcast %699 : f32 to vector<8x256xf32>
    %701 = arith.mulf %700, %698 : vector<8x256xf32>
    %702 = arith.addf %642, %701 : vector<8x256xf32>
    %c46 = arith.constant 46 : index
    %703 = memref.load %arg2[%c46] : memref<64xf32, #tpu.memory_space<smem>>
    %704 = vector.broadcast %703 : f32 to vector<8x256xf32>
    %705 = arith.mulf %704, %7 : vector<8x256xf32>
    %c46_144 = arith.constant 46 : index
    %706 = memref.load %arg3[%c46_144] : memref<64xf32, #tpu.memory_space<smem>>
    %707 = vector.broadcast %706 : f32 to vector<8x256xf32>
    %708 = arith.mulf %707, %8 : vector<8x256xf32>
    %709 = arith.addf %705, %708 : vector<8x256xf32>
    %c46_145 = arith.constant 46 : index
    %710 = memref.load %arg4[%c46_145] : memref<64xf32, #tpu.memory_space<smem>>
    %711 = vector.broadcast %710 : f32 to vector<8x256xf32>
    %712 = arith.addf %709, %711 : vector<8x256xf32>
    %713 = math.tanh %712 : vector<8x256xf32>
    %c46_146 = arith.constant 46 : index
    %714 = memref.load %arg5[%c46_146] : memref<64xf32, #tpu.memory_space<smem>>
    %715 = vector.broadcast %714 : f32 to vector<8x256xf32>
    %716 = arith.mulf %715, %713 : vector<8x256xf32>
    %717 = arith.addf %657, %716 : vector<8x256xf32>
    %c47 = arith.constant 47 : index
    %718 = memref.load %arg2[%c47] : memref<64xf32, #tpu.memory_space<smem>>
    %719 = vector.broadcast %718 : f32 to vector<8x256xf32>
    %720 = arith.mulf %719, %7 : vector<8x256xf32>
    %c47_147 = arith.constant 47 : index
    %721 = memref.load %arg3[%c47_147] : memref<64xf32, #tpu.memory_space<smem>>
    %722 = vector.broadcast %721 : f32 to vector<8x256xf32>
    %723 = arith.mulf %722, %8 : vector<8x256xf32>
    %724 = arith.addf %720, %723 : vector<8x256xf32>
    %c47_148 = arith.constant 47 : index
    %725 = memref.load %arg4[%c47_148] : memref<64xf32, #tpu.memory_space<smem>>
    %726 = vector.broadcast %725 : f32 to vector<8x256xf32>
    %727 = arith.addf %724, %726 : vector<8x256xf32>
    %728 = math.tanh %727 : vector<8x256xf32>
    %c47_149 = arith.constant 47 : index
    %729 = memref.load %arg5[%c47_149] : memref<64xf32, #tpu.memory_space<smem>>
    %730 = vector.broadcast %729 : f32 to vector<8x256xf32>
    %731 = arith.mulf %730, %728 : vector<8x256xf32>
    %732 = arith.addf %672, %731 : vector<8x256xf32>
    %c48 = arith.constant 48 : index
    %733 = memref.load %arg2[%c48] : memref<64xf32, #tpu.memory_space<smem>>
    %734 = vector.broadcast %733 : f32 to vector<8x256xf32>
    %735 = arith.mulf %734, %7 : vector<8x256xf32>
    %c48_150 = arith.constant 48 : index
    %736 = memref.load %arg3[%c48_150] : memref<64xf32, #tpu.memory_space<smem>>
    %737 = vector.broadcast %736 : f32 to vector<8x256xf32>
    %738 = arith.mulf %737, %8 : vector<8x256xf32>
    %739 = arith.addf %735, %738 : vector<8x256xf32>
    %c48_151 = arith.constant 48 : index
    %740 = memref.load %arg4[%c48_151] : memref<64xf32, #tpu.memory_space<smem>>
    %741 = vector.broadcast %740 : f32 to vector<8x256xf32>
    %742 = arith.addf %739, %741 : vector<8x256xf32>
    %743 = math.tanh %742 : vector<8x256xf32>
    %c48_152 = arith.constant 48 : index
    %744 = memref.load %arg5[%c48_152] : memref<64xf32, #tpu.memory_space<smem>>
    %745 = vector.broadcast %744 : f32 to vector<8x256xf32>
    %746 = arith.mulf %745, %743 : vector<8x256xf32>
    %747 = arith.addf %687, %746 : vector<8x256xf32>
    %c49 = arith.constant 49 : index
    %748 = memref.load %arg2[%c49] : memref<64xf32, #tpu.memory_space<smem>>
    %749 = vector.broadcast %748 : f32 to vector<8x256xf32>
    %750 = arith.mulf %749, %7 : vector<8x256xf32>
    %c49_153 = arith.constant 49 : index
    %751 = memref.load %arg3[%c49_153] : memref<64xf32, #tpu.memory_space<smem>>
    %752 = vector.broadcast %751 : f32 to vector<8x256xf32>
    %753 = arith.mulf %752, %8 : vector<8x256xf32>
    %754 = arith.addf %750, %753 : vector<8x256xf32>
    %c49_154 = arith.constant 49 : index
    %755 = memref.load %arg4[%c49_154] : memref<64xf32, #tpu.memory_space<smem>>
    %756 = vector.broadcast %755 : f32 to vector<8x256xf32>
    %757 = arith.addf %754, %756 : vector<8x256xf32>
    %758 = math.tanh %757 : vector<8x256xf32>
    %c49_155 = arith.constant 49 : index
    %759 = memref.load %arg5[%c49_155] : memref<64xf32, #tpu.memory_space<smem>>
    %760 = vector.broadcast %759 : f32 to vector<8x256xf32>
    %761 = arith.mulf %760, %758 : vector<8x256xf32>
    %762 = arith.addf %702, %761 : vector<8x256xf32>
    %c50 = arith.constant 50 : index
    %763 = memref.load %arg2[%c50] : memref<64xf32, #tpu.memory_space<smem>>
    %764 = vector.broadcast %763 : f32 to vector<8x256xf32>
    %765 = arith.mulf %764, %7 : vector<8x256xf32>
    %c50_156 = arith.constant 50 : index
    %766 = memref.load %arg3[%c50_156] : memref<64xf32, #tpu.memory_space<smem>>
    %767 = vector.broadcast %766 : f32 to vector<8x256xf32>
    %768 = arith.mulf %767, %8 : vector<8x256xf32>
    %769 = arith.addf %765, %768 : vector<8x256xf32>
    %c50_157 = arith.constant 50 : index
    %770 = memref.load %arg4[%c50_157] : memref<64xf32, #tpu.memory_space<smem>>
    %771 = vector.broadcast %770 : f32 to vector<8x256xf32>
    %772 = arith.addf %769, %771 : vector<8x256xf32>
    %773 = math.tanh %772 : vector<8x256xf32>
    %c50_158 = arith.constant 50 : index
    %774 = memref.load %arg5[%c50_158] : memref<64xf32, #tpu.memory_space<smem>>
    %775 = vector.broadcast %774 : f32 to vector<8x256xf32>
    %776 = arith.mulf %775, %773 : vector<8x256xf32>
    %777 = arith.addf %717, %776 : vector<8x256xf32>
    %c51 = arith.constant 51 : index
    %778 = memref.load %arg2[%c51] : memref<64xf32, #tpu.memory_space<smem>>
    %779 = vector.broadcast %778 : f32 to vector<8x256xf32>
    %780 = arith.mulf %779, %7 : vector<8x256xf32>
    %c51_159 = arith.constant 51 : index
    %781 = memref.load %arg3[%c51_159] : memref<64xf32, #tpu.memory_space<smem>>
    %782 = vector.broadcast %781 : f32 to vector<8x256xf32>
    %783 = arith.mulf %782, %8 : vector<8x256xf32>
    %784 = arith.addf %780, %783 : vector<8x256xf32>
    %c51_160 = arith.constant 51 : index
    %785 = memref.load %arg4[%c51_160] : memref<64xf32, #tpu.memory_space<smem>>
    %786 = vector.broadcast %785 : f32 to vector<8x256xf32>
    %787 = arith.addf %784, %786 : vector<8x256xf32>
    %788 = math.tanh %787 : vector<8x256xf32>
    %c51_161 = arith.constant 51 : index
    %789 = memref.load %arg5[%c51_161] : memref<64xf32, #tpu.memory_space<smem>>
    %790 = vector.broadcast %789 : f32 to vector<8x256xf32>
    %791 = arith.mulf %790, %788 : vector<8x256xf32>
    %792 = arith.addf %732, %791 : vector<8x256xf32>
    %c52 = arith.constant 52 : index
    %793 = memref.load %arg2[%c52] : memref<64xf32, #tpu.memory_space<smem>>
    %794 = vector.broadcast %793 : f32 to vector<8x256xf32>
    %795 = arith.mulf %794, %7 : vector<8x256xf32>
    %c52_162 = arith.constant 52 : index
    %796 = memref.load %arg3[%c52_162] : memref<64xf32, #tpu.memory_space<smem>>
    %797 = vector.broadcast %796 : f32 to vector<8x256xf32>
    %798 = arith.mulf %797, %8 : vector<8x256xf32>
    %799 = arith.addf %795, %798 : vector<8x256xf32>
    %c52_163 = arith.constant 52 : index
    %800 = memref.load %arg4[%c52_163] : memref<64xf32, #tpu.memory_space<smem>>
    %801 = vector.broadcast %800 : f32 to vector<8x256xf32>
    %802 = arith.addf %799, %801 : vector<8x256xf32>
    %803 = math.tanh %802 : vector<8x256xf32>
    %c52_164 = arith.constant 52 : index
    %804 = memref.load %arg5[%c52_164] : memref<64xf32, #tpu.memory_space<smem>>
    %805 = vector.broadcast %804 : f32 to vector<8x256xf32>
    %806 = arith.mulf %805, %803 : vector<8x256xf32>
    %807 = arith.addf %747, %806 : vector<8x256xf32>
    %c53 = arith.constant 53 : index
    %808 = memref.load %arg2[%c53] : memref<64xf32, #tpu.memory_space<smem>>
    %809 = vector.broadcast %808 : f32 to vector<8x256xf32>
    %810 = arith.mulf %809, %7 : vector<8x256xf32>
    %c53_165 = arith.constant 53 : index
    %811 = memref.load %arg3[%c53_165] : memref<64xf32, #tpu.memory_space<smem>>
    %812 = vector.broadcast %811 : f32 to vector<8x256xf32>
    %813 = arith.mulf %812, %8 : vector<8x256xf32>
    %814 = arith.addf %810, %813 : vector<8x256xf32>
    %c53_166 = arith.constant 53 : index
    %815 = memref.load %arg4[%c53_166] : memref<64xf32, #tpu.memory_space<smem>>
    %816 = vector.broadcast %815 : f32 to vector<8x256xf32>
    %817 = arith.addf %814, %816 : vector<8x256xf32>
    %818 = math.tanh %817 : vector<8x256xf32>
    %c53_167 = arith.constant 53 : index
    %819 = memref.load %arg5[%c53_167] : memref<64xf32, #tpu.memory_space<smem>>
    %820 = vector.broadcast %819 : f32 to vector<8x256xf32>
    %821 = arith.mulf %820, %818 : vector<8x256xf32>
    %822 = arith.addf %762, %821 : vector<8x256xf32>
    %c54 = arith.constant 54 : index
    %823 = memref.load %arg2[%c54] : memref<64xf32, #tpu.memory_space<smem>>
    %824 = vector.broadcast %823 : f32 to vector<8x256xf32>
    %825 = arith.mulf %824, %7 : vector<8x256xf32>
    %c54_168 = arith.constant 54 : index
    %826 = memref.load %arg3[%c54_168] : memref<64xf32, #tpu.memory_space<smem>>
    %827 = vector.broadcast %826 : f32 to vector<8x256xf32>
    %828 = arith.mulf %827, %8 : vector<8x256xf32>
    %829 = arith.addf %825, %828 : vector<8x256xf32>
    %c54_169 = arith.constant 54 : index
    %830 = memref.load %arg4[%c54_169] : memref<64xf32, #tpu.memory_space<smem>>
    %831 = vector.broadcast %830 : f32 to vector<8x256xf32>
    %832 = arith.addf %829, %831 : vector<8x256xf32>
    %833 = math.tanh %832 : vector<8x256xf32>
    %c54_170 = arith.constant 54 : index
    %834 = memref.load %arg5[%c54_170] : memref<64xf32, #tpu.memory_space<smem>>
    %835 = vector.broadcast %834 : f32 to vector<8x256xf32>
    %836 = arith.mulf %835, %833 : vector<8x256xf32>
    %837 = arith.addf %777, %836 : vector<8x256xf32>
    %c55 = arith.constant 55 : index
    %838 = memref.load %arg2[%c55] : memref<64xf32, #tpu.memory_space<smem>>
    %839 = vector.broadcast %838 : f32 to vector<8x256xf32>
    %840 = arith.mulf %839, %7 : vector<8x256xf32>
    %c55_171 = arith.constant 55 : index
    %841 = memref.load %arg3[%c55_171] : memref<64xf32, #tpu.memory_space<smem>>
    %842 = vector.broadcast %841 : f32 to vector<8x256xf32>
    %843 = arith.mulf %842, %8 : vector<8x256xf32>
    %844 = arith.addf %840, %843 : vector<8x256xf32>
    %c55_172 = arith.constant 55 : index
    %845 = memref.load %arg4[%c55_172] : memref<64xf32, #tpu.memory_space<smem>>
    %846 = vector.broadcast %845 : f32 to vector<8x256xf32>
    %847 = arith.addf %844, %846 : vector<8x256xf32>
    %848 = math.tanh %847 : vector<8x256xf32>
    %c55_173 = arith.constant 55 : index
    %849 = memref.load %arg5[%c55_173] : memref<64xf32, #tpu.memory_space<smem>>
    %850 = vector.broadcast %849 : f32 to vector<8x256xf32>
    %851 = arith.mulf %850, %848 : vector<8x256xf32>
    %852 = arith.addf %792, %851 : vector<8x256xf32>
    %c56 = arith.constant 56 : index
    %853 = memref.load %arg2[%c56] : memref<64xf32, #tpu.memory_space<smem>>
    %854 = vector.broadcast %853 : f32 to vector<8x256xf32>
    %855 = arith.mulf %854, %7 : vector<8x256xf32>
    %c56_174 = arith.constant 56 : index
    %856 = memref.load %arg3[%c56_174] : memref<64xf32, #tpu.memory_space<smem>>
    %857 = vector.broadcast %856 : f32 to vector<8x256xf32>
    %858 = arith.mulf %857, %8 : vector<8x256xf32>
    %859 = arith.addf %855, %858 : vector<8x256xf32>
    %c56_175 = arith.constant 56 : index
    %860 = memref.load %arg4[%c56_175] : memref<64xf32, #tpu.memory_space<smem>>
    %861 = vector.broadcast %860 : f32 to vector<8x256xf32>
    %862 = arith.addf %859, %861 : vector<8x256xf32>
    %863 = math.tanh %862 : vector<8x256xf32>
    %c56_176 = arith.constant 56 : index
    %864 = memref.load %arg5[%c56_176] : memref<64xf32, #tpu.memory_space<smem>>
    %865 = vector.broadcast %864 : f32 to vector<8x256xf32>
    %866 = arith.mulf %865, %863 : vector<8x256xf32>
    %867 = arith.addf %807, %866 : vector<8x256xf32>
    %c57 = arith.constant 57 : index
    %868 = memref.load %arg2[%c57] : memref<64xf32, #tpu.memory_space<smem>>
    %869 = vector.broadcast %868 : f32 to vector<8x256xf32>
    %870 = arith.mulf %869, %7 : vector<8x256xf32>
    %c57_177 = arith.constant 57 : index
    %871 = memref.load %arg3[%c57_177] : memref<64xf32, #tpu.memory_space<smem>>
    %872 = vector.broadcast %871 : f32 to vector<8x256xf32>
    %873 = arith.mulf %872, %8 : vector<8x256xf32>
    %874 = arith.addf %870, %873 : vector<8x256xf32>
    %c57_178 = arith.constant 57 : index
    %875 = memref.load %arg4[%c57_178] : memref<64xf32, #tpu.memory_space<smem>>
    %876 = vector.broadcast %875 : f32 to vector<8x256xf32>
    %877 = arith.addf %874, %876 : vector<8x256xf32>
    %878 = math.tanh %877 : vector<8x256xf32>
    %c57_179 = arith.constant 57 : index
    %879 = memref.load %arg5[%c57_179] : memref<64xf32, #tpu.memory_space<smem>>
    %880 = vector.broadcast %879 : f32 to vector<8x256xf32>
    %881 = arith.mulf %880, %878 : vector<8x256xf32>
    %882 = arith.addf %822, %881 : vector<8x256xf32>
    %c58 = arith.constant 58 : index
    %883 = memref.load %arg2[%c58] : memref<64xf32, #tpu.memory_space<smem>>
    %884 = vector.broadcast %883 : f32 to vector<8x256xf32>
    %885 = arith.mulf %884, %7 : vector<8x256xf32>
    %c58_180 = arith.constant 58 : index
    %886 = memref.load %arg3[%c58_180] : memref<64xf32, #tpu.memory_space<smem>>
    %887 = vector.broadcast %886 : f32 to vector<8x256xf32>
    %888 = arith.mulf %887, %8 : vector<8x256xf32>
    %889 = arith.addf %885, %888 : vector<8x256xf32>
    %c58_181 = arith.constant 58 : index
    %890 = memref.load %arg4[%c58_181] : memref<64xf32, #tpu.memory_space<smem>>
    %891 = vector.broadcast %890 : f32 to vector<8x256xf32>
    %892 = arith.addf %889, %891 : vector<8x256xf32>
    %893 = math.tanh %892 : vector<8x256xf32>
    %c58_182 = arith.constant 58 : index
    %894 = memref.load %arg5[%c58_182] : memref<64xf32, #tpu.memory_space<smem>>
    %895 = vector.broadcast %894 : f32 to vector<8x256xf32>
    %896 = arith.mulf %895, %893 : vector<8x256xf32>
    %897 = arith.addf %837, %896 : vector<8x256xf32>
    %c59 = arith.constant 59 : index
    %898 = memref.load %arg2[%c59] : memref<64xf32, #tpu.memory_space<smem>>
    %899 = vector.broadcast %898 : f32 to vector<8x256xf32>
    %900 = arith.mulf %899, %7 : vector<8x256xf32>
    %c59_183 = arith.constant 59 : index
    %901 = memref.load %arg3[%c59_183] : memref<64xf32, #tpu.memory_space<smem>>
    %902 = vector.broadcast %901 : f32 to vector<8x256xf32>
    %903 = arith.mulf %902, %8 : vector<8x256xf32>
    %904 = arith.addf %900, %903 : vector<8x256xf32>
    %c59_184 = arith.constant 59 : index
    %905 = memref.load %arg4[%c59_184] : memref<64xf32, #tpu.memory_space<smem>>
    %906 = vector.broadcast %905 : f32 to vector<8x256xf32>
    %907 = arith.addf %904, %906 : vector<8x256xf32>
    %908 = math.tanh %907 : vector<8x256xf32>
    %c59_185 = arith.constant 59 : index
    %909 = memref.load %arg5[%c59_185] : memref<64xf32, #tpu.memory_space<smem>>
    %910 = vector.broadcast %909 : f32 to vector<8x256xf32>
    %911 = arith.mulf %910, %908 : vector<8x256xf32>
    %912 = arith.addf %852, %911 : vector<8x256xf32>
    %c60 = arith.constant 60 : index
    %913 = memref.load %arg2[%c60] : memref<64xf32, #tpu.memory_space<smem>>
    %914 = vector.broadcast %913 : f32 to vector<8x256xf32>
    %915 = arith.mulf %914, %7 : vector<8x256xf32>
    %c60_186 = arith.constant 60 : index
    %916 = memref.load %arg3[%c60_186] : memref<64xf32, #tpu.memory_space<smem>>
    %917 = vector.broadcast %916 : f32 to vector<8x256xf32>
    %918 = arith.mulf %917, %8 : vector<8x256xf32>
    %919 = arith.addf %915, %918 : vector<8x256xf32>
    %c60_187 = arith.constant 60 : index
    %920 = memref.load %arg4[%c60_187] : memref<64xf32, #tpu.memory_space<smem>>
    %921 = vector.broadcast %920 : f32 to vector<8x256xf32>
    %922 = arith.addf %919, %921 : vector<8x256xf32>
    %923 = math.tanh %922 : vector<8x256xf32>
    %c60_188 = arith.constant 60 : index
    %924 = memref.load %arg5[%c60_188] : memref<64xf32, #tpu.memory_space<smem>>
    %925 = vector.broadcast %924 : f32 to vector<8x256xf32>
    %926 = arith.mulf %925, %923 : vector<8x256xf32>
    %927 = arith.addf %867, %926 : vector<8x256xf32>
    %c61 = arith.constant 61 : index
    %928 = memref.load %arg2[%c61] : memref<64xf32, #tpu.memory_space<smem>>
    %929 = vector.broadcast %928 : f32 to vector<8x256xf32>
    %930 = arith.mulf %929, %7 : vector<8x256xf32>
    %c61_189 = arith.constant 61 : index
    %931 = memref.load %arg3[%c61_189] : memref<64xf32, #tpu.memory_space<smem>>
    %932 = vector.broadcast %931 : f32 to vector<8x256xf32>
    %933 = arith.mulf %932, %8 : vector<8x256xf32>
    %934 = arith.addf %930, %933 : vector<8x256xf32>
    %c61_190 = arith.constant 61 : index
    %935 = memref.load %arg4[%c61_190] : memref<64xf32, #tpu.memory_space<smem>>
    %936 = vector.broadcast %935 : f32 to vector<8x256xf32>
    %937 = arith.addf %934, %936 : vector<8x256xf32>
    %938 = math.tanh %937 : vector<8x256xf32>
    %c61_191 = arith.constant 61 : index
    %939 = memref.load %arg5[%c61_191] : memref<64xf32, #tpu.memory_space<smem>>
    %940 = vector.broadcast %939 : f32 to vector<8x256xf32>
    %941 = arith.mulf %940, %938 : vector<8x256xf32>
    %942 = arith.addf %882, %941 : vector<8x256xf32>
    %c62 = arith.constant 62 : index
    %943 = memref.load %arg2[%c62] : memref<64xf32, #tpu.memory_space<smem>>
    %944 = vector.broadcast %943 : f32 to vector<8x256xf32>
    %945 = arith.mulf %944, %7 : vector<8x256xf32>
    %c62_192 = arith.constant 62 : index
    %946 = memref.load %arg3[%c62_192] : memref<64xf32, #tpu.memory_space<smem>>
    %947 = vector.broadcast %946 : f32 to vector<8x256xf32>
    %948 = arith.mulf %947, %8 : vector<8x256xf32>
    %949 = arith.addf %945, %948 : vector<8x256xf32>
    %c62_193 = arith.constant 62 : index
    %950 = memref.load %arg4[%c62_193] : memref<64xf32, #tpu.memory_space<smem>>
    %951 = vector.broadcast %950 : f32 to vector<8x256xf32>
    %952 = arith.addf %949, %951 : vector<8x256xf32>
    %953 = math.tanh %952 : vector<8x256xf32>
    %c62_194 = arith.constant 62 : index
    %954 = memref.load %arg5[%c62_194] : memref<64xf32, #tpu.memory_space<smem>>
    %955 = vector.broadcast %954 : f32 to vector<8x256xf32>
    %956 = arith.mulf %955, %953 : vector<8x256xf32>
    %957 = arith.addf %897, %956 : vector<8x256xf32>
    %c63 = arith.constant 63 : index
    %958 = memref.load %arg2[%c63] : memref<64xf32, #tpu.memory_space<smem>>
    %959 = vector.broadcast %958 : f32 to vector<8x256xf32>
    %960 = arith.mulf %959, %7 : vector<8x256xf32>
    %c63_195 = arith.constant 63 : index
    %961 = memref.load %arg3[%c63_195] : memref<64xf32, #tpu.memory_space<smem>>
    %962 = vector.broadcast %961 : f32 to vector<8x256xf32>
    %963 = arith.mulf %962, %8 : vector<8x256xf32>
    %964 = arith.addf %960, %963 : vector<8x256xf32>
    %c63_196 = arith.constant 63 : index
    %965 = memref.load %arg4[%c63_196] : memref<64xf32, #tpu.memory_space<smem>>
    %966 = vector.broadcast %965 : f32 to vector<8x256xf32>
    %967 = arith.addf %964, %966 : vector<8x256xf32>
    %968 = math.tanh %967 : vector<8x256xf32>
    %c63_197 = arith.constant 63 : index
    %969 = memref.load %arg5[%c63_197] : memref<64xf32, #tpu.memory_space<smem>>
    %970 = vector.broadcast %969 : f32 to vector<8x256xf32>
    %971 = arith.mulf %970, %968 : vector<8x256xf32>
    %972 = arith.addf %912, %971 : vector<8x256xf32>
    %973 = arith.addf %927, %942 : vector<8x256xf32>
    %974 = arith.addf %957, %972 : vector<8x256xf32>
    %975 = arith.addf %973, %974 : vector<8x256xf32>
    %976 = vector.broadcast %0 : f32 to vector<8x256xf32>
    %977 = arith.addf %975, %976 : vector<8x256xf32>
    %978 = arith.index_cast %4 : i32 to index
    %c0_198 = arith.constant 0 : index
    %979 = vector.load %arg7[%978, %c0_198] : memref<8x256xf32, #tpu.memory_space<vmem>>, vector<8x256xf32>
    tpu.vector_store %arg7[%978, %c0_198], %977 {strides = array<i32>} : memref<8x256xf32, #tpu.memory_space<vmem>>, vector<8x256xf32>,
    %c1_i32_199 = arith.constant 1 : i32
    return
  }
  func.func @transform_0(%arg0: i32) -> (i32, i32) {
    %c0_i32 = arith.constant 0 : i32
    %c0_i32_0 = arith.constant 0 : i32
    return %arg0, %c0_i32 : i32, i32
  }
  func.func @transform_1(%arg0: i32) -> i32 {
    %c0_i32 = arith.constant 0 : i32
    %c0_i32_0 = arith.constant 0 : i32
    return %c0_i32 : i32
  }
  func.func @transform_2(%arg0: i32) -> i32 {
    %c0_i32 = arith.constant 0 : i32
    %c0_i32_0 = arith.constant 0 : i32
    return %c0_i32 : i32
  }
  func.func @transform_3(%arg0: i32) -> i32 {
    %c0_i32 = arith.constant 0 : i32
    %c0_i32_0 = arith.constant 0 : i32
    return %c0_i32 : i32
  }
  func.func @transform_4(%arg0: i32) -> i32 {
    %c0_i32 = arith.constant 0 : i32
    %c0_i32_0 = arith.constant 0 : i32
    return %c0_i32 : i32
  }
  func.func @transform_5(%arg0: i32) -> i32 {
    %c0_i32 = arith.constant 0 : i32
    %c0_i32_0 = arith.constant 0 : i32
    return %c0_i32 : i32
  }
  func.func @transform_6(%arg0: i32) -> (i32, i32) {
    %c0_i32 = arith.constant 0 : i32
    %c0_i32_0 = arith.constant 0 : i32
    return %arg0, %c0_i32 : i32, i32
  }
}

</mosaic_0001>

<llo_original>
// kernel: tpu_custom_call.1
$region0: #{tpu_custom_call.1}
  #allocation0 [shape = 'u32[]', space=smem, size = 0x4, offset = 0x4, fixed_abs, tag = 'smem constant byte address 0x4 - core index']
  #allocation1 [shape = 'u32[144,128]{1,0:T(1,128)}', space=vmem, size = 0x12000, scoped, tag = 'internal scratch']
  #allocation2 [shape = 'f32[1]{0:T(128)S(6)}', space=smem, size = 0x200, scoped, tag = 'scoped memory for tpu_custom_call.1']
  %s0 = inlined_call_operand.hbm [shape: f32[16,256], index: 0, kind: input, shape index: {}]
  %s1 = inlined_call_operand.vmem [shape: f32[64], index: 1, kind: input, shape index: {}]
  %s2 = inlined_call_operand.vmem [shape: f32[64], index: 2, kind: input, shape index: {}]
  %s3 = inlined_call_operand.vmem [shape: f32[64], index: 3, kind: input, shape index: {}]
  %s4 = inlined_call_operand.vmem [shape: f32[64], index: 4, kind: input, shape index: {}]
  %s5 = inlined_call_operand.<no memory space> [shape: f32[1], index: 5, kind: input, shape index: {}]
  %s6 = inlined_call_operand.hbm [shape: f32[16,256], index: 6, kind: output, shape index: {}]
  %s7 = sld [smem:[#allocation0]]
  $region77: #{tpu_custom_call.1} parent=0
    _
  %s9 = ssub.s32 1, %s7
  %s10 = scalar_select 0, %s9, %s7
  %11 = sst [smem:[#allocation2]] %s5
  $region1: #{tpu_custom_call.1} parent=0
    #allocation3 [shape = 'u8[16384]{0}', space=vmem, size = 0x4000, scoped, tag = 'input window, operand 0']
    #allocation4 [shape = 's32[2]{0}', space=sflag, size = 0x8, scoped, tag = 'scoped memory for tpu_custom_call.1']
    #allocation5 [shape = 's32[2]{0}', space=sflag, size = 0x8, scoped, tag = 'scoped memory for tpu_custom_call.1']
    #allocation6 [shape = 's32[2]{0}', space=sflag, size = 0x8, scoped, tag = 'scoped memory for tpu_custom_call.1']
    #allocation7 [shape = 'u8[512]{0}', space=smem, size = 0x200, scoped, tag = 'input window, operand 1, single buffered']
    #allocation8 [shape = 'u8[512]{0}', space=smem, size = 0x200, scoped, tag = 'input window, operand 2, single buffered']
    #allocation9 [shape = 's32[1]{0}', space=sflag, size = 0x4, scoped, tag = 'scoped memory for tpu_custom_call.1']
    #allocation10 [shape = 'u8[512]{0}', space=smem, size = 0x200, scoped, tag = 'input window, operand 3, single buffered']
    #allocation11 [shape = 'u8[512]{0}', space=smem, size = 0x200, scoped, tag = 'input window, operand 4, single buffered']
    #allocation12 [shape = 's32[1]{0}', space=sflag, size = 0x4, scoped, tag = 'scoped memory for tpu_custom_call.1']
    #allocation13 [shape = 'u8[16384]{0}', space=vmem, size = 0x4000, scoped, tag = 'output window, operand 0']
    %12 = vsyncpa [#allocation4], 0
    %s13 = scalar_lea.sflag [#allocation4], 1
    %14 = vsyncpa %s13, 0
    %15 = vsyncpa [#allocation6], 0
    %16 = vsyncpa [#allocation9], 0
    %17 = vsyncpa [#allocation12], 0
    %18 = vsyncpa [#allocation5], 0
    %s19 = scalar_lea.sflag [#allocation5], 1
    %20 = vsyncpa %s19, 0
    loop: start=0, step=1, limit=4
    $region2: #{tpu_custom_call.1} parent=1 // loop_pre_header
      _
    $region3: #{tpu_custom_call.1} parent=1 // loop_header
      %s22 = sphi 0, %s26
      %p23 = scmp.ge.s32.totalorder %s22, 4
      %s32 = sphi 0, %s34
      %s35 = sphi 0, %s32
      %s36 = sphi 0, %s35
      %s52 = sphi 0, %s36
      %s56 = sphi 0, %s56
      %s58 = sphi 0, %s56
      %s59 = sphi 0, %s58
      %s73 = sphi 0, %s59
      %s77 = sphi 0, %s77
      %s79 = sphi 0, %s77
      %s80 = sphi 0, %s79
      %s94 = sphi 0, %s80
      %s98 = sphi 0, %s98
      %s100 = sphi 0, %s98
      %s101 = sphi 0, %s100
      %s115 = sphi 0, %s101
      %s119 = sphi 0, %s119
      %s121 = sphi 0, %s119
      %s122 = sphi 0, %s121
      %s136 = sphi 0, %s122
      %s140 = sphi 0, %s140
      %s142 = sphi 0, %s140
      %s143 = sphi 0, %s142
      %s157 = sphi 0, %s143
      %s163 = sphi 0, %s165
      %s166 = sphi 0, %s163
      %s167 = sphi 0, %s166
      %s183 = sphi 0, %s167
    $region4: #{tpu_custom_call.1} parent=1 // loop_header_branch
      %25 = sbr.rel (%p23) target = $region8
    $region5: #{tpu_custom_call.1} parent=1 // loop_body
      %s27 = ssub.s32 %s22, 1
      %s28 = ssub.s32 %s22, 2
      %s29 = sadd.s32 %s22, 1
      %s30 = ssub.s32 %s22, %s29
      %p31 = scmp.eq.s32.totalorder %s30, 0
      %s33 = sadd.s32 %s32, 1
      %s34 = scalar_select %p31, %s32, %s33
      %p37 = pneg %p31
      %p38 = scmp.eq.s32.totalorder %s22, 1
      %p39 = por %p37, %p38
      %p40 = scmp.ne.s32.totalorder %s32, %s35
      %p41 = scmp.eq.s32.totalorder %s22, 0
      %p42 = por %p40, %p41
      %p43 = scmp.ne.s32.totalorder %s32, %s35
      %p44 = scmp.eq.s32.totalorder %s27, 1
      %p45 = por %p43, %p44
      %p46 = scmp.ne.s32.totalorder %s35, %s36
      %p47 = scmp.eq.s32.totalorder %s27, 0
      %p48 = por %p46, %p47
      %p49 = scmp.ne.s32.totalorder %s35, %s36
      %p50 = scmp.eq.s32.totalorder %s28, 1
      %p51 = por %p49, %p50
      %p53 = scmp.ne.s32.totalorder %s36, %s52
      %p54 = scmp.eq.s32.totalorder %s28, 0
      %p55 = por %p53, %p54
      %s57 = sadd.s32 %s56, 1
      %p60 = scmp.eq.s32.totalorder %s22, 1
      %p61 = scmp.ne.s32.totalorder %s56, %s58
      %p62 = scmp.eq.s32.totalorder %s22, 0
      %p63 = por %p61, %p62
      %p64 = scmp.ne.s32.totalorder %s56, %s58
      %p65 = scmp.eq.s32.totalorder %s27, 1
      %p66 = por %p64, %p65
      %p67 = scmp.ne.s32.totalorder %s58, %s59
      %p68 = scmp.eq.s32.totalorder %s27, 0
      %p69 = por %p67, %p68
      %p70 = scmp.ne.s32.totalorder %s58, %s59
      %p71 = scmp.eq.s32.totalorder %s28, 1
      %p72 = por %p70, %p71
      %p74 = scmp.ne.s32.totalorder %s59, %s73
      %p75 = scmp.eq.s32.totalorder %s28, 0
      %p76 = por %p74, %p75
      %s78 = sadd.s32 %s77, 1
      %p81 = scmp.eq.s32.totalorder %s22, 1
      %p82 = scmp.ne.s32.totalorder %s77, %s79
      %p83 = scmp.eq.s32.totalorder %s22, 0
      %p84 = por %p82, %p83
      %p85 = scmp.ne.s32.totalorder %s77, %s79
      %p86 = scmp.eq.s32.totalorder %s27, 1
      %p87 = por %p85, %p86
      %p88 = scmp.ne.s32.totalorder %s79, %s80
      %p89 = scmp.eq.s32.totalorder %s27, 0
      %p90 = por %p88, %p89
      %p91 = scmp.ne.s32.totalorder %s79, %s80
      %p92 = scmp.eq.s32.totalorder %s28, 1
      %p93 = por %p91, %p92
      %p95 = scmp.ne.s32.totalorder %s80, %s94
      %p96 = scmp.eq.s32.totalorder %s28, 0
      %p97 = por %p95, %p96
      %s99 = sadd.s32 %s98, 1
      %p102 = scmp.eq.s32.totalorder %s22, 1
      %p103 = scmp.ne.s32.totalorder %s98, %s100
      %p104 = scmp.eq.s32.totalorder %s22, 0
      %p105 = por %p103, %p104
      %p106 = scmp.ne.s32.totalorder %s98, %s100
      %p107 = scmp.eq.s32.totalorder %s27, 1
      %p108 = por %p106, %p107
      %p109 = scmp.ne.s32.totalorder %s100, %s101
      %p110 = scmp.eq.s32.totalorder %s27, 0
      %p111 = por %p109, %p110
      %p112 = scmp.ne.s32.totalorder %s100, %s101
      %p113 = scmp.eq.s32.totalorder %s28, 1
      %p114 = por %p112, %p113
      %p116 = scmp.ne.s32.totalorder %s101, %s115
      %p117 = scmp.eq.s32.totalorder %s28, 0
      %p118 = por %p116, %p117
      %s120 = sadd.s32 %s119, 1
      %p123 = scmp.eq.s32.totalorder %s22, 1
      %p124 = scmp.ne.s32.totalorder %s119, %s121
      %p125 = scmp.eq.s32.totalorder %s22, 0
      %p126 = por %p124, %p125
      %p127 = scmp.ne.s32.totalorder %s119, %s121
      %p128 = scmp.eq.s32.totalorder %s27, 1
      %p129 = por %p127, %p128
      %p130 = scmp.ne.s32.totalorder %s121, %s122
      %p131 = scmp.eq.s32.totalorder %s27, 0
      %p132 = por %p130, %p131
      %p133 = scmp.ne.s32.totalorder %s121, %s122
      %p134 = scmp.eq.s32.totalorder %s28, 1
      %p135 = por %p133, %p134
      %p137 = scmp.ne.s32.totalorder %s122, %s136
      %p138 = scmp.eq.s32.totalorder %s28, 0
      %p139 = por %p137, %p138
      %s141 = sadd.s32 %s140, 1
      %p144 = scmp.eq.s32.totalorder %s22, 1
      %p145 = scmp.ne.s32.totalorder %s140, %s142
      %p146 = scmp.eq.s32.totalorder %s22, 0
      %p147 = por %p145, %p146
      %p148 = scmp.ne.s32.totalorder %s140, %s142
      %p149 = scmp.eq.s32.totalorder %s27, 1
      %p150 = por %p148, %p149
      %p151 = scmp.ne.s32.totalorder %s142, %s143
      %p152 = scmp.eq.s32.totalorder %s27, 0
      %p153 = por %p151, %p152
      %p154 = scmp.ne.s32.totalorder %s142, %s143
      %p155 = scmp.eq.s32.totalorder %s28, 1
      %p156 = por %p154, %p155
      %p158 = scmp.ne.s32.totalorder %s143, %s157
      %p159 = scmp.eq.s32.totalorder %s28, 0
      %p160 = por %p158, %p159
      %s161 = ssub.s32 %s22, %s29
      %p162 = scmp.eq.s32.totalorder %s161, 0
      %s164 = sadd.s32 %s163, 1
      %s165 = scalar_select %p162, %s163, %s164
      %p168 = pneg %p162
      %p169 = scmp.eq.s32.totalorder %s22, 1
      %p170 = por %p168, %p169
      %p171 = scmp.ne.s32.totalorder %s163, %s166
      %p172 = scmp.eq.s32.totalorder %s22, 0
      %p173 = por %p171, %p172
      %p174 = scmp.ne.s32.totalorder %s163, %s166
      %p175 = scmp.eq.s32.totalorder %s27, 1
      %p176 = por %p174, %p175
      %p177 = scmp.ne.s32.totalorder %s166, %s167
      %p178 = scmp.eq.s32.totalorder %s27, 0
      %p179 = por %p177, %p178
      %p180 = scmp.ne.s32.totalorder %s166, %s167
      %p181 = scmp.eq.s32.totalorder %s28, 1
      %p182 = por %p180, %p181
      %p184 = scmp.ne.s32.totalorder %s167, %s183
      %p185 = scmp.eq.s32.totalorder %s28, 0
      %p186 = por %p184, %p185
      %p187 = scmp.le.s32.totalorder 1, %s22
      %p188 = scmp.lt.s32.totalorder %s22, 3
      %p189 = pnand %p187, %p188
      %p190 = pneg %p189
      // Predicated region
      $region9: #{tpu_custom_call.1} parent=5 // pred_check
        _
      $region10: #{tpu_custom_call.1} parent=5 // pred_check_branch
        %192 = sbr.rel (%p189) target = $region12
      $region11: #{tpu_custom_call.1} parent=5 // pred_region
        %s193 = ssub.s32 %s22, 1
        // Predicated region
        $region13: #{tpu_custom_call.1} parent=11 // pred_check
          %p194 = pneg %p69
        $region14: #{tpu_custom_call.1} parent=11 // pred_check_branch
          %196 = sbr.rel (%p194) target = $region16
        $region15: #{tpu_custom_call.1} parent=11 // pred_region
          %s198 = ssub.s32 16, 16
          %199 = vsyncadd [#allocation6], %s198
          %s201 = sshll.u32 %s1, 4
          %s202 = int_to_ptr.vmem [resolvable:$true] %s201
          %204 = dma.vmem_to_smem %s202, 16, [#allocation7], [#allocation6]
        $region16: #{tpu_custom_call.1} parent=11 // pred_fallthru
          _
        // Predicated region
        $region17: #{tpu_custom_call.1} parent=11 // pred_check
          %p205 = pneg %p90
        $region18: #{tpu_custom_call.1} parent=11 // pred_check_branch
          %207 = sbr.rel (%p205) target = $region20
        $region19: #{tpu_custom_call.1} parent=11 // pred_region
          %s209 = ssub.s32 16, 16
          %210 = vsyncadd [#allocation9], %s209
          %s212 = sshll.u32 %s2, 4
          %s213 = int_to_ptr.vmem [resolvable:$true] %s212
          %215 = dma.vmem_to_smem %s213, 16, [#allocation8], [#allocation9]
        $region20: #{tpu_custom_call.1} parent=11 // pred_fallthru
          _
        // Predicated region
        $region21: #{tpu_custom_call.1} parent=11 // pred_check
          %p216 = pneg %p111
        $region22: #{tpu_custom_call.1} parent=11 // pred_check_branch
          %218 = sbr.rel (%p216) target = $region24
        $region23: #{tpu_custom_call.1} parent=11 // pred_region
          %s220 = ssub.s32 16, 16
          %221 = vsyncadd [#allocation9], %s220
          %s223 = sshll.u32 %s3, 4
          %s224 = int_to_ptr.vmem [resolvable:$true] %s223
          %226 = dma.vmem_to_smem %s224, 16, [#allocation10], [#allocation9]
        $region24: #{tpu_custom_call.1} parent=11 // pred_fallthru
          _
        // Predicated region
        $region25: #{tpu_custom_call.1} parent=11 // pred_check
          %p227 = pneg %p132
        $region26: #{tpu_custom_call.1} parent=11 // pred_check_branch
          %229 = sbr.rel (%p227) target = $region28
        $region27: #{tpu_custom_call.1} parent=11 // pred_region
          %s231 = ssub.s32 16, 16
          %232 = vsyncadd [#allocation12], %s231
          %s234 = sshll.u32 %s4, 4
          %s235 = int_to_ptr.vmem [resolvable:$true] %s234
          %237 = dma.vmem_to_smem %s235, 16, [#allocation11], [#allocation12]
        $region28: #{tpu_custom_call.1} parent=11 // pred_fallthru
          _
        // Predicated region
        $region29: #{tpu_custom_call.1} parent=11 // pred_check
          %p238 = pneg %p153
        $region30: #{tpu_custom_call.1} parent=11 // pred_check_branch
          %240 = sbr.rel (%p238) target = $region32
        $region31: #{tpu_custom_call.1} parent=11 // pred_region
          _
        $region32: #{tpu_custom_call.1} parent=11 // pred_fallthru
          _
      $region12: #{tpu_custom_call.1} parent=5 // pred_fallthru
        _
      %p241 = scmp.lt.s32.totalorder %s22, 2
      // Predicated region
      $region33: #{tpu_custom_call.1} parent=5 // pred_check
        %p242 = pneg %p241
      $region34: #{tpu_custom_call.1} parent=5 // pred_check_branch
        %244 = sbr.rel (%p242) target = $region36
      $region35: #{tpu_custom_call.1} parent=5 // pred_region
        // Predicated region
        $region37: #{tpu_custom_call.1} parent=35 // pred_check
          %p245 = pneg %p42
        $region38: #{tpu_custom_call.1} parent=35 // pred_check_branch
          %247 = sbr.rel (%p245) target = $region40
        $region39: #{tpu_custom_call.1} parent=35 // pred_region
          %s248 = sand.u32 %s32, 1
          %s249 = scalar_lea.sflag [#allocation4], %s248
          %s250 = sand.u32 %s32, 1
          %s251 = smul.addr %s250, 16
          %s252 = scalar_lea.vmem [#allocation3], %s251
          %s254 = ssub.s32 256, 256
          %255 = vsyncadd %s249, %s254
          %s256 = smul.addr %s22, 2
          %s257 = smul.addr %s256, 128
          %s258 = scalar_lea.hbm %s0, %s257
          %s260 = sshll.u32 %s252, 4
          %s261 = int_to_ptr.vmem [resolvable:$true] %s260
          %263 = dma.hbm_to_vmem [thread:$0]  %s258, 256, %s261, %s249
        $region40: #{tpu_custom_call.1} parent=35 // pred_fallthru
          _
      $region36: #{tpu_custom_call.1} parent=5 // pred_fallthru
        _
      %p264 = scmp.le.s32.totalorder 1, %s22
      %p265 = scmp.lt.s32.totalorder %s22, 3
      %p266 = pnand %p264, %p265
      %p267 = pneg %p266
      // Predicated region
      $region41: #{tpu_custom_call.1} parent=5 // pred_check
        _
      $region42: #{tpu_custom_call.1} parent=5 // pred_check_branch
        %269 = sbr.rel (%p266) target = $region44
      $region43: #{tpu_custom_call.1} parent=5 // pred_region
        %s270 = ssub.s32 %s22, 1
        %s271 = sand.u32 %s35, 1
        %s272 = scalar_lea.sflag [#allocation4], %s271
        %s273 = sand.u32 %s35, 1
        %s274 = smul.addr %s273, 16
        %s275 = scalar_lea.vmem [#allocation3], %s274
        // Predicated region
        $region45: #{tpu_custom_call.1} parent=43 // pred_check
          %p276 = pneg %p48
        $region46: #{tpu_custom_call.1} parent=43 // pred_check_branch
          %278 = sbr.rel (%p276) target = $region48
        $region47: #{tpu_custom_call.1} parent=43 // pred_region
          %279 = dma.done %s272, 256
        $region48: #{tpu_custom_call.1} parent=43 // pred_fallthru
          _
        // Predicated region
        $region49: #{tpu_custom_call.1} parent=43 // pred_check
          %p280 = pneg %p69
        $region50: #{tpu_custom_call.1} parent=43 // pred_check_branch
          %282 = sbr.rel (%p280) target = $region52
        $region51: #{tpu_custom_call.1} parent=43 // pred_region
          %283 = dma.done [#allocation6], 16
        $region52: #{tpu_custom_call.1} parent=43 // pred_fallthru
          _
        // Predicated region
        $region53: #{tpu_custom_call.1} parent=43 // pred_check
          %p284 = pneg %p90
        $region54: #{tpu_custom_call.1} parent=43 // pred_check_branch
          %286 = sbr.rel (%p284) target = $region56
        $region55: #{tpu_custom_call.1} parent=43 // pred_region
          %287 = dma.done [#allocation9], 16
        $region56: #{tpu_custom_call.1} parent=43 // pred_fallthru
          _
        // Predicated region
        $region57: #{tpu_custom_call.1} parent=43 // pred_check
          %p288 = pneg %p111
        $region58: #{tpu_custom_call.1} parent=43 // pred_check_branch
          %290 = sbr.rel (%p288) target = $region60
        $region59: #{tpu_custom_call.1} parent=43 // pred_region
          %291 = dma.done [#allocation9], 16
        $region60: #{tpu_custom_call.1} parent=43 // pred_fallthru
          _
        // Predicated region
        $region61: #{tpu_custom_call.1} parent=43 // pred_check
          %p292 = pneg %p132
        $region62: #{tpu_custom_call.1} parent=43 // pred_check_branch
          %294 = sbr.rel (%p292) target = $region64
        $region63: #{tpu_custom_call.1} parent=43 // pred_region
          %295 = dma.done [#allocation12], 16
        $region64: #{tpu_custom_call.1} parent=43 // pred_fallthru
          _
        %296 = sfence
        %s297 = sand.u32 %s35, 1
        %s298 = scalar_lea.sflag [#allocation4], %s297
        %s299 = sand.u32 %s35, 1
        %s300 = smul.addr %s299, 16
        %s301 = scalar_lea.vmem [#allocation3], %s300
        %p302 = pneg %p48
        %p303 = pneg %p45
        %p304 = pneg %p69
        %p305 = pneg %p66
        %p306 = pneg %p90
        %p307 = pneg %p87
        %p308 = pneg %p111
        %p309 = pneg %p108
        %p310 = pneg %p132
        %p311 = pneg %p129
        %p312 = pneg %p153
        %p313 = pneg %p150
        %p314 = pneg %p179
        %p315 = pneg %p176
        %s316 = sand.u32 %s166, 1
        %s317 = scalar_lea.sflag [#allocation5], %s316
        %s318 = sand.u32 %s166, 1
        %s319 = smul.addr %s318, 16
        %s320 = scalar_lea.vmem [#allocation13], %s319
        %s321 = sld [smem:[#allocation2]]
        %s322 = smul.u32 0, 2
        %s323 = smul.addr %s322, 8
        %s324 = scalar_lea.vmem %s275, %s323 [#allocation3]
        %v325 = vld [vmem:[%s324] sm:$0xff]
        %v326 = vld [vmem:[%s324 + $0x8] sm:$0xff]
        %v327 = vand.u32 2147483647, %v325
        %vm328 = vcmp.le.f32.partialorder %v327, 0.7853982
        %vm329 = vcmp.lt.s32.totalorder %v325, 0
        %v330 = vand.u32 %v325, 2139095040
        %v331 = vshrl.u32 %v330, 23
        %v332 = vsub.s32 %v331, 127
        %v333 = vand.u32 2147483647, %v325
        %v334 = vand.u32 %v333, 8388607
        %v335 = vor.u32 %v334, 8388608
        %v336 = vsub.s32 0, %v335
        %v337 = vadd.s32 %v332, 1
        %vm338 = vcmp.gt.s32.totalorder %v337, 0
        %v339 = vsel %vm338, %v337, 0
        %v340 = vshrl.u32 %v339, 5
        %v341 = vand.u32 %v339, 31
        %v342 = vsub.s32 32, %v341
        %v343 = vshrl.u32 683565275, %v342
        %v344 = vshll.u32 683565275, %v341
        %v345 = vshrl.u32 2475754826, %v342
        %v346 = vor.u32 %v344, %v345
        %v347 = vshll.u32 2475754826, %v341
        %v348 = vshrl.u32 2131351028, %v342
        %v349 = vor.u32 %v347, %v348
        %v350 = vshll.u32 2131351028, %v341
        %v351 = vshrl.u32 2102212464, %v342
        %v352 = vor.u32 %v350, %v351
        %v353 = vshll.u32 2102212464, %v341
        %v354 = vshrl.u32 920167782, %v342
        %v355 = vor.u32 %v353, %v354
        %v356 = vshll.u32 920167782, %v341
        %v357 = vshrl.u32 1326507024, %v342
        %v358 = vor.u32 %v356, %v357
        %vm359 = vcmp.lt.s32.totalorder %v340, 1
        %vm360 = vcmp.lt.s32.totalorder %v340, 2
        %vm361 = vcmp.lt.s32.totalorder %v340, 3
        %vm362 = vcmp.lt.s32.totalorder %v340, 4
        %v363 = vsel %vm359, %v343, %v346
        %v364 = vsel %vm362, %v352, 2102212464
        %v365 = vsel %vm361, %v349, %v364
        %v366 = vsel %vm360, %v363, %v365
        %v367 = vsel %vm359, %v346, %v349
        %v368 = vsel %vm362, %v355, 920167782
        %v369 = vsel %vm361, %v352, %v368
        %v370 = vsel %vm360, %v367, %v369
        %v371 = vsel %vm359, %v349, %v352
        %v372 = vsel %vm362, %v358, 1326507024
        %v373 = vsel %vm361, %v355, %v372
        %v374 = vsel %vm360, %v371, %v373
        %v375 = vshll.u32 %v335, 8
        %v376 = vmul.u32.u64.compose %v375, %v374
        %v377 = vextract.low.u32 %v376
        %v378 = vextract.high.u32 %v376
        %v379 = vmul.u32.u64.compose %v375, %v370
        %v380 = vextract.low.u32 %v379
        %v381 = vextract.high.u32 %v379
        %v382 = vmul.u32 %v375, %v366
        %v383 = vadd.s32 %v378, %v380
        %vm384 = vc.u32 %v378, %v380
        %v385 = vadd.s32 %v381, 1
        %v386 = vsel %vm384, %v385, %v381
        %v387 = vadd.s32 %v382, %v386
        %v388 = vadd.s32 %v387, 536870912
        %v389 = vshrl.u32 %v388, 30
        %v390 = vshll.u32 %v389, 30
        %v391 = vsub.s32 %v387, %v390
        %vm392 = vcmp.lt.s32.totalorder %v391, 0
        %v393 = vsub.s32 0, %v391
        %v394 = vsel %vm392, %v393, %v391
        %v395 = vclz %v394
        %v396 = vsub.s32 %v395, 2
        %vm397 = vcmp.gt.s32.totalorder 0, %v396
        %v398 = vsel %vm397, 0, %v396
        %v399 = vsub.s32 32, %v398
        %v400 = vshll.u32 %v391, %v398
        %v401 = vshrl.u32 %v383, %v399
        %v402 = vor.u32 %v400, %v401
        %v403 = vsub.s32 4294967266, %v398
        %v404 = vadd.s32 %v403, 127
        %v405 = vshll.u32 %v404, 23
        %v406 = vor.u32 4788187, %v405
        %v407 = vand.u32 2147483647, %v406
        %v409 = vcvt.s32.f32 %v402
        %v410 = vmul.f32 %v409, %v407
        %v411 = vxor.u32 %v410, 2147483648
        %v412 = vsel %vm329, %v411, %v410
        %v413 = vsub.s32 4, %v389
        %v414 = vsel %vm329, %v413, %v389
        %v415 = vsel %vm328, %v325, %v412
        %v416 = vsel %vm328, 0, %v414
        %v417 = vcosq.f32.pop %v415
        %v418 = vsinq.f32.pop %v415
        %vm419 = vweird.f32 %v325
        %v420 = vand.u32 %v416, 3
        %vm421 = vcmp.lt.s32.totalorder %v420, 2
        %vm422 = vcmp.eq.s32.totalorder %v420, 0
        %v423 = vxor.u32 %v418, 2147483648
        %v424 = vsel %vm422, %v417, %v423
        %vm425 = vcmp.eq.s32.totalorder %v420, 2
        %v426 = vxor.u32 %v417, 2147483648
        %v427 = vsel %vm425, %v426, %v418
        %v428 = vsel %vm421, %v424, %v427
        %v429 = vsel %vm419, nan, %v428
        %v430 = vand.u32 2147483647, %v326
        %vm431 = vcmp.le.f32.partialorder %v430, 0.7853982
        %vm432 = vcmp.lt.s32.totalorder %v326, 0
        %v433 = vand.u32 %v326, 2139095040
        %v434 = vshrl.u32 %v433, 23
        %v435 = vsub.s32 %v434, 127
        %v436 = vand.u32 2147483647, %v326
        %v437 = vand.u32 %v436, 8388607
        %v438 = vor.u32 %v437, 8388608
        %v439 = vsub.s32 0, %v438
        %v440 = vadd.s32 %v435, 1
        %vm441 = vcmp.gt.s32.totalorder %v440, 0
        %v442 = vsel %vm441, %v440, 0
        %v443 = vshrl.u32 %v442, 5
        %v444 = vand.u32 %v442, 31
        %v445 = vsub.s32 32, %v444
        %v446 = vshrl.u32 683565275, %v445
        %v447 = vshll.u32 683565275, %v444
        %v448 = vshrl.u32 2475754826, %v445
        %v449 = vor.u32 %v447, %v448
        %v450 = vshll.u32 2475754826, %v444
        %v451 = vshrl.u32 2131351028, %v445
        %v452 = vor.u32 %v450, %v451
        %v453 = vshll.u32 2131351028, %v444
        %v454 = vshrl.u32 2102212464, %v445
        %v455 = vor.u32 %v453, %v454
        %v456 = vshll.u32 2102212464, %v444
        %v457 = vshrl.u32 920167782, %v445
        %v458 = vor.u32 %v456, %v457
        %v459 = vshll.u32 920167782, %v444
        %v460 = vshrl.u32 1326507024, %v445
        %v461 = vor.u32 %v459, %v460
        %vm462 = vcmp.lt.s32.totalorder %v443, 1
        %vm463 = vcmp.lt.s32.totalorder %v443, 2
        %vm464 = vcmp.lt.s32.totalorder %v443, 3
        %vm465 = vcmp.lt.s32.totalorder %v443, 4
        %v466 = vsel %vm462, %v446, %v449
        %v467 = vsel %vm465, %v455, 2102212464
        %v468 = vsel %vm464, %v452, %v467
        %v469 = vsel %vm463, %v466, %v468
        %v470 = vsel %vm462, %v449, %v452
        %v471 = vsel %vm465, %v458, 920167782
        %v472 = vsel %vm464, %v455, %v471
        %v473 = vsel %vm463, %v470, %v472
        %v474 = vsel %vm462, %v452, %v455
        %v475 = vsel %vm465, %v461, 1326507024
        %v476 = vsel %vm464, %v458, %v475
        %v477 = vsel %vm463, %v474, %v476
        %v478 = vshll.u32 %v438, 8
        %v479 = vmul.u32.u64.compose %v478, %v477
        %v480 = vextract.low.u32 %v479
        %v481 = vextract.high.u32 %v479
        %v482 = vmul.u32.u64.compose %v478, %v473
        %v483 = vextract.low.u32 %v482
        %v484 = vextract.high.u32 %v482
        %v485 = vmul.u32 %v478, %v469
        %v486 = vadd.s32 %v481, %v483
        %vm487 = vc.u32 %v481, %v483
        %v488 = vadd.s32 %v484, 1
        %v489 = vsel %vm487, %v488, %v484
        %v490 = vadd.s32 %v485, %v489
        %v491 = vadd.s32 %v490, 536870912
        %v492 = vshrl.u32 %v491, 30
        %v493 = vshll.u32 %v492, 30
        %v494 = vsub.s32 %v490, %v493
        %vm495 = vcmp.lt.s32.totalorder %v494, 0
        %v496 = vsub.s32 0, %v494
        %v497 = vsel %vm495, %v496, %v494
        %v498 = vclz %v497
        %v499 = vsub.s32 %v498, 2
        %vm500 = vcmp.gt.s32.totalorder 0, %v499
        %v501 = vsel %vm500, 0, %v499
        %v502 = vsub.s32 32, %v501
        %v503 = vshll.u32 %v494, %v501
        %v504 = vshrl.u32 %v486, %v502
        %v505 = vor.u32 %v503, %v504
        %v506 = vsub.s32 4294967266, %v501
        %v507 = vadd.s32 %v506, 127
        %v508 = vshll.u32 %v507, 23
        %v509 = vor.u32 4788187, %v508
        %v510 = vand.u32 2147483647, %v509
        %v512 = vcvt.s32.f32 %v505
        %v513 = vmul.f32 %v512, %v510
        %v514 = vxor.u32 %v513, 2147483648
        %v515 = vsel %vm432, %v514, %v513
        %v516 = vsub.s32 4, %v492
        %v517 = vsel %vm432, %v516, %v492
        %v518 = vsel %vm431, %v326, %v515
        %v519 = vsel %vm431, 0, %v517
        %v520 = vcosq.f32.pop %v518
        %v521 = vsinq.f32.pop %v518
        %vm522 = vweird.f32 %v326
        %v523 = vand.u32 %v519, 3
        %vm524 = vcmp.lt.s32.totalorder %v523, 2
        %vm525 = vcmp.eq.s32.totalorder %v523, 0
        %v526 = vxor.u32 %v521, 2147483648
        %v527 = vsel %vm525, %v520, %v526
        %vm528 = vcmp.eq.s32.totalorder %v523, 2
        %v529 = vxor.u32 %v520, 2147483648
        %v530 = vsel %vm528, %v529, %v521
        %v531 = vsel %vm524, %v527, %v530
        %v532 = vsel %vm522, nan, %v531
        %v533 = vand.u32 2147483647, %v325
        %vm534 = vcmp.le.f32.partialorder %v533, 0.7853982
        %vm535 = vcmp.lt.s32.totalorder %v325, 0
        %v536 = vand.u32 %v325, 2139095040
        %v537 = vshrl.u32 %v536, 23
        %v538 = vsub.s32 %v537, 127
        %v539 = vand.u32 2147483647, %v325
        %v540 = vand.u32 %v539, 8388607
        %v541 = vor.u32 %v540, 8388608
        %v542 = vsub.s32 0, %v541
        %v543 = vadd.s32 %v538, 1
        %vm544 = vcmp.gt.s32.totalorder %v543, 0
        %v545 = vsel %vm544, %v543, 0
        %v546 = vshrl.u32 %v545, 5
        %v547 = vand.u32 %v545, 31
        %v548 = vsub.s32 32, %v547
        %v549 = vshrl.u32 683565275, %v548
        %v550 = vshll.u32 683565275, %v547
        %v551 = vshrl.u32 2475754826, %v548
        %v552 = vor.u32 %v550, %v551
        %v553 = vshll.u32 2475754826, %v547
        %v554 = vshrl.u32 2131351028, %v548
        %v555 = vor.u32 %v553, %v554
        %v556 = vshll.u32 2131351028, %v547
        %v557 = vshrl.u32 2102212464, %v548
        %v558 = vor.u32 %v556, %v557
        %v559 = vshll.u32 2102212464, %v547
        %v560 = vshrl.u32 920167782, %v548
        %v561 = vor.u32 %v559, %v560
        %v562 = vshll.u32 920167782, %v547
        %v563 = vshrl.u32 1326507024, %v548
        %v564 = vor.u32 %v562, %v563
        %vm565 = vcmp.lt.s32.totalorder %v546, 1
        %vm566 = vcmp.lt.s32.totalorder %v546, 2
        %vm567 = vcmp.lt.s32.totalorder %v546, 3
        %vm568 = vcmp.lt.s32.totalorder %v546, 4
        %v569 = vsel %vm565, %v549, %v552
        %v570 = vsel %vm568, %v558, 2102212464
        %v571 = vsel %vm567, %v555, %v570
        %v572 = vsel %vm566, %v569, %v571
        %v573 = vsel %vm565, %v552, %v555
        %v574 = vsel %vm568, %v561, 920167782
        %v575 = vsel %vm567, %v558, %v574
        %v576 = vsel %vm566, %v573, %v575
        %v577 = vsel %vm565, %v555, %v558
        %v578 = vsel %vm568, %v564, 1326507024
        %v579 = vsel %vm567, %v561, %v578
        %v580 = vsel %vm566, %v577, %v579
        %v581 = vshll.u32 %v541, 8
        %v582 = vmul.u32.u64.compose %v581, %v580
        %v583 = vextract.low.u32 %v582
        %v584 = vextract.high.u32 %v582
        %v585 = vmul.u32.u64.compose %v581, %v576
        %v586 = vextract.low.u32 %v585
        %v587 = vextract.high.u32 %v585
        %v588 = vmul.u32 %v581, %v572
        %v589 = vadd.s32 %v584, %v586
        %vm590 = vc.u32 %v584, %v586
        %v591 = vadd.s32 %v587, 1
        %v592 = vsel %vm590, %v591, %v587
        %v593 = vadd.s32 %v588, %v592
        %v594 = vadd.s32 %v593, 536870912
        %v595 = vshrl.u32 %v594, 30
        %v596 = vshll.u32 %v595, 30
        %v597 = vsub.s32 %v593, %v596
        %vm598 = vcmp.lt.s32.totalorder %v597, 0
        %v599 = vsub.s32 0, %v597
        %v600 = vsel %vm598, %v599, %v597
        %v601 = vclz %v600
        %v602 = vsub.s32 %v601, 2
        %vm603 = vcmp.gt.s32.totalorder 0, %v602
        %v604 = vsel %vm603, 0, %v602
        %v605 = vsub.s32 32, %v604
        %v606 = vshll.u32 %v597, %v604
        %v607 = vshrl.u32 %v589, %v605
        %v608 = vor.u32 %v606, %v607
        %v609 = vsub.s32 4294967266, %v604
        %v610 = vadd.s32 %v609, 127
        %v611 = vshll.u32 %v610, 23
        %v612 = vor.u32 4788187, %v611
        %v613 = vand.u32 2147483647, %v612
        %v615 = vcvt.s32.f32 %v608
        %v616 = vmul.f32 %v615, %v613
        %v617 = vxor.u32 %v616, 2147483648
        %v618 = vsel %vm535, %v617, %v616
        %v619 = vsub.s32 4, %v595
        %v620 = vsel %vm535, %v619, %v595
        %v621 = vsel %vm534, %v325, %v618
        %v622 = vsel %vm534, 0, %v620
        %v623 = vcosq.f32.pop %v621
        %v624 = vsinq.f32.pop %v621
        %vm625 = vweird.f32 %v325
        %v626 = vadd.s32 %v622, 3
        %v627 = vand.u32 %v626, 3
        %vm628 = vcmp.lt.s32.totalorder %v627, 2
        %vm629 = vcmp.eq.s32.totalorder %v627, 0
        %v630 = vxor.u32 %v624, 2147483648
        %v631 = vsel %vm629, %v623, %v630
        %vm632 = vcmp.eq.s32.totalorder %v627, 2
        %v633 = vxor.u32 %v623, 2147483648
        %v634 = vsel %vm632, %v633, %v624
        %v635 = vsel %vm628, %v631, %v634
        %v636 = vsel %vm625, nan, %v635
        %v637 = vand.u32 2147483647, %v326
        %vm638 = vcmp.le.f32.partialorder %v637, 0.7853982
        %vm639 = vcmp.lt.s32.totalorder %v326, 0
        %v640 = vand.u32 %v326, 2139095040
        %v641 = vshrl.u32 %v640, 23
        %v642 = vsub.s32 %v641, 127
        %v643 = vand.u32 2147483647, %v326
        %v644 = vand.u32 %v643, 8388607
        %v645 = vor.u32 %v644, 8388608
        %v646 = vsub.s32 0, %v645
        %v647 = vadd.s32 %v642, 1
        %vm648 = vcmp.gt.s32.totalorder %v647, 0
        %v649 = vsel %vm648, %v647, 0
        %v650 = vshrl.u32 %v649, 5
        %v651 = vand.u32 %v649, 31
        %v652 = vsub.s32 32, %v651
        %v653 = vshrl.u32 683565275, %v652
        %v654 = vshll.u32 683565275, %v651
        %v655 = vshrl.u32 2475754826, %v652
        %v656 = vor.u32 %v654, %v655
        %v657 = vshll.u32 2475754826, %v651
        %v658 = vshrl.u32 2131351028, %v652
        %v659 = vor.u32 %v657, %v658
        %v660 = vshll.u32 2131351028, %v651
        %v661 = vshrl.u32 2102212464, %v652
        %v662 = vor.u32 %v660, %v661
        %v663 = vshll.u32 2102212464, %v651
        %v664 = vshrl.u32 920167782, %v652
        %v665 = vor.u32 %v663, %v664
        %v666 = vshll.u32 920167782, %v651
        %v667 = vshrl.u32 1326507024, %v652
        %v668 = vor.u32 %v666, %v667
        %vm669 = vcmp.lt.s32.totalorder %v650, 1
        %vm670 = vcmp.lt.s32.totalorder %v650, 2
        %vm671 = vcmp.lt.s32.totalorder %v650, 3
        %vm672 = vcmp.lt.s32.totalorder %v650, 4
        %v673 = vsel %vm669, %v653, %v656
        %v674 = vsel %vm672, %v662, 2102212464
        %v675 = vsel %vm671, %v659, %v674
        %v676 = vsel %vm670, %v673, %v675
        %v677 = vsel %vm669, %v656, %v659
        %v678 = vsel %vm672, %v665, 920167782
        %v679 = vsel %vm671, %v662, %v678
        %v680 = vsel %vm670, %v677, %v679
        %v681 = vsel %vm669, %v659, %v662
        %v682 = vsel %vm672, %v668, 1326507024
        %v683 = vsel %vm671, %v665, %v682
        %v684 = vsel %vm670, %v681, %v683
        %v685 = vshll.u32 %v645, 8
        %v686 = vmul.u32.u64.compose %v685, %v684
        %v687 = vextract.low.u32 %v686
        %v688 = vextract.high.u32 %v686
        %v689 = vmul.u32.u64.compose %v685, %v680
        %v690 = vextract.low.u32 %v689
        %v691 = vextract.high.u32 %v689
        %v692 = vmul.u32 %v685, %v676
        %v693 = vadd.s32 %v688, %v690
        %vm694 = vc.u32 %v688, %v690
        %v695 = vadd.s32 %v691, 1
        %v696 = vsel %vm694, %v695, %v691
        %v697 = vadd.s32 %v692, %v696
        %v698 = vadd.s32 %v697, 536870912
        %v699 = vshrl.u32 %v698, 30
        %v700 = vshll.u32 %v699, 30
        %v701 = vsub.s32 %v697, %v700
        %vm702 = vcmp.lt.s32.totalorder %v701, 0
        %v703 = vsub.s32 0, %v701
        %v704 = vsel %vm702, %v703, %v701
        %v705 = vclz %v704
        %v706 = vsub.s32 %v705, 2
        %vm707 = vcmp.gt.s32.totalorder 0, %v706
        %v708 = vsel %vm707, 0, %v706
        %v709 = vsub.s32 32, %v708
        %v710 = vshll.u32 %v701, %v708
        %v711 = vshrl.u32 %v693, %v709
        %v712 = vor.u32 %v710, %v711
        %v713 = vsub.s32 4294967266, %v708
        %v714 = vadd.s32 %v713, 127
        %v715 = vshll.u32 %v714, 23
        %v716 = vor.u32 4788187, %v715
        %v717 = vand.u32 2147483647, %v716
        %v719 = vcvt.s32.f32 %v712
        %v720 = vmul.f32 %v719, %v717
        %v721 = vxor.u32 %v720, 2147483648
        %v722 = vsel %vm639, %v721, %v720
        %v723 = vsub.s32 4, %v699
        %v724 = vsel %vm639, %v723, %v699
        %v725 = vsel %vm638, %v326, %v722
        %v726 = vsel %vm638, 0, %v724
        %v727 = vcosq.f32.pop %v725
        %v728 = vsinq.f32.pop %v725
        %vm729 = vweird.f32 %v326
        %v730 = vadd.s32 %v726, 3
        %v731 = vand.u32 %v730, 3
        %vm732 = vcmp.lt.s32.totalorder %v731, 2
        %vm733 = vcmp.eq.s32.totalorder %v731, 0
        %v734 = vxor.u32 %v728, 2147483648
        %v735 = vsel %vm733, %v727, %v734
        %vm736 = vcmp.eq.s32.totalorder %v731, 2
        %v737 = vxor.u32 %v727, 2147483648
        %v738 = vsel %vm736, %v737, %v728
        %v739 = vsel %vm732, %v735, %v738
        %v740 = vsel %vm729, nan, %v739
        %s741 = sld [smem:[#allocation7]]
        %v742 = vstv %s741
        %v743 = vmul.f32 %v742, %v429
        %v744 = vmul.f32 %v742, %v532
        %s745 = sld [smem:[#allocation8]]
        %v746 = vstv %s745
        %v747 = vmul.f32 %v746, %v636
        %v748 = vmul.f32 %v746, %v740
        %v749 = vadd.f32 %v743, %v747
        %v750 = vadd.f32 %v744, %v748
        %s751 = sld [smem:[#allocation10]]
        %v752 = vstv %s751
        %v753 = vadd.f32 %v749, %v752
        %v754 = vadd.f32 %v750, %v752
        %v755 = vtanh.pop %v753
        %v756 = vtanh.pop %v754
        %s757 = sld [smem:[#allocation11]]
        %v758 = vstv %s757
        %v759 = vmul.f32 %v758, %v755
        %v760 = vmul.f32 %v758, %v756
        %v761 = vadd.f32 %v759, 0.0
        %v762 = vadd.f32 %v760, 0.0
        %s763 = sld [smem:[#allocation7 + $0x1]]
        %v764 = vstv %s763
        %v765 = vmul.f32 %v764, %v429
        %v766 = vmul.f32 %v764, %v532
        %s767 = sld [smem:[#allocation8 + $0x1]]
        %v768 = vstv %s767
        %v769 = vmul.f32 %v768, %v636
        %v770 = vmul.f32 %v768, %v740
        %v771 = vadd.f32 %v765, %v769
        %v772 = vadd.f32 %v766, %v770
        %s773 = sld [smem:[#allocation10 + $0x1]]
        %v774 = vstv %s773
        %v775 = vadd.f32 %v771, %v774
        %v776 = vadd.f32 %v772, %v774
        %v777 = vtanh.pop %v775
        %v778 = vtanh.pop %v776
        %s779 = sld [smem:[#allocation11 + $0x1]]
        %v780 = vstv %s779
        %v781 = vmul.f32 %v780, %v777
        %v782 = vmul.f32 %v780, %v778
        %v783 = vadd.f32 %v781, 0.0
        %v784 = vadd.f32 %v782, 0.0
        %s785 = sld [smem:[#allocation7 + $0x2]]
        %v786 = vstv %s785
        %v787 = vmul.f32 %v786, %v429
        %v788 = vmul.f32 %v786, %v532
        %s789 = sld [smem:[#allocation8 + $0x2]]
        %v790 = vstv %s789
        %v791 = vmul.f32 %v790, %v636
        %v792 = vmul.f32 %v790, %v740
        %v793 = vadd.f32 %v787, %v791
        %v794 = vadd.f32 %v788, %v792
        %s795 = sld [smem:[#allocation10 + $0x2]]
        %v796 = vstv %s795
        %v797 = vadd.f32 %v793, %v796
        %v798 = vadd.f32 %v794, %v796
        %v799 = vtanh.pop %v797
        %v800 = vtanh.pop %v798
        %s801 = sld [smem:[#allocation11 + $0x2]]
        %v802 = vstv %s801
        %v803 = vmul.f32 %v802, %v799
        %v804 = vmul.f32 %v802, %v800
        %v805 = vadd.f32 %v803, 0.0
        %v806 = vadd.f32 %v804, 0.0
        %s807 = sld [smem:[#allocation7 + $0x3]]
        %v808 = vstv %s807
        %v809 = vmul.f32 %v808, %v429
        %v810 = vmul.f32 %v808, %v532
        %s811 = sld [smem:[#allocation8 + $0x3]]
        %v812 = vstv %s811
        %v813 = vmul.f32 %v812, %v636
        %v814 = vmul.f32 %v812, %v740
        %v815 = vadd.f32 %v809, %v813
        %v816 = vadd.f32 %v810, %v814
        %s817 = sld [smem:[#allocation10 + $0x3]]
        %v818 = vstv %s817
        %v819 = vadd.f32 %v815, %v818
        %v820 = vadd.f32 %v816, %v818
        %v821 = vtanh.pop %v819
        %v822 = vtanh.pop %v820
        %s823 = sld [smem:[#allocation11 + $0x3]]
        %v824 = vstv %s823
        %v825 = vmul.f32 %v824, %v821
        %v826 = vmul.f32 %v824, %v822
        %v827 = vadd.f32 %v825, 0.0
        %v828 = vadd.f32 %v826, 0.0
        %s829 = sld [smem:[#allocation7 + $0x4]]
        %v830 = vstv %s829
        %v831 = vmul.f32 %v830, %v429
        %v832 = vmul.f32 %v830, %v532
        %s833 = sld [smem:[#allocation8 + $0x4]]
        %v834 = vstv %s833
        %v835 = vmul.f32 %v834, %v636
        %v836 = vmul.f32 %v834, %v740
        %v837 = vadd.f32 %v831, %v835
        %v838 = vadd.f32 %v832, %v836
        %s839 = sld [smem:[#allocation10 + $0x4]]
        %v840 = vstv %s839
        %v841 = vadd.f32 %v837, %v840
        %v842 = vadd.f32 %v838, %v840
        %v843 = vtanh.pop %v841
        %v844 = vtanh.pop %v842
        %s845 = sld [smem:[#allocation11 + $0x4]]
        %v846 = vstv %s845
        %v847 = vmul.f32 %v846, %v843
        %v848 = vmul.f32 %v846, %v844
        %v849 = vadd.f32 %v761, %v847
        %v850 = vadd.f32 %v762, %v848
        %s851 = sld [smem:[#allocation7 + $0x5]]
        %v852 = vstv %s851
        %v853 = vmul.f32 %v852, %v429
        %v854 = vmul.f32 %v852, %v532
        %s855 = sld [smem:[#allocation8 + $0x5]]
        %v856 = vstv %s855
        %v857 = vmul.f32 %v856, %v636
        %v858 = vmul.f32 %v856, %v740
        %v859 = vadd.f32 %v853, %v857
        %v860 = vadd.f32 %v854, %v858
        %s861 = sld [smem:[#allocation10 + $0x5]]
        %v862 = vstv %s861
        %v863 = vadd.f32 %v859, %v862
        %v864 = vadd.f32 %v860, %v862
        %v865 = vtanh.pop %v863
        %v866 = vtanh.pop %v864
        %s867 = sld [smem:[#allocation11 + $0x5]]
        %v868 = vstv %s867
        %v869 = vmul.f32 %v868, %v865
        %v870 = vmul.f32 %v868, %v866
        %v871 = vadd.f32 %v783, %v869
        %v872 = vadd.f32 %v784, %v870
        %s873 = sld [smem:[#allocation7 + $0x6]]
        %v874 = vstv %s873
        %v875 = vmul.f32 %v874, %v429
        %v876 = vmul.f32 %v874, %v532
        %s877 = sld [smem:[#allocation8 + $0x6]]
        %v878 = vstv %s877
        %v879 = vmul.f32 %v878, %v636
        %v880 = vmul.f32 %v878, %v740
        %v881 = vadd.f32 %v875, %v879
        %v882 = vadd.f32 %v876, %v880
        %s883 = sld [smem:[#allocation10 + $0x6]]
        %v884 = vstv %s883
        %v885 = vadd.f32 %v881, %v884
        %v886 = vadd.f32 %v882, %v884
        %v887 = vtanh.pop %v885
        %v888 = vtanh.pop %v886
        %s889 = sld [smem:[#allocation11 + $0x6]]
        %v890 = vstv %s889
        %v891 = vmul.f32 %v890, %v887
        %v892 = vmul.f32 %v890, %v888
        %v893 = vadd.f32 %v805, %v891
        %v894 = vadd.f32 %v806, %v892
        %s895 = sld [smem:[#allocation7 + $0x7]]
        %v896 = vstv %s895
        %v897 = vmul.f32 %v896, %v429
        %v898 = vmul.f32 %v896, %v532
        %s899 = sld [smem:[#allocation8 + $0x7]]
        %v900 = vstv %s899
        %v901 = vmul.f32 %v900, %v636
        %v902 = vmul.f32 %v900, %v740
        %v903 = vadd.f32 %v897, %v901
        %v904 = vadd.f32 %v898, %v902
        %s905 = sld [smem:[#allocation10 + $0x7]]
        %v906 = vstv %s905
        %v907 = vadd.f32 %v903, %v906
        %v908 = vadd.f32 %v904, %v906
        %v909 = vtanh.pop %v907
        %v910 = vtanh.pop %v908
        %s911 = sld [smem:[#allocation11 + $0x7]]
        %v912 = vstv %s911
        %v913 = vmul.f32 %v912, %v909
        %v914 = vmul.f32 %v912, %v910
        %v915 = vadd.f32 %v827, %v913
        %v916 = vadd.f32 %v828, %v914
        %s917 = sld [smem:[#allocation7 + $0x8]]
        %v918 = vstv %s917
        %v919 = vmul.f32 %v918, %v429
        %v920 = vmul.f32 %v918, %v532
        %s921 = sld [smem:[#allocation8 + $0x8]]
        %v922 = vstv %s921
        %v923 = vmul.f32 %v922, %v636
        %v924 = vmul.f32 %v922, %v740
        %v925 = vadd.f32 %v919, %v923
        %v926 = vadd.f32 %v920, %v924
        %s927 = sld [smem:[#allocation10 + $0x8]]
        %v928 = vstv %s927
        %v929 = vadd.f32 %v925, %v928
        %v930 = vadd.f32 %v926, %v928
        %v931 = vtanh.pop %v929
        %v932 = vtanh.pop %v930
        %s933 = sld [smem:[#allocation11 + $0x8]]
        %v934 = vstv %s933
        %v935 = vmul.f32 %v934, %v931
        %v936 = vmul.f32 %v934, %v932
        %v937 = vadd.f32 %v849, %v935
        %v938 = vadd.f32 %v850, %v936
        %s939 = sld [smem:[#allocation7 + $0x9]]
        %v940 = vstv %s939
        %v941 = vmul.f32 %v940, %v429
        %v942 = vmul.f32 %v940, %v532
        %s943 = sld [smem:[#allocation8 + $0x9]]
        %v944 = vstv %s943
        %v945 = vmul.f32 %v944, %v636
        %v946 = vmul.f32 %v944, %v740
        %v947 = vadd.f32 %v941, %v945
        %v948 = vadd.f32 %v942, %v946
        %s949 = sld [smem:[#allocation10 + $0x9]]
        %v950 = vstv %s949
        %v951 = vadd.f32 %v947, %v950
        %v952 = vadd.f32 %v948, %v950
        %v953 = vtanh.pop %v951
        %v954 = vtanh.pop %v952
        %s955 = sld [smem:[#allocation11 + $0x9]]
        %v956 = vstv %s955
        %v957 = vmul.f32 %v956, %v953
        %v958 = vmul.f32 %v956, %v954
        %v959 = vadd.f32 %v871, %v957
        %v960 = vadd.f32 %v872, %v958
        %s961 = sld [smem:[#allocation7 + $0xa]]
        %v962 = vstv %s961
        %v963 = vmul.f32 %v962, %v429
        %v964 = vmul.f32 %v962, %v532
        %s965 = sld [smem:[#allocation8 + $0xa]]
        %v966 = vstv %s965
        %v967 = vmul.f32 %v966, %v636
        %v968 = vmul.f32 %v966, %v740
        %v969 = vadd.f32 %v963, %v967
        %v970 = vadd.f32 %v964, %v968
        %s971 = sld [smem:[#allocation10 + $0xa]]
        %v972 = vstv %s971
        %v973 = vadd.f32 %v969, %v972
        %v974 = vadd.f32 %v970, %v972
        %v975 = vtanh.pop %v973
        %v976 = vtanh.pop %v974
        %s977 = sld [smem:[#allocation11 + $0xa]]
        %v978 = vstv %s977
        %v979 = vmul.f32 %v978, %v975
        %v980 = vmul.f32 %v978, %v976
        %v981 = vadd.f32 %v893, %v979
        %v982 = vadd.f32 %v894, %v980
        %s983 = sld [smem:[#allocation7 + $0xb]]
        %v984 = vstv %s983
        %v985 = vmul.f32 %v984, %v429
        %v986 = vmul.f32 %v984, %v532
        %s987 = sld [smem:[#allocation8 + $0xb]]
        %v988 = vstv %s987
        %v989 = vmul.f32 %v988, %v636
        %v990 = vmul.f32 %v988, %v740
        %v991 = vadd.f32 %v985, %v989
        %v992 = vadd.f32 %v986, %v990
        %s993 = sld [smem:[#allocation10 + $0xb]]
        %v994 = vstv %s993
        %v995 = vadd.f32 %v991, %v994
        %v996 = vadd.f32 %v992, %v994
        %v997 = vtanh.pop %v995
        %v998 = vtanh.pop %v996
        %s999 = sld [smem:[#allocation11 + $0xb]]
        %v1000 = vstv %s999
        %v1001 = vmul.f32 %v1000, %v997
        %v1002 = vmul.f32 %v1000, %v998
        %v1003 = vadd.f32 %v915, %v1001
        %v1004 = vadd.f32 %v916, %v1002
        %s1005 = sld [smem:[#allocation7 + $0xc]]
        %v1006 = vstv %s1005
        %v1007 = vmul.f32 %v1006, %v429
        %v1008 = vmul.f32 %v1006, %v532
        %s1009 = sld [smem:[#allocation8 + $0xc]]
        %v1010 = vstv %s1009
        %v1011 = vmul.f32 %v1010, %v636
        %v1012 = vmul.f32 %v1010, %v740
        %v1013 = vadd.f32 %v1007, %v1011
        %v1014 = vadd.f32 %v1008, %v1012
        %s1015 = sld [smem:[#allocation10 + $0xc]]
        %v1016 = vstv %s1015
        %v1017 = vadd.f32 %v1013, %v1016
        %v1018 = vadd.f32 %v1014, %v1016
        %v1019 = vtanh.pop %v1017
        %v1020 = vtanh.pop %v1018
        %s1021 = sld [smem:[#allocation11 + $0xc]]
        %v1022 = vstv %s1021
        %v1023 = vmul.f32 %v1022, %v1019
        %v1024 = vmul.f32 %v1022, %v1020
        %v1025 = vadd.f32 %v937, %v1023
        %v1026 = vadd.f32 %v938, %v1024
        %s1027 = sld [smem:[#allocation7 + $0xd]]
        %v1028 = vstv %s1027
        %v1029 = vmul.f32 %v1028, %v429
        %v1030 = vmul.f32 %v1028, %v532
        %s1031 = sld [smem:[#allocation8 + $0xd]]
        %v1032 = vstv %s1031
        %v1033 = vmul.f32 %v1032, %v636
        %v1034 = vmul.f32 %v1032, %v740
        %v1035 = vadd.f32 %v1029, %v1033
        %v1036 = vadd.f32 %v1030, %v1034
        %s1037 = sld [smem:[#allocation10 + $0xd]]
        %v1038 = vstv %s1037
        %v1039 = vadd.f32 %v1035, %v1038
        %v1040 = vadd.f32 %v1036, %v1038
        %v1041 = vtanh.pop %v1039
        %v1042 = vtanh.pop %v1040
        %s1043 = sld [smem:[#allocation11 + $0xd]]
        %v1044 = vstv %s1043
        %v1045 = vmul.f32 %v1044, %v1041
        %v1046 = vmul.f32 %v1044, %v1042
        %v1047 = vadd.f32 %v959, %v1045
        %v1048 = vadd.f32 %v960, %v1046
        %s1049 = sld [smem:[#allocation7 + $0xe]]
        %v1050 = vstv %s1049
        %v1051 = vmul.f32 %v1050, %v429
        %v1052 = vmul.f32 %v1050, %v532
        %s1053 = sld [smem:[#allocation8 + $0xe]]
        %v1054 = vstv %s1053
        %v1055 = vmul.f32 %v1054, %v636
        %v1056 = vmul.f32 %v1054, %v740
        %v1057 = vadd.f32 %v1051, %v1055
        %v1058 = vadd.f32 %v1052, %v1056
        %s1059 = sld [smem:[#allocation10 + $0xe]]
        %v1060 = vstv %s1059
        %v1061 = vadd.f32 %v1057, %v1060
        %v1062 = vadd.f32 %v1058, %v1060
        %v1063 = vtanh.pop %v1061
        %v1064 = vtanh.pop %v1062
        %s1065 = sld [smem:[#allocation11 + $0xe]]
        %v1066 = vstv %s1065
        %v1067 = vmul.f32 %v1066, %v1063
        %v1068 = vmul.f32 %v1066, %v1064
        %v1069 = vadd.f32 %v981, %v1067
        %v1070 = vadd.f32 %v982, %v1068
        %s1071 = sld [smem:[#allocation7 + $0xf]]
        %v1072 = vstv %s1071
        %v1073 = vmul.f32 %v1072, %v429
        %v1074 = vmul.f32 %v1072, %v532
        %s1075 = sld [smem:[#allocation8 + $0xf]]
        %v1076 = vstv %s1075
        %v1077 = vmul.f32 %v1076, %v636
        %v1078 = vmul.f32 %v1076, %v740
        %v1079 = vadd.f32 %v1073, %v1077
        %v1080 = vadd.f32 %v1074, %v1078
        %s1081 = sld [smem:[#allocation10 + $0xf]]
        %v1082 = vstv %s1081
        %v1083 = vadd.f32 %v1079, %v1082
        %v1084 = vadd.f32 %v1080, %v1082
        %v1085 = vtanh.pop %v1083
        %v1086 = vtanh.pop %v1084
        %s1087 = sld [smem:[#allocation11 + $0xf]]
        %v1088 = vstv %s1087
        %v1089 = vmul.f32 %v1088, %v1085
        %v1090 = vmul.f32 %v1088, %v1086
        %v1091 = vadd.f32 %v1003, %v1089
        %v1092 = vadd.f32 %v1004, %v1090
        %s1093 = sld [smem:[#allocation7 + $0x10]]
        %v1094 = vstv %s1093
        %v1095 = vmul.f32 %v1094, %v429
        %v1096 = vmul.f32 %v1094, %v532
        %s1097 = sld [smem:[#allocation8 + $0x10]]
        %v1098 = vstv %s1097
        %v1099 = vmul.f32 %v1098, %v636
        %v1100 = vmul.f32 %v1098, %v740
        %v1101 = vadd.f32 %v1095, %v1099
        %v1102 = vadd.f32 %v1096, %v1100
        %s1103 = sld [smem:[#allocation10 + $0x10]]
        %v1104 = vstv %s1103
        %v1105 = vadd.f32 %v1101, %v1104
        %v1106 = vadd.f32 %v1102, %v1104
        %v1107 = vtanh.pop %v1105
        %v1108 = vtanh.pop %v1106
        %s1109 = sld [smem:[#allocation11 + $0x10]]
        %v1110 = vstv %s1109
        %v1111 = vmul.f32 %v1110, %v1107
        %v1112 = vmul.f32 %v1110, %v1108
        %v1113 = vadd.f32 %v1025, %v1111
        %v1114 = vadd.f32 %v1026, %v1112
        %s1115 = sld [smem:[#allocation7 + $0x11]]
        %v1116 = vstv %s1115
        %v1117 = vmul.f32 %v1116, %v429
        %v1118 = vmul.f32 %v1116, %v532
        %s1119 = sld [smem:[#allocation8 + $0x11]]
        %v1120 = vstv %s1119
        %v1121 = vmul.f32 %v1120, %v636
        %v1122 = vmul.f32 %v1120, %v740
        %v1123 = vadd.f32 %v1117, %v1121
        %v1124 = vadd.f32 %v1118, %v1122
        %s1125 = sld [smem:[#allocation10 + $0x11]]
        %v1126 = vstv %s1125
        %v1127 = vadd.f32 %v1123, %v1126
        %v1128 = vadd.f32 %v1124, %v1126
        %v1129 = vtanh.pop %v1127
        %v1130 = vtanh.pop %v1128
        %s1131 = sld [smem:[#allocation11 + $0x11]]
        %v1132 = vstv %s1131
        %v1133 = vmul.f32 %v1132, %v1129
        %v1134 = vmul.f32 %v1132, %v1130
        %v1135 = vadd.f32 %v1047, %v1133
        %v1136 = vadd.f32 %v1048, %v1134
        %s1137 = sld [smem:[#allocation7 + $0x12]]
        %v1138 = vstv %s1137
        %v1139 = vmul.f32 %v1138, %v429
        %v1140 = vmul.f32 %v1138, %v532
        %s1141 = sld [smem:[#allocation8 + $0x12]]
        %v1142 = vstv %s1141
        %v1143 = vmul.f32 %v1142, %v636
        %v1144 = vmul.f32 %v1142, %v740
        %v1145 = vadd.f32 %v1139, %v1143
        %v1146 = vadd.f32 %v1140, %v1144
        %s1147 = sld [smem:[#allocation10 + $0x12]]
        %v1148 = vstv %s1147
        %v1149 = vadd.f32 %v1145, %v1148
        %v1150 = vadd.f32 %v1146, %v1148
        %v1151 = vtanh.pop %v1149
        %v1152 = vtanh.pop %v1150
        %s1153 = sld [smem:[#allocation11 + $0x12]]
        %v1154 = vstv %s1153
        %v1155 = vmul.f32 %v1154, %v1151
        %v1156 = vmul.f32 %v1154, %v1152
        %v1157 = vadd.f32 %v1069, %v1155
        %v1158 = vadd.f32 %v1070, %v1156
        %s1159 = sld [smem:[#allocation7 + $0x13]]
        %v1160 = vstv %s1159
        %v1161 = vmul.f32 %v1160, %v429
        %v1162 = vmul.f32 %v1160, %v532
        %s1163 = sld [smem:[#allocation8 + $0x13]]
        %v1164 = vstv %s1163
        %v1165 = vmul.f32 %v1164, %v636
        %v1166 = vmul.f32 %v1164, %v740
        %v1167 = vadd.f32 %v1161, %v1165
        %v1168 = vadd.f32 %v1162, %v1166
        %s1169 = sld [smem:[#allocation10 + $0x13]]
        %v1170 = vstv %s1169
        %v1171 = vadd.f32 %v1167, %v1170
        %v1172 = vadd.f32 %v1168, %v1170
        %v1173 = vtanh.pop %v1171
        %v1174 = vtanh.pop %v1172
        %s1175 = sld [smem:[#allocation11 + $0x13]]
        %v1176 = vstv %s1175
        %v1177 = vmul.f32 %v1176, %v1173
        %v1178 = vmul.f32 %v1176, %v1174
        %v1179 = vadd.f32 %v1091, %v1177
        %v1180 = vadd.f32 %v1092, %v1178
        %s1181 = sld [smem:[#allocation7 + $0x14]]
        %v1182 = vstv %s1181
        %v1183 = vmul.f32 %v1182, %v429
        %v1184 = vmul.f32 %v1182, %v532
        %s1185 = sld [smem:[#allocation8 + $0x14]]
        %v1186 = vstv %s1185
        %v1187 = vmul.f32 %v1186, %v636
        %v1188 = vmul.f32 %v1186, %v740
        %v1189 = vadd.f32 %v1183, %v1187
        %v1190 = vadd.f32 %v1184, %v1188
        %s1191 = sld [smem:[#allocation10 + $0x14]]
        %v1192 = vstv %s1191
        %v1193 = vadd.f32 %v1189, %v1192
        %v1194 = vadd.f32 %v1190, %v1192
        %v1195 = vtanh.pop %v1193
        %v1196 = vtanh.pop %v1194
        %s1197 = sld [smem:[#allocation11 + $0x14]]
        %v1198 = vstv %s1197
        %v1199 = vmul.f32 %v1198, %v1195
        %v1200 = vmul.f32 %v1198, %v1196
        %v1201 = vadd.f32 %v1113, %v1199
        %v1202 = vadd.f32 %v1114, %v1200
        %s1203 = sld [smem:[#allocation7 + $0x15]]
        %v1204 = vstv %s1203
        %v1205 = vmul.f32 %v1204, %v429
        %v1206 = vmul.f32 %v1204, %v532
        %s1207 = sld [smem:[#allocation8 + $0x15]]
        %v1208 = vstv %s1207
        %v1209 = vmul.f32 %v1208, %v636
        %v1210 = vmul.f32 %v1208, %v740
        %v1211 = vadd.f32 %v1205, %v1209
        %v1212 = vadd.f32 %v1206, %v1210
        %s1213 = sld [smem:[#allocation10 + $0x15]]
        %v1214 = vstv %s1213
        %v1215 = vadd.f32 %v1211, %v1214
        %v1216 = vadd.f32 %v1212, %v1214
        %v1217 = vtanh.pop %v1215
        %v1218 = vtanh.pop %v1216
        %s1219 = sld [smem:[#allocation11 + $0x15]]
        %v1220 = vstv %s1219
        %v1221 = vmul.f32 %v1220, %v1217
        %v1222 = vmul.f32 %v1220, %v1218
        %v1223 = vadd.f32 %v1135, %v1221
        %v1224 = vadd.f32 %v1136, %v1222
        %s1225 = sld [smem:[#allocation7 + $0x16]]
        %v1226 = vstv %s1225
        %v1227 = vmul.f32 %v1226, %v429
        %v1228 = vmul.f32 %v1226, %v532
        %s1229 = sld [smem:[#allocation8 + $0x16]]
        %v1230 = vstv %s1229
        %v1231 = vmul.f32 %v1230, %v636
        %v1232 = vmul.f32 %v1230, %v740
        %v1233 = vadd.f32 %v1227, %v1231
        %v1234 = vadd.f32 %v1228, %v1232
        %s1235 = sld [smem:[#allocation10 + $0x16]]
        %v1236 = vstv %s1235
        %v1237 = vadd.f32 %v1233, %v1236
        %v1238 = vadd.f32 %v1234, %v1236
        %v1239 = vtanh.pop %v1237
        %v1240 = vtanh.pop %v1238
        %s1241 = sld [smem:[#allocation11 + $0x16]]
        %v1242 = vstv %s1241
        %v1243 = vmul.f32 %v1242, %v1239
        %v1244 = vmul.f32 %v1242, %v1240
        %v1245 = vadd.f32 %v1157, %v1243
        %v1246 = vadd.f32 %v1158, %v1244
        %s1247 = sld [smem:[#allocation7 + $0x17]]
        %v1248 = vstv %s1247
        %v1249 = vmul.f32 %v1248, %v429
        %v1250 = vmul.f32 %v1248, %v532
        %s1251 = sld [smem:[#allocation8 + $0x17]]
        %v1252 = vstv %s1251
        %v1253 = vmul.f32 %v1252, %v636
        %v1254 = vmul.f32 %v1252, %v740
        %v1255 = vadd.f32 %v1249, %v1253
        %v1256 = vadd.f32 %v1250, %v1254
        %s1257 = sld [smem:[#allocation10 + $0x17]]
        %v1258 = vstv %s1257
        %v1259 = vadd.f32 %v1255, %v1258
        %v1260 = vadd.f32 %v1256, %v1258
        %v1261 = vtanh.pop %v1259
        %v1262 = vtanh.pop %v1260
        %s1263 = sld [smem:[#allocation11 + $0x17]]
        %v1264 = vstv %s1263
        %v1265 = vmul.f32 %v1264, %v1261
        %v1266 = vmul.f32 %v1264, %v1262
        %v1267 = vadd.f32 %v1179, %v1265
        %v1268 = vadd.f32 %v1180, %v1266
        %s1269 = sld [smem:[#allocation7 + $0x18]]
        %v1270 = vstv %s1269
        %v1271 = vmul.f32 %v1270, %v429
        %v1272 = vmul.f32 %v1270, %v532
        %s1273 = sld [smem:[#allocation8 + $0x18]]
        %v1274 = vstv %s1273
        %v1275 = vmul.f32 %v1274, %v636
        %v1276 = vmul.f32 %v1274, %v740
        %v1277 = vadd.f32 %v1271, %v1275
        %v1278 = vadd.f32 %v1272, %v1276
        %s1279 = sld [smem:[#allocation10 + $0x18]]
        %v1280 = vstv %s1279
        %v1281 = vadd.f32 %v1277, %v1280
        %v1282 = vadd.f32 %v1278, %v1280
        %v1283 = vtanh.pop %v1281
        %v1284 = vtanh.pop %v1282
        %s1285 = sld [smem:[#allocation11 + $0x18]]
        %v1286 = vstv %s1285
        %v1287 = vmul.f32 %v1286, %v1283
        %v1288 = vmul.f32 %v1286, %v1284
        %v1289 = vadd.f32 %v1201, %v1287
        %v1290 = vadd.f32 %v1202, %v1288
        %s1291 = sld [smem:[#allocation7 + $0x19]]
        %v1292 = vstv %s1291
        %v1293 = vmul.f32 %v1292, %v429
        %v1294 = vmul.f32 %v1292, %v532
        %s1295 = sld [smem:[#allocation8 + $0x19]]
        %v1296 = vstv %s1295
        %v1297 = vmul.f32 %v1296, %v636
        %v1298 = vmul.f32 %v1296, %v740
        %v1299 = vadd.f32 %v1293, %v1297
        %v1300 = vadd.f32 %v1294, %v1298
        %s1301 = sld [smem:[#allocation10 + $0x19]]
        %v1302 = vstv %s1301
        %v1303 = vadd.f32 %v1299, %v1302
        %v1304 = vadd.f32 %v1300, %v1302
        %v1305 = vtanh.pop %v1303
        %v1306 = vtanh.pop %v1304
        %s1307 = sld [smem:[#allocation11 + $0x19]]
        %v1308 = vstv %s1307
        %v1309 = vmul.f32 %v1308, %v1305
        %v1310 = vmul.f32 %v1308, %v1306
        %v1311 = vadd.f32 %v1223, %v1309
        %v1312 = vadd.f32 %v1224, %v1310
        %s1313 = sld [smem:[#allocation7 + $0x1a]]
        %v1314 = vstv %s1313
        %v1315 = vmul.f32 %v1314, %v429
        %v1316 = vmul.f32 %v1314, %v532
        %s1317 = sld [smem:[#allocation8 + $0x1a]]
        %v1318 = vstv %s1317
        %v1319 = vmul.f32 %v1318, %v636
        %v1320 = vmul.f32 %v1318, %v740
        %v1321 = vadd.f32 %v1315, %v1319
        %v1322 = vadd.f32 %v1316, %v1320
        %s1323 = sld [smem:[#allocation10 + $0x1a]]
        %v1324 = vstv %s1323
        %v1325 = vadd.f32 %v1321, %v1324
        %v1326 = vadd.f32 %v1322, %v1324
        %v1327 = vtanh.pop %v1325
        %v1328 = vtanh.pop %v1326
        %s1329 = sld [smem:[#allocation11 + $0x1a]]
        %v1330 = vstv %s1329
        %v1331 = vmul.f32 %v1330, %v1327
        %v1332 = vmul.f32 %v1330, %v1328
        %v1333 = vadd.f32 %v1245, %v1331
        %v1334 = vadd.f32 %v1246, %v1332
        %s1335 = sld [smem:[#allocation7 + $0x1b]]
        %v1336 = vstv %s1335
        %v1337 = vmul.f32 %v1336, %v429
        %v1338 = vmul.f32 %v1336, %v532
        %s1339 = sld [smem:[#allocation8 + $0x1b]]
        %v1340 = vstv %s1339
        %v1341 = vmul.f32 %v1340, %v636
        %v1342 = vmul.f32 %v1340, %v740
        %v1343 = vadd.f32 %v1337, %v1341
        %v1344 = vadd.f32 %v1338, %v1342
        %s1345 = sld [smem:[#allocation10 + $0x1b]]
        %v1346 = vstv %s1345
        %v1347 = vadd.f32 %v1343, %v1346
        %v1348 = vadd.f32 %v1344, %v1346
        %v1349 = vtanh.pop %v1347
        %v1350 = vtanh.pop %v1348
        %s1351 = sld [smem:[#allocation11 + $0x1b]]
        %v1352 = vstv %s1351
        %v1353 = vmul.f32 %v1352, %v1349
        %v1354 = vmul.f32 %v1352, %v1350
        %v1355 = vadd.f32 %v1267, %v1353
        %v1356 = vadd.f32 %v1268, %v1354
        %s1357 = sld [smem:[#allocation7 + $0x1c]]
        %v1358 = vstv %s1357
        %v1359 = vmul.f32 %v1358, %v429
        %v1360 = vmul.f32 %v1358, %v532
        %s1361 = sld [smem:[#allocation8 + $0x1c]]
        %v1362 = vstv %s1361
        %v1363 = vmul.f32 %v1362, %v636
        %v1364 = vmul.f32 %v1362, %v740
        %v1365 = vadd.f32 %v1359, %v1363
        %v1366 = vadd.f32 %v1360, %v1364
        %s1367 = sld [smem:[#allocation10 + $0x1c]]
        %v1368 = vstv %s1367
        %v1369 = vadd.f32 %v1365, %v1368
        %v1370 = vadd.f32 %v1366, %v1368
        %v1371 = vtanh.pop %v1369
        %v1372 = vtanh.pop %v1370
        %s1373 = sld [smem:[#allocation11 + $0x1c]]
        %v1374 = vstv %s1373
        %v1375 = vmul.f32 %v1374, %v1371
        %v1376 = vmul.f32 %v1374, %v1372
        %v1377 = vadd.f32 %v1289, %v1375
        %v1378 = vadd.f32 %v1290, %v1376
        %s1379 = sld [smem:[#allocation7 + $0x1d]]
        %v1380 = vstv %s1379
        %v1381 = vmul.f32 %v1380, %v429
        %v1382 = vmul.f32 %v1380, %v532
        %s1383 = sld [smem:[#allocation8 + $0x1d]]
        %v1384 = vstv %s1383
        %v1385 = vmul.f32 %v1384, %v636
        %v1386 = vmul.f32 %v1384, %v740
        %v1387 = vadd.f32 %v1381, %v1385
        %v1388 = vadd.f32 %v1382, %v1386
        %s1389 = sld [smem:[#allocation10 + $0x1d]]
        %v1390 = vstv %s1389
        %v1391 = vadd.f32 %v1387, %v1390
        %v1392 = vadd.f32 %v1388, %v1390
        %v1393 = vtanh.pop %v1391
        %v1394 = vtanh.pop %v1392
        %s1395 = sld [smem:[#allocation11 + $0x1d]]
        %v1396 = vstv %s1395
        %v1397 = vmul.f32 %v1396, %v1393
        %v1398 = vmul.f32 %v1396, %v1394
        %v1399 = vadd.f32 %v1311, %v1397
        %v1400 = vadd.f32 %v1312, %v1398
        %s1401 = sld [smem:[#allocation7 + $0x1e]]
        %v1402 = vstv %s1401
        %v1403 = vmul.f32 %v1402, %v429
        %v1404 = vmul.f32 %v1402, %v532
        %s1405 = sld [smem:[#allocation8 + $0x1e]]
        %v1406 = vstv %s1405
        %v1407 = vmul.f32 %v1406, %v636
        %v1408 = vmul.f32 %v1406, %v740
        %v1409 = vadd.f32 %v1403, %v1407
        %v1410 = vadd.f32 %v1404, %v1408
        %s1411 = sld [smem:[#allocation10 + $0x1e]]
        %v1412 = vstv %s1411
        %v1413 = vadd.f32 %v1409, %v1412
        %v1414 = vadd.f32 %v1410, %v1412
        %v1415 = vtanh.pop %v1413
        %v1416 = vtanh.pop %v1414
        %s1417 = sld [smem:[#allocation11 + $0x1e]]
        %v1418 = vstv %s1417
        %v1419 = vmul.f32 %v1418, %v1415
        %v1420 = vmul.f32 %v1418, %v1416
        %v1421 = vadd.f32 %v1333, %v1419
        %v1422 = vadd.f32 %v1334, %v1420
        %s1423 = sld [smem:[#allocation7 + $0x1f]]
        %v1424 = vstv %s1423
        %v1425 = vmul.f32 %v1424, %v429
        %v1426 = vmul.f32 %v1424, %v532
        %s1427 = sld [smem:[#allocation8 + $0x1f]]
        %v1428 = vstv %s1427
        %v1429 = vmul.f32 %v1428, %v636
        %v1430 = vmul.f32 %v1428, %v740
        %v1431 = vadd.f32 %v1425, %v1429
        %v1432 = vadd.f32 %v1426, %v1430
        %s1433 = sld [smem:[#allocation10 + $0x1f]]
        %v1434 = vstv %s1433
        %v1435 = vadd.f32 %v1431, %v1434
        %v1436 = vadd.f32 %v1432, %v1434
        %v1437 = vtanh.pop %v1435
        %v1438 = vtanh.pop %v1436
        %s1439 = sld [smem:[#allocation11 + $0x1f]]
        %v1440 = vstv %s1439
        %v1441 = vmul.f32 %v1440, %v1437
        %v1442 = vmul.f32 %v1440, %v1438
        %v1443 = vadd.f32 %v1355, %v1441
        %v1444 = vadd.f32 %v1356, %v1442
        %s1445 = sld [smem:[#allocation7 + $0x20]]
        %v1446 = vstv %s1445
        %v1447 = vmul.f32 %v1446, %v429
        %v1448 = vmul.f32 %v1446, %v532
        %s1449 = sld [smem:[#allocation8 + $0x20]]
        %v1450 = vstv %s1449
        %v1451 = vmul.f32 %v1450, %v636
        %v1452 = vmul.f32 %v1450, %v740
        %v1453 = vadd.f32 %v1447, %v1451
        %v1454 = vadd.f32 %v1448, %v1452
        %s1455 = sld [smem:[#allocation10 + $0x20]]
        %v1456 = vstv %s1455
        %v1457 = vadd.f32 %v1453, %v1456
        %v1458 = vadd.f32 %v1454, %v1456
        %v1459 = vtanh.pop %v1457
        %v1460 = vtanh.pop %v1458
        %s1461 = sld [smem:[#allocation11 + $0x20]]
        %v1462 = vstv %s1461
        %v1463 = vmul.f32 %v1462, %v1459
        %v1464 = vmul.f32 %v1462, %v1460
        %v1465 = vadd.f32 %v1377, %v1463
        %v1466 = vadd.f32 %v1378, %v1464
        %s1467 = sld [smem:[#allocation7 + $0x21]]
        %v1468 = vstv %s1467
        %v1469 = vmul.f32 %v1468, %v429
        %v1470 = vmul.f32 %v1468, %v532
        %s1471 = sld [smem:[#allocation8 + $0x21]]
        %v1472 = vstv %s1471
        %v1473 = vmul.f32 %v1472, %v636
        %v1474 = vmul.f32 %v1472, %v740
        %v1475 = vadd.f32 %v1469, %v1473
        %v1476 = vadd.f32 %v1470, %v1474
        %s1477 = sld [smem:[#allocation10 + $0x21]]
        %v1478 = vstv %s1477
        %v1479 = vadd.f32 %v1475, %v1478
        %v1480 = vadd.f32 %v1476, %v1478
        %v1481 = vtanh.pop %v1479
        %v1482 = vtanh.pop %v1480
        %s1483 = sld [smem:[#allocation11 + $0x21]]
        %v1484 = vstv %s1483
        %v1485 = vmul.f32 %v1484, %v1481
        %v1486 = vmul.f32 %v1484, %v1482
        %v1487 = vadd.f32 %v1399, %v1485
        %v1488 = vadd.f32 %v1400, %v1486
        %s1489 = sld [smem:[#allocation7 + $0x22]]
        %v1490 = vstv %s1489
        %v1491 = vmul.f32 %v1490, %v429
        %v1492 = vmul.f32 %v1490, %v532
        %s1493 = sld [smem:[#allocation8 + $0x22]]
        %v1494 = vstv %s1493
        %v1495 = vmul.f32 %v1494, %v636
        %v1496 = vmul.f32 %v1494, %v740
        %v1497 = vadd.f32 %v1491, %v1495
        %v1498 = vadd.f32 %v1492, %v1496
        %s1499 = sld [smem:[#allocation10 + $0x22]]
        %v1500 = vstv %s1499
        %v1501 = vadd.f32 %v1497, %v1500
        %v1502 = vadd.f32 %v1498, %v1500
        %v1503 = vtanh.pop %v1501
        %v1504 = vtanh.pop %v1502
        %s1505 = sld [smem:[#allocation11 + $0x22]]
        %v1506 = vstv %s1505
        %v1507 = vmul.f32 %v1506, %v1503
        %v1508 = vmul.f32 %v1506, %v1504
        %v1509 = vadd.f32 %v1421, %v1507
        %v1510 = vadd.f32 %v1422, %v1508
        %s1511 = sld [smem:[#allocation7 + $0x23]]
        %v1512 = vstv %s1511
        %v1513 = vmul.f32 %v1512, %v429
        %v1514 = vmul.f32 %v1512, %v532
        %s1515 = sld [smem:[#allocation8 + $0x23]]
        %v1516 = vstv %s1515
        %v1517 = vmul.f32 %v1516, %v636
        %v1518 = vmul.f32 %v1516, %v740
        %v1519 = vadd.f32 %v1513, %v1517
        %v1520 = vadd.f32 %v1514, %v1518
        %s1521 = sld [smem:[#allocation10 + $0x23]]
        %v1522 = vstv %s1521
        %v1523 = vadd.f32 %v1519, %v1522
        %v1524 = vadd.f32 %v1520, %v1522
        %v1525 = vtanh.pop %v1523
        %v1526 = vtanh.pop %v1524
        %s1527 = sld [smem:[#allocation11 + $0x23]]
        %v1528 = vstv %s1527
        %v1529 = vmul.f32 %v1528, %v1525
        %v1530 = vmul.f32 %v1528, %v1526
        %v1531 = vadd.f32 %v1443, %v1529
        %v1532 = vadd.f32 %v1444, %v1530
        %s1533 = sld [smem:[#allocation7 + $0x24]]
        %v1534 = vstv %s1533
        %v1535 = vmul.f32 %v1534, %v429
        %v1536 = vmul.f32 %v1534, %v532
        %s1537 = sld [smem:[#allocation8 + $0x24]]
        %v1538 = vstv %s1537
        %v1539 = vmul.f32 %v1538, %v636
        %v1540 = vmul.f32 %v1538, %v740
        %v1541 = vadd.f32 %v1535, %v1539
        %v1542 = vadd.f32 %v1536, %v1540
        %s1543 = sld [smem:[#allocation10 + $0x24]]
        %v1544 = vstv %s1543
        %v1545 = vadd.f32 %v1541, %v1544
        %v1546 = vadd.f32 %v1542, %v1544
        %v1547 = vtanh.pop %v1545
        %v1548 = vtanh.pop %v1546
        %s1549 = sld [smem:[#allocation11 + $0x24]]
        %v1550 = vstv %s1549
        %v1551 = vmul.f32 %v1550, %v1547
        %v1552 = vmul.f32 %v1550, %v1548
        %v1553 = vadd.f32 %v1465, %v1551
        %v1554 = vadd.f32 %v1466, %v1552
        %s1555 = sld [smem:[#allocation7 + $0x25]]
        %v1556 = vstv %s1555
        %v1557 = vmul.f32 %v1556, %v429
        %v1558 = vmul.f32 %v1556, %v532
        %s1559 = sld [smem:[#allocation8 + $0x25]]
        %v1560 = vstv %s1559
        %v1561 = vmul.f32 %v1560, %v636
        %v1562 = vmul.f32 %v1560, %v740
        %v1563 = vadd.f32 %v1557, %v1561
        %v1564 = vadd.f32 %v1558, %v1562
        %s1565 = sld [smem:[#allocation10 + $0x25]]
        %v1566 = vstv %s1565
        %v1567 = vadd.f32 %v1563, %v1566
        %v1568 = vadd.f32 %v1564, %v1566
        %v1569 = vtanh.pop %v1567
        %v1570 = vtanh.pop %v1568
        %s1571 = sld [smem:[#allocation11 + $0x25]]
        %v1572 = vstv %s1571
        %v1573 = vmul.f32 %v1572, %v1569
        %v1574 = vmul.f32 %v1572, %v1570
        %v1575 = vadd.f32 %v1487, %v1573
        %v1576 = vadd.f32 %v1488, %v1574
        %s1577 = sld [smem:[#allocation7 + $0x26]]
        %v1578 = vstv %s1577
        %v1579 = vmul.f32 %v1578, %v429
        %v1580 = vmul.f32 %v1578, %v532
        %s1581 = sld [smem:[#allocation8 + $0x26]]
        %v1582 = vstv %s1581
        %v1583 = vmul.f32 %v1582, %v636
        %v1584 = vmul.f32 %v1582, %v740
        %v1585 = vadd.f32 %v1579, %v1583
        %v1586 = vadd.f32 %v1580, %v1584
        %s1587 = sld [smem:[#allocation10 + $0x26]]
        %v1588 = vstv %s1587
        %v1589 = vadd.f32 %v1585, %v1588
        %v1590 = vadd.f32 %v1586, %v1588
        %v1591 = vtanh.pop %v1589
        %v1592 = vtanh.pop %v1590
        %s1593 = sld [smem:[#allocation11 + $0x26]]
        %v1594 = vstv %s1593
        %v1595 = vmul.f32 %v1594, %v1591
        %v1596 = vmul.f32 %v1594, %v1592
        %v1597 = vadd.f32 %v1509, %v1595
        %v1598 = vadd.f32 %v1510, %v1596
        %s1599 = sld [smem:[#allocation7 + $0x27]]
        %v1600 = vstv %s1599
        %v1601 = vmul.f32 %v1600, %v429
        %v1602 = vmul.f32 %v1600, %v532
        %s1603 = sld [smem:[#allocation8 + $0x27]]
        %v1604 = vstv %s1603
        %v1605 = vmul.f32 %v1604, %v636
        %v1606 = vmul.f32 %v1604, %v740
        %v1607 = vadd.f32 %v1601, %v1605
        %v1608 = vadd.f32 %v1602, %v1606
        %s1609 = sld [smem:[#allocation10 + $0x27]]
        %v1610 = vstv %s1609
        %v1611 = vadd.f32 %v1607, %v1610
        %v1612 = vadd.f32 %v1608, %v1610
        %v1613 = vtanh.pop %v1611
        %v1614 = vtanh.pop %v1612
        %s1615 = sld [smem:[#allocation11 + $0x27]]
        %v1616 = vstv %s1615
        %v1617 = vmul.f32 %v1616, %v1613
        %v1618 = vmul.f32 %v1616, %v1614
        %v1619 = vadd.f32 %v1531, %v1617
        %v1620 = vadd.f32 %v1532, %v1618
        %s1621 = sld [smem:[#allocation7 + $0x28]]
        %v1622 = vstv %s1621
        %v1623 = vmul.f32 %v1622, %v429
        %v1624 = vmul.f32 %v1622, %v532
        %s1625 = sld [smem:[#allocation8 + $0x28]]
        %v1626 = vstv %s1625
        %v1627 = vmul.f32 %v1626, %v636
        %v1628 = vmul.f32 %v1626, %v740
        %v1629 = vadd.f32 %v1623, %v1627
        %v1630 = vadd.f32 %v1624, %v1628
        %s1631 = sld [smem:[#allocation10 + $0x28]]
        %v1632 = vstv %s1631
        %v1633 = vadd.f32 %v1629, %v1632
        %v1634 = vadd.f32 %v1630, %v1632
        %v1635 = vtanh.pop %v1633
        %v1636 = vtanh.pop %v1634
        %s1637 = sld [smem:[#allocation11 + $0x28]]
        %v1638 = vstv %s1637
        %v1639 = vmul.f32 %v1638, %v1635
        %v1640 = vmul.f32 %v1638, %v1636
        %v1641 = vadd.f32 %v1553, %v1639
        %v1642 = vadd.f32 %v1554, %v1640
        %s1643 = sld [smem:[#allocation7 + $0x29]]
        %v1644 = vstv %s1643
        %v1645 = vmul.f32 %v1644, %v429
        %v1646 = vmul.f32 %v1644, %v532
        %s1647 = sld [smem:[#allocation8 + $0x29]]
        %v1648 = vstv %s1647
        %v1649 = vmul.f32 %v1648, %v636
        %v1650 = vmul.f32 %v1648, %v740
        %v1651 = vadd.f32 %v1645, %v1649
        %v1652 = vadd.f32 %v1646, %v1650
        %s1653 = sld [smem:[#allocation10 + $0x29]]
        %v1654 = vstv %s1653
        %v1655 = vadd.f32 %v1651, %v1654
        %v1656 = vadd.f32 %v1652, %v1654
        %v1657 = vtanh.pop %v1655
        %v1658 = vtanh.pop %v1656
        %s1659 = sld [smem:[#allocation11 + $0x29]]
        %v1660 = vstv %s1659
        %v1661 = vmul.f32 %v1660, %v1657
        %v1662 = vmul.f32 %v1660, %v1658
        %v1663 = vadd.f32 %v1575, %v1661
        %v1664 = vadd.f32 %v1576, %v1662
        %s1665 = sld [smem:[#allocation7 + $0x2a]]
        %v1666 = vstv %s1665
        %v1667 = vmul.f32 %v1666, %v429
        %v1668 = vmul.f32 %v1666, %v532
        %s1669 = sld [smem:[#allocation8 + $0x2a]]
        %v1670 = vstv %s1669
        %v1671 = vmul.f32 %v1670, %v636
        %v1672 = vmul.f32 %v1670, %v740
        %v1673 = vadd.f32 %v1667, %v1671
        %v1674 = vadd.f32 %v1668, %v1672
        %s1675 = sld [smem:[#allocation10 + $0x2a]]
        %v1676 = vstv %s1675
        %v1677 = vadd.f32 %v1673, %v1676
        %v1678 = vadd.f32 %v1674, %v1676
        %v1679 = vtanh.pop %v1677
        %v1680 = vtanh.pop %v1678
        %s1681 = sld [smem:[#allocation11 + $0x2a]]
        %v1682 = vstv %s1681
        %v1683 = vmul.f32 %v1682, %v1679
        %v1684 = vmul.f32 %v1682, %v1680
        %v1685 = vadd.f32 %v1597, %v1683
        %v1686 = vadd.f32 %v1598, %v1684
        %s1687 = sld [smem:[#allocation7 + $0x2b]]
        %v1688 = vstv %s1687
        %v1689 = vmul.f32 %v1688, %v429
        %v1690 = vmul.f32 %v1688, %v532
        %s1691 = sld [smem:[#allocation8 + $0x2b]]
        %v1692 = vstv %s1691
        %v1693 = vmul.f32 %v1692, %v636
        %v1694 = vmul.f32 %v1692, %v740
        %v1695 = vadd.f32 %v1689, %v1693
        %v1696 = vadd.f32 %v1690, %v1694
        %s1697 = sld [smem:[#allocation10 + $0x2b]]
        %v1698 = vstv %s1697
        %v1699 = vadd.f32 %v1695, %v1698
        %v1700 = vadd.f32 %v1696, %v1698
        %v1701 = vtanh.pop %v1699
        %v1702 = vtanh.pop %v1700
        %s1703 = sld [smem:[#allocation11 + $0x2b]]
        %v1704 = vstv %s1703
        %v1705 = vmul.f32 %v1704, %v1701
        %v1706 = vmul.f32 %v1704, %v1702
        %v1707 = vadd.f32 %v1619, %v1705
        %v1708 = vadd.f32 %v1620, %v1706
        %s1709 = sld [smem:[#allocation7 + $0x2c]]
        %v1710 = vstv %s1709
        %v1711 = vmul.f32 %v1710, %v429
        %v1712 = vmul.f32 %v1710, %v532
        %s1713 = sld [smem:[#allocation8 + $0x2c]]
        %v1714 = vstv %s1713
        %v1715 = vmul.f32 %v1714, %v636
        %v1716 = vmul.f32 %v1714, %v740
        %v1717 = vadd.f32 %v1711, %v1715
        %v1718 = vadd.f32 %v1712, %v1716
        %s1719 = sld [smem:[#allocation10 + $0x2c]]
        %v1720 = vstv %s1719
        %v1721 = vadd.f32 %v1717, %v1720
        %v1722 = vadd.f32 %v1718, %v1720
        %v1723 = vtanh.pop %v1721
        %v1724 = vtanh.pop %v1722
        %s1725 = sld [smem:[#allocation11 + $0x2c]]
        %v1726 = vstv %s1725
        %v1727 = vmul.f32 %v1726, %v1723
        %v1728 = vmul.f32 %v1726, %v1724
        %v1729 = vadd.f32 %v1641, %v1727
        %v1730 = vadd.f32 %v1642, %v1728
        %s1731 = sld [smem:[#allocation7 + $0x2d]]
        %v1732 = vstv %s1731
        %v1733 = vmul.f32 %v1732, %v429
        %v1734 = vmul.f32 %v1732, %v532
        %s1735 = sld [smem:[#allocation8 + $0x2d]]
        %v1736 = vstv %s1735
        %v1737 = vmul.f32 %v1736, %v636
        %v1738 = vmul.f32 %v1736, %v740
        %v1739 = vadd.f32 %v1733, %v1737
        %v1740 = vadd.f32 %v1734, %v1738
        %s1741 = sld [smem:[#allocation10 + $0x2d]]
        %v1742 = vstv %s1741
        %v1743 = vadd.f32 %v1739, %v1742
        %v1744 = vadd.f32 %v1740, %v1742
        %v1745 = vtanh.pop %v1743
        %v1746 = vtanh.pop %v1744
        %s1747 = sld [smem:[#allocation11 + $0x2d]]
        %v1748 = vstv %s1747
        %v1749 = vmul.f32 %v1748, %v1745
        %v1750 = vmul.f32 %v1748, %v1746
        %v1751 = vadd.f32 %v1663, %v1749
        %v1752 = vadd.f32 %v1664, %v1750
        %s1753 = sld [smem:[#allocation7 + $0x2e]]
        %v1754 = vstv %s1753
        %v1755 = vmul.f32 %v1754, %v429
        %v1756 = vmul.f32 %v1754, %v532
        %s1757 = sld [smem:[#allocation8 + $0x2e]]
        %v1758 = vstv %s1757
        %v1759 = vmul.f32 %v1758, %v636
        %v1760 = vmul.f32 %v1758, %v740
        %v1761 = vadd.f32 %v1755, %v1759
        %v1762 = vadd.f32 %v1756, %v1760
        %s1763 = sld [smem:[#allocation10 + $0x2e]]
        %v1764 = vstv %s1763
        %v1765 = vadd.f32 %v1761, %v1764
        %v1766 = vadd.f32 %v1762, %v1764
        %v1767 = vtanh.pop %v1765
        %v1768 = vtanh.pop %v1766
        %s1769 = sld [smem:[#allocation11 + $0x2e]]
        %v1770 = vstv %s1769
        %v1771 = vmul.f32 %v1770, %v1767
        %v1772 = vmul.f32 %v1770, %v1768
        %v1773 = vadd.f32 %v1685, %v1771
        %v1774 = vadd.f32 %v1686, %v1772
        %s1775 = sld [smem:[#allocation7 + $0x2f]]
        %v1776 = vstv %s1775
        %v1777 = vmul.f32 %v1776, %v429
        %v1778 = vmul.f32 %v1776, %v532
        %s1779 = sld [smem:[#allocation8 + $0x2f]]
        %v1780 = vstv %s1779
        %v1781 = vmul.f32 %v1780, %v636
        %v1782 = vmul.f32 %v1780, %v740
        %v1783 = vadd.f32 %v1777, %v1781
        %v1784 = vadd.f32 %v1778, %v1782
        %s1785 = sld [smem:[#allocation10 + $0x2f]]
        %v1786 = vstv %s1785
        %v1787 = vadd.f32 %v1783, %v1786
        %v1788 = vadd.f32 %v1784, %v1786
        %v1789 = vtanh.pop %v1787
        %v1790 = vtanh.pop %v1788
        %s1791 = sld [smem:[#allocation11 + $0x2f]]
        %v1792 = vstv %s1791
        %v1793 = vmul.f32 %v1792, %v1789
        %v1794 = vmul.f32 %v1792, %v1790
        %v1795 = vadd.f32 %v1707, %v1793
        %v1796 = vadd.f32 %v1708, %v1794
        %s1797 = sld [smem:[#allocation7 + $0x30]]
        %v1798 = vstv %s1797
        %v1799 = vmul.f32 %v1798, %v429
        %v1800 = vmul.f32 %v1798, %v532
        %s1801 = sld [smem:[#allocation8 + $0x30]]
        %v1802 = vstv %s1801
        %v1803 = vmul.f32 %v1802, %v636
        %v1804 = vmul.f32 %v1802, %v740
        %v1805 = vadd.f32 %v1799, %v1803
        %v1806 = vadd.f32 %v1800, %v1804
        %s1807 = sld [smem:[#allocation10 + $0x30]]
        %v1808 = vstv %s1807
        %v1809 = vadd.f32 %v1805, %v1808
        %v1810 = vadd.f32 %v1806, %v1808
        %v1811 = vtanh.pop %v1809
        %v1812 = vtanh.pop %v1810
        %s1813 = sld [smem:[#allocation11 + $0x30]]
        %v1814 = vstv %s1813
        %v1815 = vmul.f32 %v1814, %v1811
        %v1816 = vmul.f32 %v1814, %v1812
        %v1817 = vadd.f32 %v1729, %v1815
        %v1818 = vadd.f32 %v1730, %v1816
        %s1819 = sld [smem:[#allocation7 + $0x31]]
        %v1820 = vstv %s1819
        %v1821 = vmul.f32 %v1820, %v429
        %v1822 = vmul.f32 %v1820, %v532
        %s1823 = sld [smem:[#allocation8 + $0x31]]
        %v1824 = vstv %s1823
        %v1825 = vmul.f32 %v1824, %v636
        %v1826 = vmul.f32 %v1824, %v740
        %v1827 = vadd.f32 %v1821, %v1825
        %v1828 = vadd.f32 %v1822, %v1826
        %s1829 = sld [smem:[#allocation10 + $0x31]]
        %v1830 = vstv %s1829
        %v1831 = vadd.f32 %v1827, %v1830
        %v1832 = vadd.f32 %v1828, %v1830
        %v1833 = vtanh.pop %v1831
        %v1834 = vtanh.pop %v1832
        %s1835 = sld [smem:[#allocation11 + $0x31]]
        %v1836 = vstv %s1835
        %v1837 = vmul.f32 %v1836, %v1833
        %v1838 = vmul.f32 %v1836, %v1834
        %v1839 = vadd.f32 %v1751, %v1837
        %v1840 = vadd.f32 %v1752, %v1838
        %s1841 = sld [smem:[#allocation7 + $0x32]]
        %v1842 = vstv %s1841
        %v1843 = vmul.f32 %v1842, %v429
        %v1844 = vmul.f32 %v1842, %v532
        %s1845 = sld [smem:[#allocation8 + $0x32]]
        %v1846 = vstv %s1845
        %v1847 = vmul.f32 %v1846, %v636
        %v1848 = vmul.f32 %v1846, %v740
        %v1849 = vadd.f32 %v1843, %v1847
        %v1850 = vadd.f32 %v1844, %v1848
        %s1851 = sld [smem:[#allocation10 + $0x32]]
        %v1852 = vstv %s1851
        %v1853 = vadd.f32 %v1849, %v1852
        %v1854 = vadd.f32 %v1850, %v1852
        %v1855 = vtanh.pop %v1853
        %v1856 = vtanh.pop %v1854
        %s1857 = sld [smem:[#allocation11 + $0x32]]
        %v1858 = vstv %s1857
        %v1859 = vmul.f32 %v1858, %v1855
        %v1860 = vmul.f32 %v1858, %v1856
        %v1861 = vadd.f32 %v1773, %v1859
        %v1862 = vadd.f32 %v1774, %v1860
        %s1863 = sld [smem:[#allocation7 + $0x33]]
        %v1864 = vstv %s1863
        %v1865 = vmul.f32 %v1864, %v429
        %v1866 = vmul.f32 %v1864, %v532
        %s1867 = sld [smem:[#allocation8 + $0x33]]
        %v1868 = vstv %s1867
        %v1869 = vmul.f32 %v1868, %v636
        %v1870 = vmul.f32 %v1868, %v740
        %v1871 = vadd.f32 %v1865, %v1869
        %v1872 = vadd.f32 %v1866, %v1870
        %s1873 = sld [smem:[#allocation10 + $0x33]]
        %v1874 = vstv %s1873
        %v1875 = vadd.f32 %v1871, %v1874
        %v1876 = vadd.f32 %v1872, %v1874
        %v1877 = vtanh.pop %v1875
        %v1878 = vtanh.pop %v1876
        %s1879 = sld [smem:[#allocation11 + $0x33]]
        %v1880 = vstv %s1879
        %v1881 = vmul.f32 %v1880, %v1877
        %v1882 = vmul.f32 %v1880, %v1878
        %v1883 = vadd.f32 %v1795, %v1881
        %v1884 = vadd.f32 %v1796, %v1882
        %s1885 = sld [smem:[#allocation7 + $0x34]]
        %v1886 = vstv %s1885
        %v1887 = vmul.f32 %v1886, %v429
        %v1888 = vmul.f32 %v1886, %v532
        %s1889 = sld [smem:[#allocation8 + $0x34]]
        %v1890 = vstv %s1889
        %v1891 = vmul.f32 %v1890, %v636
        %v1892 = vmul.f32 %v1890, %v740
        %v1893 = vadd.f32 %v1887, %v1891
        %v1894 = vadd.f32 %v1888, %v1892
        %s1895 = sld [smem:[#allocation10 + $0x34]]
        %v1896 = vstv %s1895
        %v1897 = vadd.f32 %v1893, %v1896
        %v1898 = vadd.f32 %v1894, %v1896
        %v1899 = vtanh.pop %v1897
        %v1900 = vtanh.pop %v1898
        %s1901 = sld [smem:[#allocation11 + $0x34]]
        %v1902 = vstv %s1901
        %v1903 = vmul.f32 %v1902, %v1899
        %v1904 = vmul.f32 %v1902, %v1900
        %v1905 = vadd.f32 %v1817, %v1903
        %v1906 = vadd.f32 %v1818, %v1904
        %s1907 = sld [smem:[#allocation7 + $0x35]]
        %v1908 = vstv %s1907
        %v1909 = vmul.f32 %v1908, %v429
        %v1910 = vmul.f32 %v1908, %v532
        %s1911 = sld [smem:[#allocation8 + $0x35]]
        %v1912 = vstv %s1911
        %v1913 = vmul.f32 %v1912, %v636
        %v1914 = vmul.f32 %v1912, %v740
        %v1915 = vadd.f32 %v1909, %v1913
        %v1916 = vadd.f32 %v1910, %v1914
        %s1917 = sld [smem:[#allocation10 + $0x35]]
        %v1918 = vstv %s1917
        %v1919 = vadd.f32 %v1915, %v1918
        %v1920 = vadd.f32 %v1916, %v1918
        %v1921 = vtanh.pop %v1919
        %v1922 = vtanh.pop %v1920
        %s1923 = sld [smem:[#allocation11 + $0x35]]
        %v1924 = vstv %s1923
        %v1925 = vmul.f32 %v1924, %v1921
        %v1926 = vmul.f32 %v1924, %v1922
        %v1927 = vadd.f32 %v1839, %v1925
        %v1928 = vadd.f32 %v1840, %v1926
        %s1929 = sld [smem:[#allocation7 + $0x36]]
        %v1930 = vstv %s1929
        %v1931 = vmul.f32 %v1930, %v429
        %v1932 = vmul.f32 %v1930, %v532
        %s1933 = sld [smem:[#allocation8 + $0x36]]
        %v1934 = vstv %s1933
        %v1935 = vmul.f32 %v1934, %v636
        %v1936 = vmul.f32 %v1934, %v740
        %v1937 = vadd.f32 %v1931, %v1935
        %v1938 = vadd.f32 %v1932, %v1936
        %s1939 = sld [smem:[#allocation10 + $0x36]]
        %v1940 = vstv %s1939
        %v1941 = vadd.f32 %v1937, %v1940
        %v1942 = vadd.f32 %v1938, %v1940
        %v1943 = vtanh.pop %v1941
        %v1944 = vtanh.pop %v1942
        %s1945 = sld [smem:[#allocation11 + $0x36]]
        %v1946 = vstv %s1945
        %v1947 = vmul.f32 %v1946, %v1943
        %v1948 = vmul.f32 %v1946, %v1944
        %v1949 = vadd.f32 %v1861, %v1947
        %v1950 = vadd.f32 %v1862, %v1948
        %s1951 = sld [smem:[#allocation7 + $0x37]]
        %v1952 = vstv %s1951
        %v1953 = vmul.f32 %v1952, %v429
        %v1954 = vmul.f32 %v1952, %v532
        %s1955 = sld [smem:[#allocation8 + $0x37]]
        %v1956 = vstv %s1955
        %v1957 = vmul.f32 %v1956, %v636
        %v1958 = vmul.f32 %v1956, %v740
        %v1959 = vadd.f32 %v1953, %v1957
        %v1960 = vadd.f32 %v1954, %v1958
        %s1961 = sld [smem:[#allocation10 + $0x37]]
        %v1962 = vstv %s1961
        %v1963 = vadd.f32 %v1959, %v1962
        %v1964 = vadd.f32 %v1960, %v1962
        %v1965 = vtanh.pop %v1963
        %v1966 = vtanh.pop %v1964
        %s1967 = sld [smem:[#allocation11 + $0x37]]
        %v1968 = vstv %s1967
        %v1969 = vmul.f32 %v1968, %v1965
        %v1970 = vmul.f32 %v1968, %v1966
        %v1971 = vadd.f32 %v1883, %v1969
        %v1972 = vadd.f32 %v1884, %v1970
        %s1973 = sld [smem:[#allocation7 + $0x38]]
        %v1974 = vstv %s1973
        %v1975 = vmul.f32 %v1974, %v429
        %v1976 = vmul.f32 %v1974, %v532
        %s1977 = sld [smem:[#allocation8 + $0x38]]
        %v1978 = vstv %s1977
        %v1979 = vmul.f32 %v1978, %v636
        %v1980 = vmul.f32 %v1978, %v740
        %v1981 = vadd.f32 %v1975, %v1979
        %v1982 = vadd.f32 %v1976, %v1980
        %s1983 = sld [smem:[#allocation10 + $0x38]]
        %v1984 = vstv %s1983
        %v1985 = vadd.f32 %v1981, %v1984
        %v1986 = vadd.f32 %v1982, %v1984
        %v1987 = vtanh.pop %v1985
        %v1988 = vtanh.pop %v1986
        %s1989 = sld [smem:[#allocation11 + $0x38]]
        %v1990 = vstv %s1989
        %v1991 = vmul.f32 %v1990, %v1987
        %v1992 = vmul.f32 %v1990, %v1988
        %v1993 = vadd.f32 %v1905, %v1991
        %v1994 = vadd.f32 %v1906, %v1992
        %s1995 = sld [smem:[#allocation7 + $0x39]]
        %v1996 = vstv %s1995
        %v1997 = vmul.f32 %v1996, %v429
        %v1998 = vmul.f32 %v1996, %v532
        %s1999 = sld [smem:[#allocation8 + $0x39]]
        %v2000 = vstv %s1999
        %v2001 = vmul.f32 %v2000, %v636
        %v2002 = vmul.f32 %v2000, %v740
        %v2003 = vadd.f32 %v1997, %v2001
        %v2004 = vadd.f32 %v1998, %v2002
        %s2005 = sld [smem:[#allocation10 + $0x39]]
        %v2006 = vstv %s2005
        %v2007 = vadd.f32 %v2003, %v2006
        %v2008 = vadd.f32 %v2004, %v2006
        %v2009 = vtanh.pop %v2007
        %v2010 = vtanh.pop %v2008
        %s2011 = sld [smem:[#allocation11 + $0x39]]
        %v2012 = vstv %s2011
        %v2013 = vmul.f32 %v2012, %v2009
        %v2014 = vmul.f32 %v2012, %v2010
        %v2015 = vadd.f32 %v1927, %v2013
        %v2016 = vadd.f32 %v1928, %v2014
        %s2017 = sld [smem:[#allocation7 + $0x3a]]
        %v2018 = vstv %s2017
        %v2019 = vmul.f32 %v2018, %v429
        %v2020 = vmul.f32 %v2018, %v532
        %s2021 = sld [smem:[#allocation8 + $0x3a]]
        %v2022 = vstv %s2021
        %v2023 = vmul.f32 %v2022, %v636
        %v2024 = vmul.f32 %v2022, %v740
        %v2025 = vadd.f32 %v2019, %v2023
        %v2026 = vadd.f32 %v2020, %v2024
        %s2027 = sld [smem:[#allocation10 + $0x3a]]
        %v2028 = vstv %s2027
        %v2029 = vadd.f32 %v2025, %v2028
        %v2030 = vadd.f32 %v2026, %v2028
        %v2031 = vtanh.pop %v2029
        %v2032 = vtanh.pop %v2030
        %s2033 = sld [smem:[#allocation11 + $0x3a]]
        %v2034 = vstv %s2033
        %v2035 = vmul.f32 %v2034, %v2031
        %v2036 = vmul.f32 %v2034, %v2032
        %v2037 = vadd.f32 %v1949, %v2035
        %v2038 = vadd.f32 %v1950, %v2036
        %s2039 = sld [smem:[#allocation7 + $0x3b]]
        %v2040 = vstv %s2039
        %v2041 = vmul.f32 %v2040, %v429
        %v2042 = vmul.f32 %v2040, %v532
        %s2043 = sld [smem:[#allocation8 + $0x3b]]
        %v2044 = vstv %s2043
        %v2045 = vmul.f32 %v2044, %v636
        %v2046 = vmul.f32 %v2044, %v740
        %v2047 = vadd.f32 %v2041, %v2045
        %v2048 = vadd.f32 %v2042, %v2046
        %s2049 = sld [smem:[#allocation10 + $0x3b]]
        %v2050 = vstv %s2049
        %v2051 = vadd.f32 %v2047, %v2050
        %v2052 = vadd.f32 %v2048, %v2050
        %v2053 = vtanh.pop %v2051
        %v2054 = vtanh.pop %v2052
        %s2055 = sld [smem:[#allocation11 + $0x3b]]
        %v2056 = vstv %s2055
        %v2057 = vmul.f32 %v2056, %v2053
        %v2058 = vmul.f32 %v2056, %v2054
        %v2059 = vadd.f32 %v1971, %v2057
        %v2060 = vadd.f32 %v1972, %v2058
        %s2061 = sld [smem:[#allocation7 + $0x3c]]
        %v2062 = vstv %s2061
        %v2063 = vmul.f32 %v2062, %v429
        %v2064 = vmul.f32 %v2062, %v532
        %s2065 = sld [smem:[#allocation8 + $0x3c]]
        %v2066 = vstv %s2065
        %v2067 = vmul.f32 %v2066, %v636
        %v2068 = vmul.f32 %v2066, %v740
        %v2069 = vadd.f32 %v2063, %v2067
        %v2070 = vadd.f32 %v2064, %v2068
        %s2071 = sld [smem:[#allocation10 + $0x3c]]
        %v2072 = vstv %s2071
        %v2073 = vadd.f32 %v2069, %v2072
        %v2074 = vadd.f32 %v2070, %v2072
        %v2075 = vtanh.pop %v2073
        %v2076 = vtanh.pop %v2074
        %s2077 = sld [smem:[#allocation11 + $0x3c]]
        %v2078 = vstv %s2077
        %v2079 = vmul.f32 %v2078, %v2075
        %v2080 = vmul.f32 %v2078, %v2076
        %v2081 = vadd.f32 %v1993, %v2079
        %v2082 = vadd.f32 %v1994, %v2080
        %s2083 = sld [smem:[#allocation7 + $0x3d]]
        %v2084 = vstv %s2083
        %v2085 = vmul.f32 %v2084, %v429
        %v2086 = vmul.f32 %v2084, %v532
        %s2087 = sld [smem:[#allocation8 + $0x3d]]
        %v2088 = vstv %s2087
        %v2089 = vmul.f32 %v2088, %v636
        %v2090 = vmul.f32 %v2088, %v740
        %v2091 = vadd.f32 %v2085, %v2089
        %v2092 = vadd.f32 %v2086, %v2090
        %s2093 = sld [smem:[#allocation10 + $0x3d]]
        %v2094 = vstv %s2093
        %v2095 = vadd.f32 %v2091, %v2094
        %v2096 = vadd.f32 %v2092, %v2094
        %v2097 = vtanh.pop %v2095
        %v2098 = vtanh.pop %v2096
        %s2099 = sld [smem:[#allocation11 + $0x3d]]
        %v2100 = vstv %s2099
        %v2101 = vmul.f32 %v2100, %v2097
        %v2102 = vmul.f32 %v2100, %v2098
        %v2103 = vadd.f32 %v2015, %v2101
        %v2104 = vadd.f32 %v2016, %v2102
        %s2105 = sld [smem:[#allocation7 + $0x3e]]
        %v2106 = vstv %s2105
        %v2107 = vmul.f32 %v2106, %v429
        %v2108 = vmul.f32 %v2106, %v532
        %s2109 = sld [smem:[#allocation8 + $0x3e]]
        %v2110 = vstv %s2109
        %v2111 = vmul.f32 %v2110, %v636
        %v2112 = vmul.f32 %v2110, %v740
        %v2113 = vadd.f32 %v2107, %v2111
        %v2114 = vadd.f32 %v2108, %v2112
        %s2115 = sld [smem:[#allocation10 + $0x3e]]
        %v2116 = vstv %s2115
        %v2117 = vadd.f32 %v2113, %v2116
        %v2118 = vadd.f32 %v2114, %v2116
        %v2119 = vtanh.pop %v2117
        %v2120 = vtanh.pop %v2118
        %s2121 = sld [smem:[#allocation11 + $0x3e]]
        %v2122 = vstv %s2121
        %v2123 = vmul.f32 %v2122, %v2119
        %v2124 = vmul.f32 %v2122, %v2120
        %v2125 = vadd.f32 %v2037, %v2123
        %v2126 = vadd.f32 %v2038, %v2124
        %s2127 = sld [smem:[#allocation7 + $0x3f]]
        %v2128 = vstv %s2127
        %v2129 = vmul.f32 %v2128, %v429
        %v2130 = vmul.f32 %v2128, %v532
        %s2131 = sld [smem:[#allocation8 + $0x3f]]
        %v2132 = vstv %s2131
        %v2133 = vmul.f32 %v2132, %v636
        %v2134 = vmul.f32 %v2132, %v740
        %v2135 = vadd.f32 %v2129, %v2133
        %v2136 = vadd.f32 %v2130, %v2134
        %s2137 = sld [smem:[#allocation10 + $0x3f]]
        %v2138 = vstv %s2137
        %v2139 = vadd.f32 %v2135, %v2138
        %v2140 = vadd.f32 %v2136, %v2138
        %v2141 = vtanh.pop %v2139
        %v2142 = vtanh.pop %v2140
        %s2143 = sld [smem:[#allocation11 + $0x3f]]
        %v2144 = vstv %s2143
        %v2145 = vmul.f32 %v2144, %v2141
        %v2146 = vmul.f32 %v2144, %v2142
        %v2147 = vadd.f32 %v2059, %v2145
        %v2148 = vadd.f32 %v2060, %v2146
        %v2149 = vadd.f32 %v2081, %v2103
        %v2150 = vadd.f32 %v2082, %v2104
        %v2151 = vadd.f32 %v2125, %v2147
        %v2152 = vadd.f32 %v2126, %v2148
        %v2153 = vadd.f32 %v2149, %v2151
        %v2154 = vadd.f32 %v2150, %v2152
        %v2155 = vstv %s321
        %v2156 = vadd.f32 %v2153, %v2155
        %v2157 = vadd.f32 %v2154, %v2155
        %s2158 = smul.addr %s322, 8
        %s2159 = scalar_lea.vmem %s320, %s2158 [#allocation13]
        %2160 = vst [vmem:[%s2159] sm:$0xff] %v2156
        %2161 = vst [vmem:[%s2159 + $0x8] sm:$0xff] %v2157
        %s2162 = sand.u32 %s166, 1
        %s2163 = scalar_lea.sflag [#allocation5], %s2162
        %s2164 = sand.u32 %s166, 1
        %s2165 = smul.addr %s2164, 16
        %s2166 = scalar_lea.vmem [#allocation13], %s2165
        // Predicated region
        $region65: #{tpu_custom_call.1} parent=43 // pred_check
          %p2167 = pneg %p176
        $region66: #{tpu_custom_call.1} parent=43 // pred_check_branch
          %2169 = sbr.rel (%p2167) target = $region68
        $region67: #{tpu_custom_call.1} parent=43 // pred_region
          %s2171 = ssub.s32 256, 256
          %2172 = vsyncadd %s2163, %s2171
          %s2173 = smul.addr %s27, 2
          %s2174 = smul.addr %s2173, 128
          %s2175 = scalar_lea.hbm %s6, %s2174
          %s2177 = sshll.u32 %s2166, 4
          %s2178 = int_to_ptr.vmem [resolvable:$true] %s2177
          %2180 = dma.vmem_to_hbm [thread:$0]  %s2178, 256, %s2175, %s2163
        $region68: #{tpu_custom_call.1} parent=43 // pred_fallthru
          _
      $region44: #{tpu_custom_call.1} parent=5 // pred_fallthru
        _
      %p2181 = scmp.le.s32.totalorder 2, %s22
      // Predicated region
      $region69: #{tpu_custom_call.1} parent=5 // pred_check
        %p2182 = pneg %p2181
      $region70: #{tpu_custom_call.1} parent=5 // pred_check_branch
        %2184 = sbr.rel (%p2182) target = $region72
      $region71: #{tpu_custom_call.1} parent=5 // pred_region
        %s2185 = ssub.s32 %s22, 2
        // Predicated region
        $region73: #{tpu_custom_call.1} parent=71 // pred_check
          %p2186 = pneg %p182
        $region74: #{tpu_custom_call.1} parent=71 // pred_check_branch
          %2188 = sbr.rel (%p2186) target = $region76
        $region75: #{tpu_custom_call.1} parent=71 // pred_region
          %s2189 = sand.u32 %s167, 1
          %s2190 = scalar_lea.sflag [#allocation5], %s2189
          %s2191 = sand.u32 %s167, 1
          %s2192 = smul.addr %s2191, 16
          %s2193 = scalar_lea.vmem [#allocation13], %s2192
          %2194 = dma.done %s2190, 256
        $region76: #{tpu_custom_call.1} parent=71 // pred_fallthru
          _
      $region72: #{tpu_custom_call.1} parent=5 // pred_fallthru
        _
    $region6: #{tpu_custom_call.1} parent=1 // loop_footer
      %s26 = sadd.s32 1, %s22
    $region7: #{tpu_custom_call.1} parent=1 // loop_footer_branch
      %21 = sbr.rel target = $region3
    $region8: #{tpu_custom_call.1} parent=1 // loop_exit
      _
    %2195 = vsyncpa [#allocation4], 1
    %s2196 = scalar_lea.sflag [#allocation4], 1
    %2197 = vsyncpa %s2196, 1
    %2198 = vsyncpa [#allocation5], 1
    %s2199 = scalar_lea.sflag [#allocation5], 1
    %2200 = vsyncpa %s2199, 1
    %2201 = vsyncpa [#allocation6], 1
    %s2202 = scalar_lea.sflag [#allocation6], 1
    %2203 = vsyncpa %s2202, 1
    %2204 = vsyncpa [#allocation9], 1
    %2205 = vsyncpa [#allocation12], 1

</llo_original>
